<compile_context>
chip_gen: v5e
topology: v5e:2x2
jax: 0.10.0
libtpu: 0.0.40
codegen_flags: <defaults>
</compile_context>

<pallas_src>
import functools

import jax
import jax.numpy as jnp
import numpy as np
from jax.experimental import pallas as pl
from jax.experimental.pallas import tpu as pltpu


# -----------------------------------------------------------------------------
# Fused decoder kernel
# -----------------------------------------------------------------------------
def _make_decoder_kernel(*, num_layers, num_supports, max_diffusion_step,
                         num_nodes, batch_per_shard, num_units, output_dim):
    L, S, K = num_layers, num_supports, max_diffusion_step
    N, Bs, U, O = num_nodes, batch_per_shard, num_units, output_dim

    def kernel(*refs):
        h0_ref = refs[0]                      # (1, L*Bs, N, U)
        sup_ref = refs[1]                     # (S, N, N)
        wrefs = refs[2:2 + 9 * L]             # per layer: wxr wxu wxc whr whu whc br bu bc
        w_proj_ref = refs[2 + 9 * L]          # (U, O)
        b_proj_ref = refs[3 + 9 * L]          # (1, O)
        out_ref = refs[4 + 9 * L]             # (1, 1, Bs*N, O)
        h_scr = refs[5 + 9 * L]               # VMEM (L*Bs, N, U)  hidden per layer/batch
        dec_scr = refs[6 + 9 * L]             # VMEM (Bs, N, O)    autoregressive input

        t = pl.program_id(1)

        @pl.when(t == 0)
        def _init():
            h_scr[...] = h0_ref[0]
            dec_scr[...] = jnp.zeros_like(dec_scr)        # GO symbol

        # supports loaded once per grid step
        sups = [sup_ref[s] for s in range(S)]

        def diffuse(x_cat):
            """Diffusion feature stack of a batch-concat (N, Bs*F) tensor.

            Mirrors DCGRUCell._gconv exactly, including the x0 carry-over
            across supports of the reference implementation.  Returns a list
            of M = S*K + 1 arrays of shape (N, Bs*F).
            """
            x0 = x_cat
            feats = [x0]
            if K > 0:
                for s in range(S):
                    x1 = jnp.dot(sups[s], x0,
                                 preferred_element_type=jnp.float32)
                    feats.append(x1)
                    for _ in range(2, K + 1):
                        x2 = 2.0 * jnp.dot(
                            sups[s], x1,
                            preferred_element_type=jnp.float32) - x0
                        feats.append(x2)
                        x1, x0 = x2, x1
            return feats

        def gather(feats, b, width):
            """Per-batch feature block (N, M*width); column order m*width + f
            matches the (M, width, out) -> (M*width, out) weight flattening."""
            return jnp.concatenate(
                [f[:, b * width:(b + 1) * width] for f in feats], axis=-1)

        # current layer input: one (N, d_in) block per batch element
        x_b = [dec_scr[b] for b in range(Bs)]
        d_in = O
        for l in range(L):
            wxr, wxu, wxc, whr, whu, whc, br, bu, bc = wrefs[9 * l:9 * l + 9]
            Wxr, Wxu, Wxc = wxr[...], wxu[...], wxc[...]
            Whr, Whu, Whc = whr[...], whu[...], whc[...]
            Br, Bu, Bc = br[...], bu[...], bc[...]

            h_b = [h_scr[l * Bs + b] for b in range(Bs)]

            # diffusion batched over the shard batch (lane width Bs * feature)
            xfeats = diffuse(jnp.concatenate(x_b, axis=-1))     # (N, Bs*d_in)
            hfeats = diffuse(jnp.concatenate(h_b, axis=-1))     # (N, Bs*U)
            Xf = [gather(xfeats, b, d_in) for b in range(Bs)]   # (N, M*d_in)
            Hf = [gather(hfeats, b, U) for b in range(Bs)]      # (N, M*U)

            # reset / update gates (bias_start = 1.0)
            r_b, u_b = [], []
            for b in range(Bs):
                r_b.append(jax.nn.sigmoid(
                    jnp.dot(Xf[b], Wxr, preferred_element_type=jnp.float32)
                    + jnp.dot(Hf[b], Whr, preferred_element_type=jnp.float32)
                    + Br))
                u_b.append(jax.nn.sigmoid(
                    jnp.dot(Xf[b], Wxu, preferred_element_type=jnp.float32)
                    + jnp.dot(Hf[b], Whu, preferred_element_type=jnp.float32)
                    + Bu))

            # candidate: tanh(gconv([x, r*h])) -- x diffusion features reused
            rh_b = [r_b[b] * h_b[b] for b in range(Bs)]
            rhfeats = diffuse(jnp.concatenate(rh_b, axis=-1))
            new_x = []
            for b in range(Bs):
                RHf = gather(rhfeats, b, U)
                c = jnp.tanh(
                    jnp.dot(Xf[b], Wxc, preferred_element_type=jnp.float32)
                    + jnp.dot(RHf, Whc, preferred_element_type=jnp.float32)
                    + Bc)
                h_new = u_b[b] * h_b[b] + (1.0 - u_b[b]) * c
                h_scr[l * Bs + b] = h_new
                new_x.append(h_new)
            x_b = new_x
            d_in = U

        # fused output projection: decoder output + next-step decoder input
        Wp, Bp = w_proj_ref[...], b_proj_ref[...]
        for b in range(Bs):
            y = jnp.dot(x_b[b], Wp, preferred_element_type=jnp.float32) + Bp
            out_ref[0, 0, b * N:(b + 1) * N, :] = y
            dec_scr[b] = y

    return kernel


def _const_spec(arr):
    nd = arr.ndim
    return pl.BlockSpec(arr.shape, lambda s, t, _nd=nd: (0,) * _nd)


def dcrnn_decoder_forward(x, params, supports, *, num_nodes, rnn_units,
                          output_dim, horizon, max_diffusion_step,
                          num_rnn_layers, batch_shards=1):
    """x: (B, L, N, rnn_units) encoder hidden  ->  (B, horizon, N, output_dim)."""
    B = x.shape[0]
    N, U, O = num_nodes, rnn_units, output_dim
    L, T, K = num_rnn_layers, horizon, max_diffusion_step
    S = int(supports.shape[0])
    M = S * K + 1
    assert B % batch_shards == 0, "batch must divide evenly into batch_shards"
    Bs = B // batch_shards

    # initial hidden: (B, L, N, U) -> (shards, L*Bs, N, U), row l*Bs + b
    h0 = jnp.transpose(x.reshape(batch_shards, Bs, L, N, U), (0, 2, 1, 3, 4))
    h0 = h0.reshape(batch_shards, L * Bs, N, U).astype(jnp.float32)

    inputs = [h0, supports.astype(jnp.float32)]
    in_specs = [
        pl.BlockSpec((1, L * Bs, N, U), lambda s, t: (s, 0, 0, 0)),
        pl.BlockSpec((S, N, N), lambda s, t: (0, 0, 0)),
    ]

    # Split each gconv weight into x-part / h-part and r / u / c slices so the
    # kernel never concatenates [x, h] and never slices a 2U-wide gate result.
    for l in range(L):
        d_in = O if l == 0 else U
        w_ru = params["w_ru"][l]                       # (M, d_in + U, 2U)
        w_c = params["w_c"][l]                         # (M, d_in + U, U)
        b_ru = params["b_ru"][l]                       # (1, 2U)
        b_c = params["b_c"][l]                         # (1, U)
        wx_ru = w_ru[:, :d_in, :].reshape(M * d_in, 2 * U)
        wh_ru = w_ru[:, d_in:, :].reshape(M * U, 2 * U)
        layer_arrays = [
            wx_ru[:, :U], wx_ru[:, U:],                # wxr, wxu
            w_c[:, :d_in, :].reshape(M * d_in, U),     # wxc
            wh_ru[:, :U], wh_ru[:, U:],                # whr, whu
            w_c[:, d_in:, :].reshape(M * U, U),        # whc
            b_ru[:, :U], b_ru[:, U:], b_c,             # br, bu, bc
        ]
        for a in layer_arrays:
            inputs.append(a)
            in_specs.append(_const_spec(a))

    inputs += [params["w_proj"], params["b_proj"]]
    in_specs += [_const_spec(params["w_proj"]), _const_spec(params["b_proj"])]

    kernel = _make_decoder_kernel(
        num_layers=L, num_supports=S, max_diffusion_step=K, num_nodes=N,
        batch_per_shard=Bs, num_units=U, output_dim=O)

    out = pl.pallas_call(
        kernel,
        out_shape=jax.ShapeDtypeStruct((batch_shards, T, Bs * N, O),
                                       jnp.float32),
        grid=(batch_shards, T),
        in_specs=in_specs,
        out_specs=pl.BlockSpec((1, 1, Bs * N, O),
                               lambda s, t: (s, t, 0, 0)),
        scratch_shapes=[
            pltpu.VMEM((L * Bs, N, U), jnp.float32),   # hidden state (resident)
            pltpu.VMEM((Bs, N, O), jnp.float32),       # autoregressive input
        ],
        compiler_params=pltpu.CompilerParams(
            dimension_semantics=("parallel", "arbitrary"),
            vmem_limit_bytes=64 * 1024 * 1024),
    )(*inputs)

    # (shards, T, Bs*N, O) -> (B, T, N, O)
    y = out.reshape(batch_shards, T, Bs, N, O)
    return jnp.transpose(y, (0, 2, 1, 3, 4)).reshape(B, T, N, O)


# -----------------------------------------------------------------------------
# Pure-JAX reference (literal transcription of the PyTorch math) for checking
# -----------------------------------------------------------------------------
def _ref_gconv(x_in, hx, supports, w, b, K):
    B, N, _ = x_in.shape
    x = jnp.concatenate([x_in, hx], axis=-1)
    C = x.shape[-1]
    x0 = jnp.transpose(x, (1, 2, 0)).reshape(N, C * B)
    feats = [x0]
    if K > 0:
        for s in range(supports.shape[0]):
            sup = supports[s]
            x1 = sup @ x0
            feats.append(x1)
            for _k in range(2, K + 1):
                x2 = 2.0 * (sup @ x1) - x0
                feats.append(x2)
                x1, x0 = x2, x1
    M = len(feats)
    xs = jnp.stack(feats, 0).reshape(M, N, C, B)
    xs = jnp.transpose(xs, (3, 1, 2, 0)).reshape(B * N, C * M)
    w_flat = jnp.transpose(w, (1, 0, 2)).reshape(C * M, w.shape[-1])
    out = xs @ w_flat + b.reshape(1, -1)
    return out.reshape(B, N, w.shape[-1])


def _ref_cell(x_in, hx, supports, w_ru, b_ru, w_c, b_c, K, U):
    ru = jax.nn.sigmoid(_ref_gconv(x_in, hx, supports, w_ru, b_ru, K))
    r, u = ru[..., :U], ru[..., U:]
    c = jnp.tanh(_ref_gconv(x_in, r * hx, supports, w_c, b_c, K))
    return u * hx + (1.0 - u) * c


def _ref_forward(x, params, supports, *, num_nodes, rnn_units, output_dim,
                 horizon, max_diffusion_step, num_rnn_layers):
    B = x.shape[0]
    N, U, O = num_nodes, rnn_units, output_dim
    hidden = [x[:, l, :, :] for l in range(num_rnn_layers)]
    dec_in = jnp.zeros((B, N, O), jnp.float32)
    outs = []
    for _t in range(horizon):
        out = dec_in
        new_hidden = []
        for l in range(num_rnn_layers):
            h = _ref_cell(out, hidden[l], supports,
                          params["w_ru"][l], params["b_ru"][l],
                          params["w_c"][l], params["b_c"][l],
                          max_diffusion_step, U)
            new_hidden.append(h)
            out = h
        hidden = new_hidden
        dec_in = (out.reshape(B * N, U) @ params["w_proj"]
                  + params["b_proj"]).reshape(B, N, O)
        outs.append(dec_in)
    y = jnp.stack(outs, 0)
    return jnp.transpose(y, (1, 0, 2, 3))


# -----------------------------------------------------------------------------
# Deterministic parameter / support construction
# -----------------------------------------------------------------------------
def _xavier_normal(key, shape, fan_in, fan_out):
    std = float(np.sqrt(2.0 / (fan_in + fan_out)))
    return std * jax.random.normal(key, shape, dtype=jnp.float32)


def init_params(key, *, num_rnn_layers, rnn_units, output_dim,
                num_supports, max_diffusion_step):
    M = num_supports * max_diffusion_step + 1
    U, O = rnn_units, output_dim
    w_ru, b_ru, w_c, b_c = [], [], [], []
    for l in range(num_rnn_layers):
        d_in = O if l == 0 else U        # layer-0 input is the projection output
        C = d_in + U
        key, k1, k2 = jax.random.split(key, 3)
        w_ru.append(_xavier_normal(k1, (M, C, 2 * U), C * M, 2 * U))
        b_ru.append(jnp.full((1, 2 * U), 1.0, jnp.float32))   # bias_start=1.0
        w_c.append(_xavier_normal(k2, (M, C, U), C * M, U))
        b_c.append(jnp.zeros((1, U), jnp.float32))            # bias_start=0.0
    key, kp = jax.random.split(key)
    w_proj = _xavier_normal(kp, (U, O), U, O)
    b_proj = jnp.zeros((1, O), jnp.float32)
    return {"w_ru": w_ru, "b_ru": b_ru, "w_c": w_c, "b_c": b_c,
            "w_proj": w_proj, "b_proj": b_proj}


def build_supports(adj):
    """filter_type='dual_random_walk': [rw(A).T, rw(A.T).T] as dense matrices."""
    def rw(a):
        d = a.sum(axis=1)
        d_inv = np.where(d > 0, 1.0 / d, 0.0)
        return d_inv[:, None] * a
    s = np.stack([rw(adj).T, rw(adj.T).T]).astype(np.float32)
    return jnp.asarray(s)


# -----------------------------------------------------------------------------
if __name__ == "__main__":
    # small, module-consistent shapes
    B, L, N, U, O, T, K = 4, 2, 16, 32, 2, 4, 2   # batch, layers, nodes, units,
                                                  # output_dim, horizon, diffusion
    SHARDS = 2                                    # leading "parallel" grid axis
    key = jax.random.PRNGKey(0)
    k_adj, k_x, k_p = jax.random.split(key, 3)

    adj = np.asarray(jax.random.uniform(k_adj, (N, N), dtype=jnp.float32))
    adj = adj * (adj > 0.3)
    np.fill_diagonal(adj, 1.0)
    supports = build_supports(adj)

    params = init_params(k_p, num_rnn_layers=L, rnn_units=U, output_dim=O,
                         num_supports=int(supports.shape[0]),
                         max_diffusion_step=K)

    # forward input: [B, L, N, F] with F = rnn_units (encoder hidden state)
    x = jax.random.normal(k_x, (B, L, N, U), dtype=jnp.float32)

    fwd = jax.jit(functools.partial(
        dcrnn_decoder_forward, num_nodes=N, rnn_units=U, output_dim=O,
        horizon=T, max_diffusion_step=K, num_rnn_layers=L,
        batch_shards=SHARDS))
    y = jax.block_until_ready(fwd(x, params, supports))
    assert y.shape == (B, T, N, O), y.shape
    assert y.dtype == jnp.float32

    y_ref = jax.block_until_ready(_ref_forward(
        x, params, supports, num_nodes=N, rnn_units=U, output_dim=O,
        horizon=T, max_diffusion_step=K, num_rnn_layers=L))
    np.testing.assert_allclose(np.asarray(y), np.asarray(y_ref),
                               rtol=1e-3, atol=2e-4)

    # TODO(synk): curriculum-learning sampling (labels/batches_seen branch) is
    # training-only randomness and is intentionally not part of the kernel.
    print("KERNEL_OK")
</pallas_src>

<mosaic_0001>
module attributes {stable_mosaic.version = 11 : i64} {
  func.func @kernel(%arg0: i32, %arg1: i32, %arg2: memref<1x4x16x32xf32, #tpu.memory_space<vmem>>, %arg3: memref<2x16x16xf32, #tpu.memory_space<vmem>>, %arg4: memref<10x32xf32, #tpu.memory_space<vmem>>, %arg5: memref<10x32xf32, #tpu.memory_space<vmem>>, %arg6: memref<10x32xf32, #tpu.memory_space<vmem>>, %arg7: memref<160x32xf32, #tpu.memory_space<vmem>>, %arg8: memref<160x32xf32, #tpu.memory_space<vmem>>, %arg9: memref<160x32xf32, #tpu.memory_space<vmem>>, %arg10: memref<1x32xf32, #tpu.memory_space<vmem>>, %arg11: memref<1x32xf32, #tpu.memory_space<vmem>>, %arg12: memref<1x32xf32, #tpu.memory_space<vmem>>, %arg13: memref<160x32xf32, #tpu.memory_space<vmem>>, %arg14: memref<160x32xf32, #tpu.memory_space<vmem>>, %arg15: memref<160x32xf32, #tpu.memory_space<vmem>>, %arg16: memref<160x32xf32, #tpu.memory_space<vmem>>, %arg17: memref<160x32xf32, #tpu.memory_space<vmem>>, %arg18: memref<160x32xf32, #tpu.memory_space<vmem>>, %arg19: memref<1x32xf32, #tpu.memory_space<vmem>>, %arg20: memref<1x32xf32, #tpu.memory_space<vmem>>, %arg21: memref<1x32xf32, #tpu.memory_space<vmem>>, %arg22: memref<32x2xf32, #tpu.memory_space<vmem>>, %arg23: memref<1x2xf32, #tpu.memory_space<vmem>>, %arg24: memref<1x1x32x2xf32, #tpu.memory_space<vmem>>, %arg25: memref<4x16x32xf32, #tpu.memory_space<vmem>>, %arg26: memref<2x16x2xf32, #tpu.memory_space<vmem>>) attributes {dimension_semantics = [#tpu.dimension_semantics<parallel>, #tpu.dimension_semantics<arbitrary>], iteration_bounds = array<i64: 2, 4>, scalar_prefetch = 0 : i64, scratch_operands = 2 : i64, tpu.core_type = #tpu.core_type<tc>, window_params = [{transform_indices = @transform_0, window_bounds = array<i64: 1, 4, 16, 32>}, {pipeline_mode = #tpu.pipeline_mode<synchronous>, transform_indices = @transform_1, window_bounds = array<i64: 2, 16, 16>}, {pipeline_mode = #tpu.pipeline_mode<synchronous>, transform_indices = @transform_2, window_bounds = array<i64: 10, 32>}, {pipeline_mode = #tpu.pipeline_mode<synchronous>, transform_indices = @transform_3, window_bounds = array<i64: 10, 32>}, {pipeline_mode = #tpu.pipeline_mode<synchronous>, transform_indices = @transform_4, window_bounds = array<i64: 10, 32>}, {pipeline_mode = #tpu.pipeline_mode<synchronous>, transform_indices = @transform_5, window_bounds = array<i64: 160, 32>}, {pipeline_mode = #tpu.pipeline_mode<synchronous>, transform_indices = @transform_6, window_bounds = array<i64: 160, 32>}, {pipeline_mode = #tpu.pipeline_mode<synchronous>, transform_indices = @transform_7, window_bounds = array<i64: 160, 32>}, {pipeline_mode = #tpu.pipeline_mode<synchronous>, transform_indices = @transform_8, window_bounds = array<i64: 1, 32>}, {pipeline_mode = #tpu.pipeline_mode<synchronous>, transform_indices = @transform_9, window_bounds = array<i64: 1, 32>}, {pipeline_mode = #tpu.pipeline_mode<synchronous>, transform_indices = @transform_10, window_bounds = array<i64: 1, 32>}, {pipeline_mode = #tpu.pipeline_mode<synchronous>, transform_indices = @transform_11, window_bounds = array<i64: 160, 32>}, {pipeline_mode = #tpu.pipeline_mode<synchronous>, transform_indices = @transform_12, window_bounds = array<i64: 160, 32>}, {pipeline_mode = #tpu.pipeline_mode<synchronous>, transform_indices = @transform_13, window_bounds = array<i64: 160, 32>}, {pipeline_mode = #tpu.pipeline_mode<synchronous>, transform_indices = @transform_14, window_bounds = array<i64: 160, 32>}, {pipeline_mode = #tpu.pipeline_mode<synchronous>, transform_indices = @transform_15, window_bounds = array<i64: 160, 32>}, {pipeline_mode = #tpu.pipeline_mode<synchronous>, transform_indices = @transform_16, window_bounds = array<i64: 160, 32>}, {pipeline_mode = #tpu.pipeline_mode<synchronous>, transform_indices = @transform_17, window_bounds = array<i64: 1, 32>}, {pipeline_mode = #tpu.pipeline_mode<synchronous>, transform_indices = @transform_18, window_bounds = array<i64: 1, 32>}, {pipeline_mode = #tpu.pipeline_mode<synchronous>, transform_indices = @transform_19, window_bounds = array<i64: 1, 32>}, {pipeline_mode = #tpu.pipeline_mode<synchronous>, transform_indices = @transform_20, window_bounds = array<i64: 32, 2>}, {pipeline_mode = #tpu.pipeline_mode<synchronous>, transform_indices = @transform_21, window_bounds = array<i64: 1, 2>}, {transform_indices = @transform_22, window_bounds = array<i64: 1, 1, 32, 2>}]} {
    %c0_i32 = arith.constant 0 : i32
    %0 = arith.cmpi eq, %arg1, %c0_i32 : i32
    %1 = arith.extui %0 : i1 to i32
    %c0_i32_0 = arith.constant 0 : i32
    %2 = arith.cmpi ne, %1, %c0_i32_0 : i32
    scf.if %2 {
      %c0_159 = arith.constant 0 : index
      %c0_160 = arith.constant 0 : index
      %c0_161 = arith.constant 0 : index
      %c0_162 = arith.constant 0 : index
      %335 = vector.load %arg2[%c0_159, %c0_160, %c0_161, %c0_162] : memref<1x4x16x32xf32, #tpu.memory_space<vmem>>, vector<1x4x16x32xf32>
      %336 = vector.shape_cast %335 : vector<1x4x16x32xf32> to vector<4x16x32xf32>
      %c0_163 = arith.constant 0 : index
      %c0_164 = arith.constant 0 : index
      %c0_165 = arith.constant 0 : index
      %337 = vector.load %arg25[%c0_163, %c0_164, %c0_165] : memref<4x16x32xf32, #tpu.memory_space<vmem>>, vector<4x16x32xf32>
      tpu.vector_store %arg25[%c0_163, %c0_164, %c0_165], %336 {strides = array<i32>} : memref<4x16x32xf32, #tpu.memory_space<vmem>>, vector<4x16x32xf32>,
      %cst_166 = arith.constant 0.000000e+00 : f32
      %338 = vector.broadcast %cst_166 : f32 to vector<2x16x2xf32>
      %c0_167 = arith.constant 0 : index
      %c0_168 = arith.constant 0 : index
      %c0_169 = arith.constant 0 : index
      %339 = vector.load %arg26[%c0_167, %c0_168, %c0_169] : memref<2x16x2xf32, #tpu.memory_space<vmem>>, vector<2x16x2xf32>
      tpu.vector_store %arg26[%c0_167, %c0_168, %c0_169], %338 {strides = array<i32>} : memref<2x16x2xf32, #tpu.memory_space<vmem>>, vector<2x16x2xf32>,
    } else {
    }
    %c0 = arith.constant 0 : index
    %c0_1 = arith.constant 0 : index
    %c0_2 = arith.constant 0 : index
    %3 = vector.load %arg3[%c0, %c0_1, %c0_2] : memref<2x16x16xf32, #tpu.memory_space<vmem>>, vector<1x16x16xf32>
    %4 = vector.shape_cast %3 : vector<1x16x16xf32> to vector<16x16xf32>
    %c1 = arith.constant 1 : index
    %c0_3 = arith.constant 0 : index
    %c0_4 = arith.constant 0 : index
    %5 = vector.load %arg3[%c1, %c0_3, %c0_4] : memref<2x16x16xf32, #tpu.memory_space<vmem>>, vector<1x16x16xf32>
    %6 = vector.shape_cast %5 : vector<1x16x16xf32> to vector<16x16xf32>
    %c0_5 = arith.constant 0 : index
    %c0_6 = arith.constant 0 : index
    %c0_7 = arith.constant 0 : index
    %7 = vector.load %arg26[%c0_5, %c0_6, %c0_7] : memref<2x16x2xf32, #tpu.memory_space<vmem>>, vector<1x16x2xf32>
    %8 = vector.shape_cast %7 : vector<1x16x2xf32> to vector<16x2xf32>
    %c1_8 = arith.constant 1 : index
    %c0_9 = arith.constant 0 : index
    %c0_10 = arith.constant 0 : index
    %9 = vector.load %arg26[%c1_8, %c0_9, %c0_10] : memref<2x16x2xf32, #tpu.memory_space<vmem>>, vector<1x16x2xf32>
    %10 = vector.shape_cast %9 : vector<1x16x2xf32> to vector<16x2xf32>
    %c0_11 = arith.constant 0 : index
    %c0_12 = arith.constant 0 : index
    %11 = vector.load %arg4[%c0_11, %c0_12] : memref<10x32xf32, #tpu.memory_space<vmem>>, vector<10x32xf32>
    %c0_13 = arith.constant 0 : index
    %c0_14 = arith.constant 0 : index
    %12 = vector.load %arg5[%c0_13, %c0_14] : memref<10x32xf32, #tpu.memory_space<vmem>>, vector<10x32xf32>
    %c0_15 = arith.constant 0 : index
    %c0_16 = arith.constant 0 : index
    %13 = vector.load %arg6[%c0_15, %c0_16] : memref<10x32xf32, #tpu.memory_space<vmem>>, vector<10x32xf32>
    %c0_17 = arith.constant 0 : index
    %c0_18 = arith.constant 0 : index
    %14 = vector.load %arg7[%c0_17, %c0_18] : memref<160x32xf32, #tpu.memory_space<vmem>>, vector<160x32xf32>
    %c0_19 = arith.constant 0 : index
    %c0_20 = arith.constant 0 : index
    %15 = vector.load %arg8[%c0_19, %c0_20] : memref<160x32xf32, #tpu.memory_space<vmem>>, vector<160x32xf32>
    %c0_21 = arith.constant 0 : index
    %c0_22 = arith.constant 0 : index
    %16 = vector.load %arg9[%c0_21, %c0_22] : memref<160x32xf32, #tpu.memory_space<vmem>>, vector<160x32xf32>
    %c0_23 = arith.constant 0 : index
    %c0_24 = arith.constant 0 : index
    %17 = vector.load %arg10[%c0_23, %c0_24] : memref<1x32xf32, #tpu.memory_space<vmem>>, vector<1x32xf32>
    %c0_25 = arith.constant 0 : index
    %c0_26 = arith.constant 0 : index
    %18 = vector.load %arg11[%c0_25, %c0_26] : memref<1x32xf32, #tpu.memory_space<vmem>>, vector<1x32xf32>
    %c0_27 = arith.constant 0 : index
    %c0_28 = arith.constant 0 : index
    %19 = vector.load %arg12[%c0_27, %c0_28] : memref<1x32xf32, #tpu.memory_space<vmem>>, vector<1x32xf32>
    %c0_29 = arith.constant 0 : index
    %c0_30 = arith.constant 0 : index
    %c0_31 = arith.constant 0 : index
    %20 = vector.load %arg25[%c0_29, %c0_30, %c0_31] : memref<4x16x32xf32, #tpu.memory_space<vmem>>, vector<1x16x32xf32>
    %21 = vector.shape_cast %20 : vector<1x16x32xf32> to vector<16x32xf32>
    %c1_32 = arith.constant 1 : index
    %c0_33 = arith.constant 0 : index
    %c0_34 = arith.constant 0 : index
    %22 = vector.load %arg25[%c1_32, %c0_33, %c0_34] : memref<4x16x32xf32, #tpu.memory_space<vmem>>, vector<1x16x32xf32>
    %23 = vector.shape_cast %22 : vector<1x16x32xf32> to vector<16x32xf32>
    %24 = tpu.concatenate %8, %10 in 1 : vector<16x2xf32>, vector<16x2xf32> -> vector<16x4xf32>
    %cst = arith.constant dense<0.000000e+00> : vector<16x4xf32>
    %25 = tpu.matmul %4, %24, %cst {dimension_numbers = #tpu.dot_dimension_numbers<[1], [0], [0], [1], [0, 0, 1, 1], [], []>} : vector<16x16xf32>, vector<16x4xf32>, vector<16x4xf32> -> vector<16x4xf32>
    %cst_35 = arith.constant dense<0.000000e+00> : vector<16x4xf32>
    %26 = tpu.matmul %4, %25, %cst_35 {dimension_numbers = #tpu.dot_dimension_numbers<[1], [0], [0], [1], [0, 0, 1, 1], [], []>} : vector<16x16xf32>, vector<16x4xf32>, vector<16x4xf32> -> vector<16x4xf32>
    %cst_36 = arith.constant 2.000000e+00 : f32
    %27 = vector.broadcast %cst_36 : f32 to vector<16x4xf32>
    %28 = arith.mulf %27, %26 : vector<16x4xf32>
    %29 = arith.subf %28, %24 : vector<16x4xf32>
    %cst_37 = arith.constant dense<0.000000e+00> : vector<16x4xf32>
    %30 = tpu.matmul %6, %25, %cst_37 {dimension_numbers = #tpu.dot_dimension_numbers<[1], [0], [0], [1], [0, 0, 1, 1], [], []>} : vector<16x16xf32>, vector<16x4xf32>, vector<16x4xf32> -> vector<16x4xf32>
    %cst_38 = arith.constant dense<0.000000e+00> : vector<16x4xf32>
    %31 = tpu.matmul %6, %30, %cst_38 {dimension_numbers = #tpu.dot_dimension_numbers<[1], [0], [0], [1], [0, 0, 1, 1], [], []>} : vector<16x16xf32>, vector<16x4xf32>, vector<16x4xf32> -> vector<16x4xf32>
    %cst_39 = arith.constant 2.000000e+00 : f32
    %32 = vector.broadcast %cst_39 : f32 to vector<16x4xf32>
    %33 = arith.mulf %32, %31 : vector<16x4xf32>
    %34 = arith.subf %33, %25 : vector<16x4xf32>
    %35 = tpu.concatenate %21, %23 in 1 : vector<16x32xf32>, vector<16x32xf32> -> vector<16x64xf32>
    %cst_40 = arith.constant dense<0.000000e+00> : vector<16x64xf32>
    %36 = tpu.matmul %4, %35, %cst_40 {dimension_numbers = #tpu.dot_dimension_numbers<[1], [0], [0], [1], [0, 0, 1, 1], [], []>} : vector<16x16xf32>, vector<16x64xf32>, vector<16x64xf32> -> vector<16x64xf32>
    %cst_41 = arith.constant dense<0.000000e+00> : vector<16x64xf32>
    %37 = tpu.matmul %4, %36, %cst_41 {dimension_numbers = #tpu.dot_dimension_numbers<[1], [0], [0], [1], [0, 0, 1, 1], [], []>} : vector<16x16xf32>, vector<16x64xf32>, vector<16x64xf32> -> vector<16x64xf32>
    %cst_42 = arith.constant 2.000000e+00 : f32
    %38 = vector.broadcast %cst_42 : f32 to vector<16x64xf32>
    %39 = arith.mulf %38, %37 : vector<16x64xf32>
    %40 = arith.subf %39, %35 : vector<16x64xf32>
    %cst_43 = arith.constant dense<0.000000e+00> : vector<16x64xf32>
    %41 = tpu.matmul %6, %36, %cst_43 {dimension_numbers = #tpu.dot_dimension_numbers<[1], [0], [0], [1], [0, 0, 1, 1], [], []>} : vector<16x16xf32>, vector<16x64xf32>, vector<16x64xf32> -> vector<16x64xf32>
    %cst_44 = arith.constant dense<0.000000e+00> : vector<16x64xf32>
    %42 = tpu.matmul %6, %41, %cst_44 {dimension_numbers = #tpu.dot_dimension_numbers<[1], [0], [0], [1], [0, 0, 1, 1], [], []>} : vector<16x16xf32>, vector<16x64xf32>, vector<16x64xf32> -> vector<16x64xf32>
    %cst_45 = arith.constant 2.000000e+00 : f32
    %43 = vector.broadcast %cst_45 : f32 to vector<16x64xf32>
    %44 = arith.mulf %43, %42 : vector<16x64xf32>
    %45 = arith.subf %44, %36 : vector<16x64xf32>
    %46 = vector.extract_strided_slice %24 {offsets = [0, 0], sizes = [16, 2], strides = [1, 1]} : vector<16x4xf32> to vector<16x2xf32>
    %47 = vector.extract_strided_slice %25 {offsets = [0, 0], sizes = [16, 2], strides = [1, 1]} : vector<16x4xf32> to vector<16x2xf32>
    %48 = vector.extract_strided_slice %29 {offsets = [0, 0], sizes = [16, 2], strides = [1, 1]} : vector<16x4xf32> to vector<16x2xf32>
    %49 = vector.extract_strided_slice %30 {offsets = [0, 0], sizes = [16, 2], strides = [1, 1]} : vector<16x4xf32> to vector<16x2xf32>
    %50 = vector.extract_strided_slice %34 {offsets = [0, 0], sizes = [16, 2], strides = [1, 1]} : vector<16x4xf32> to vector<16x2xf32>
    %51 = tpu.concatenate %46, %47, %48, %49, %50 in 1 : vector<16x2xf32>, vector<16x2xf32>, vector<16x2xf32>, vector<16x2xf32>, vector<16x2xf32> -> vector<16x10xf32>
    %52 = vector.extract_strided_slice %24 {offsets = [0, 2], sizes = [16, 2], strides = [1, 1]} : vector<16x4xf32> to vector<16x2xf32>
    %53 = vector.extract_strided_slice %25 {offsets = [0, 2], sizes = [16, 2], strides = [1, 1]} : vector<16x4xf32> to vector<16x2xf32>
    %54 = vector.extract_strided_slice %29 {offsets = [0, 2], sizes = [16, 2], strides = [1, 1]} : vector<16x4xf32> to vector<16x2xf32>
    %55 = vector.extract_strided_slice %30 {offsets = [0, 2], sizes = [16, 2], strides = [1, 1]} : vector<16x4xf32> to vector<16x2xf32>
    %56 = vector.extract_strided_slice %34 {offsets = [0, 2], sizes = [16, 2], strides = [1, 1]} : vector<16x4xf32> to vector<16x2xf32>
    %57 = tpu.concatenate %52, %53, %54, %55, %56 in 1 : vector<16x2xf32>, vector<16x2xf32>, vector<16x2xf32>, vector<16x2xf32>, vector<16x2xf32> -> vector<16x10xf32>
    %58 = vector.extract_strided_slice %35 {offsets = [0, 0], sizes = [16, 32], strides = [1, 1]} : vector<16x64xf32> to vector<16x32xf32>
    %59 = vector.extract_strided_slice %36 {offsets = [0, 0], sizes = [16, 32], strides = [1, 1]} : vector<16x64xf32> to vector<16x32xf32>
    %60 = vector.extract_strided_slice %40 {offsets = [0, 0], sizes = [16, 32], strides = [1, 1]} : vector<16x64xf32> to vector<16x32xf32>
    %61 = vector.extract_strided_slice %41 {offsets = [0, 0], sizes = [16, 32], strides = [1, 1]} : vector<16x64xf32> to vector<16x32xf32>
    %62 = vector.extract_strided_slice %45 {offsets = [0, 0], sizes = [16, 32], strides = [1, 1]} : vector<16x64xf32> to vector<16x32xf32>
    %63 = tpu.concatenate %58, %59, %60, %61, %62 in 1 : vector<16x32xf32>, vector<16x32xf32>, vector<16x32xf32>, vector<16x32xf32>, vector<16x32xf32> -> vector<16x160xf32>
    %64 = vector.extract_strided_slice %35 {offsets = [0, 32], sizes = [16, 32], strides = [1, 1]} : vector<16x64xf32> to vector<16x32xf32>
    %65 = vector.extract_strided_slice %36 {offsets = [0, 32], sizes = [16, 32], strides = [1, 1]} : vector<16x64xf32> to vector<16x32xf32>
    %66 = vector.extract_strided_slice %40 {offsets = [0, 32], sizes = [16, 32], strides = [1, 1]} : vector<16x64xf32> to vector<16x32xf32>
    %67 = vector.extract_strided_slice %41 {offsets = [0, 32], sizes = [16, 32], strides = [1, 1]} : vector<16x64xf32> to vector<16x32xf32>
    %68 = vector.extract_strided_slice %45 {offsets = [0, 32], sizes = [16, 32], strides = [1, 1]} : vector<16x64xf32> to vector<16x32xf32>
    %69 = tpu.concatenate %64, %65, %66, %67, %68 in 1 : vector<16x32xf32>, vector<16x32xf32>, vector<16x32xf32>, vector<16x32xf32>, vector<16x32xf32> -> vector<16x160xf32>
    %cst_46 = arith.constant dense<0.000000e+00> : vector<16x32xf32>
    %70 = tpu.matmul %51, %11, %cst_46 {dimension_numbers = #tpu.dot_dimension_numbers<[1], [0], [0], [1], [0, 0, 1, 1], [], []>} : vector<16x10xf32>, vector<10x32xf32>, vector<16x32xf32> -> vector<16x32xf32>
    %cst_47 = arith.constant dense<0.000000e+00> : vector<16x32xf32>
    %71 = tpu.matmul %63, %14, %cst_47 {dimension_numbers = #tpu.dot_dimension_numbers<[1], [0], [0], [1], [0, 0, 1, 1], [], []>} : vector<16x160xf32>, vector<160x32xf32>, vector<16x32xf32> -> vector<16x32xf32>
    %72 = arith.addf %70, %71 : vector<16x32xf32>
    %73 = vector.broadcast %17 : vector<1x32xf32> to vector<16x32xf32>
    %74 = arith.addf %72, %73 : vector<16x32xf32>
    %75 = arith.negf %74 : vector<16x32xf32>
    %76 = math.exp %75 : vector<16x32xf32>
    %cst_48 = arith.constant 1.000000e+00 : f32
    %77 = vector.broadcast %cst_48 : f32 to vector<16x32xf32>
    %78 = arith.addf %77, %76 : vector<16x32xf32>
    %79 = arith.divf %77, %78 : vector<16x32xf32>
    %cst_49 = arith.constant dense<0.000000e+00> : vector<16x32xf32>
    %80 = tpu.matmul %51, %12, %cst_49 {dimension_numbers = #tpu.dot_dimension_numbers<[1], [0], [0], [1], [0, 0, 1, 1], [], []>} : vector<16x10xf32>, vector<10x32xf32>, vector<16x32xf32> -> vector<16x32xf32>
    %cst_50 = arith.constant dense<0.000000e+00> : vector<16x32xf32>
    %81 = tpu.matmul %63, %15, %cst_50 {dimension_numbers = #tpu.dot_dimension_numbers<[1], [0], [0], [1], [0, 0, 1, 1], [], []>} : vector<16x160xf32>, vector<160x32xf32>, vector<16x32xf32> -> vector<16x32xf32>
    %82 = arith.addf %80, %81 : vector<16x32xf32>
    %83 = vector.broadcast %18 : vector<1x32xf32> to vector<16x32xf32>
    %84 = arith.addf %82, %83 : vector<16x32xf32>
    %85 = arith.negf %84 : vector<16x32xf32>
    %86 = math.exp %85 : vector<16x32xf32>
    %cst_51 = arith.constant 1.000000e+00 : f32
    %87 = vector.broadcast %cst_51 : f32 to vector<16x32xf32>
    %88 = arith.addf %87, %86 : vector<16x32xf32>
    %89 = arith.divf %87, %88 : vector<16x32xf32>
    %cst_52 = arith.constant dense<0.000000e+00> : vector<16x32xf32>
    %90 = tpu.matmul %57, %11, %cst_52 {dimension_numbers = #tpu.dot_dimension_numbers<[1], [0], [0], [1], [0, 0, 1, 1], [], []>} : vector<16x10xf32>, vector<10x32xf32>, vector<16x32xf32> -> vector<16x32xf32>
    %cst_53 = arith.constant dense<0.000000e+00> : vector<16x32xf32>
    %91 = tpu.matmul %69, %14, %cst_53 {dimension_numbers = #tpu.dot_dimension_numbers<[1], [0], [0], [1], [0, 0, 1, 1], [], []>} : vector<16x160xf32>, vector<160x32xf32>, vector<16x32xf32> -> vector<16x32xf32>
    %92 = arith.addf %90, %91 : vector<16x32xf32>
    %93 = vector.broadcast %17 : vector<1x32xf32> to vector<16x32xf32>
    %94 = arith.addf %92, %93 : vector<16x32xf32>
    %95 = arith.negf %94 : vector<16x32xf32>
    %96 = math.exp %95 : vector<16x32xf32>
    %cst_54 = arith.constant 1.000000e+00 : f32
    %97 = vector.broadcast %cst_54 : f32 to vector<16x32xf32>
    %98 = arith.addf %97, %96 : vector<16x32xf32>
    %99 = arith.divf %97, %98 : vector<16x32xf32>
    %cst_55 = arith.constant dense<0.000000e+00> : vector<16x32xf32>
    %100 = tpu.matmul %57, %12, %cst_55 {dimension_numbers = #tpu.dot_dimension_numbers<[1], [0], [0], [1], [0, 0, 1, 1], [], []>} : vector<16x10xf32>, vector<10x32xf32>, vector<16x32xf32> -> vector<16x32xf32>
    %cst_56 = arith.constant dense<0.000000e+00> : vector<16x32xf32>
    %101 = tpu.matmul %69, %15, %cst_56 {dimension_numbers = #tpu.dot_dimension_numbers<[1], [0], [0], [1], [0, 0, 1, 1], [], []>} : vector<16x160xf32>, vector<160x32xf32>, vector<16x32xf32> -> vector<16x32xf32>
    %102 = arith.addf %100, %101 : vector<16x32xf32>
    %103 = vector.broadcast %18 : vector<1x32xf32> to vector<16x32xf32>
    %104 = arith.addf %102, %103 : vector<16x32xf32>
    %105 = arith.negf %104 : vector<16x32xf32>
    %106 = math.exp %105 : vector<16x32xf32>
    %cst_57 = arith.constant 1.000000e+00 : f32
    %107 = vector.broadcast %cst_57 : f32 to vector<16x32xf32>
    %108 = arith.addf %107, %106 : vector<16x32xf32>
    %109 = arith.divf %107, %108 : vector<16x32xf32>
    %110 = arith.mulf %79, %21 : vector<16x32xf32>
    %111 = arith.mulf %99, %23 : vector<16x32xf32>
    %112 = tpu.concatenate %110, %111 in 1 : vector<16x32xf32>, vector<16x32xf32> -> vector<16x64xf32>
    %cst_58 = arith.constant dense<0.000000e+00> : vector<16x64xf32>
    %113 = tpu.matmul %4, %112, %cst_58 {dimension_numbers = #tpu.dot_dimension_numbers<[1], [0], [0], [1], [0, 0, 1, 1], [], []>} : vector<16x16xf32>, vector<16x64xf32>, vector<16x64xf32> -> vector<16x64xf32>
    %cst_59 = arith.constant dense<0.000000e+00> : vector<16x64xf32>
    %114 = tpu.matmul %4, %113, %cst_59 {dimension_numbers = #tpu.dot_dimension_numbers<[1], [0], [0], [1], [0, 0, 1, 1], [], []>} : vector<16x16xf32>, vector<16x64xf32>, vector<16x64xf32> -> vector<16x64xf32>
    %cst_60 = arith.constant 2.000000e+00 : f32
    %115 = vector.broadcast %cst_60 : f32 to vector<16x64xf32>
    %116 = arith.mulf %115, %114 : vector<16x64xf32>
    %117 = arith.subf %116, %112 : vector<16x64xf32>
    %cst_61 = arith.constant dense<0.000000e+00> : vector<16x64xf32>
    %118 = tpu.matmul %6, %113, %cst_61 {dimension_numbers = #tpu.dot_dimension_numbers<[1], [0], [0], [1], [0, 0, 1, 1], [], []>} : vector<16x16xf32>, vector<16x64xf32>, vector<16x64xf32> -> vector<16x64xf32>
    %cst_62 = arith.constant dense<0.000000e+00> : vector<16x64xf32>
    %119 = tpu.matmul %6, %118, %cst_62 {dimension_numbers = #tpu.dot_dimension_numbers<[1], [0], [0], [1], [0, 0, 1, 1], [], []>} : vector<16x16xf32>, vector<16x64xf32>, vector<16x64xf32> -> vector<16x64xf32>
    %cst_63 = arith.constant 2.000000e+00 : f32
    %120 = vector.broadcast %cst_63 : f32 to vector<16x64xf32>
    %121 = arith.mulf %120, %119 : vector<16x64xf32>
    %122 = arith.subf %121, %113 : vector<16x64xf32>
    %123 = vector.extract_strided_slice %112 {offsets = [0, 0], sizes = [16, 32], strides = [1, 1]} : vector<16x64xf32> to vector<16x32xf32>
    %124 = vector.extract_strided_slice %113 {offsets = [0, 0], sizes = [16, 32], strides = [1, 1]} : vector<16x64xf32> to vector<16x32xf32>
    %125 = vector.extract_strided_slice %117 {offsets = [0, 0], sizes = [16, 32], strides = [1, 1]} : vector<16x64xf32> to vector<16x32xf32>
    %126 = vector.extract_strided_slice %118 {offsets = [0, 0], sizes = [16, 32], strides = [1, 1]} : vector<16x64xf32> to vector<16x32xf32>
    %127 = vector.extract_strided_slice %122 {offsets = [0, 0], sizes = [16, 32], strides = [1, 1]} : vector<16x64xf32> to vector<16x32xf32>
    %128 = tpu.concatenate %123, %124, %125, %126, %127 in 1 : vector<16x32xf32>, vector<16x32xf32>, vector<16x32xf32>, vector<16x32xf32>, vector<16x32xf32> -> vector<16x160xf32>
    %cst_64 = arith.constant dense<0.000000e+00> : vector<16x32xf32>
    %129 = tpu.matmul %51, %13, %cst_64 {dimension_numbers = #tpu.dot_dimension_numbers<[1], [0], [0], [1], [0, 0, 1, 1], [], []>} : vector<16x10xf32>, vector<10x32xf32>, vector<16x32xf32> -> vector<16x32xf32>
    %cst_65 = arith.constant dense<0.000000e+00> : vector<16x32xf32>
    %130 = tpu.matmul %128, %16, %cst_65 {dimension_numbers = #tpu.dot_dimension_numbers<[1], [0], [0], [1], [0, 0, 1, 1], [], []>} : vector<16x160xf32>, vector<160x32xf32>, vector<16x32xf32> -> vector<16x32xf32>
    %131 = arith.addf %129, %130 : vector<16x32xf32>
    %132 = vector.broadcast %19 : vector<1x32xf32> to vector<16x32xf32>
    %133 = arith.addf %131, %132 : vector<16x32xf32>
    %134 = math.tanh %133 : vector<16x32xf32>
    %135 = arith.mulf %89, %21 : vector<16x32xf32>
    %cst_66 = arith.constant 1.000000e+00 : f32
    %136 = vector.broadcast %cst_66 : f32 to vector<16x32xf32>
    %137 = arith.subf %136, %89 : vector<16x32xf32>
    %138 = arith.mulf %137, %134 : vector<16x32xf32>
    %139 = arith.addf %135, %138 : vector<16x32xf32>
    %c0_67 = arith.constant 0 : index
    %c0_68 = arith.constant 0 : index
    %c0_69 = arith.constant 0 : index
    %140 = vector.load %arg25[%c0_67, %c0_68, %c0_69] : memref<4x16x32xf32, #tpu.memory_space<vmem>>, vector<1x16x32xf32>
    %141 = vector.shape_cast %140 : vector<1x16x32xf32> to vector<16x32xf32>
    %142 = vector.shape_cast %139 : vector<16x32xf32> to vector<1x16x32xf32>
    tpu.vector_store %arg25[%c0_67, %c0_68, %c0_69], %142 {strides = array<i32>} : memref<4x16x32xf32, #tpu.memory_space<vmem>>, vector<1x16x32xf32>,
    %143 = vector.extract_strided_slice %112 {offsets = [0, 32], sizes = [16, 32], strides = [1, 1]} : vector<16x64xf32> to vector<16x32xf32>
    %144 = vector.extract_strided_slice %113 {offsets = [0, 32], sizes = [16, 32], strides = [1, 1]} : vector<16x64xf32> to vector<16x32xf32>
    %145 = vector.extract_strided_slice %117 {offsets = [0, 32], sizes = [16, 32], strides = [1, 1]} : vector<16x64xf32> to vector<16x32xf32>
    %146 = vector.extract_strided_slice %118 {offsets = [0, 32], sizes = [16, 32], strides = [1, 1]} : vector<16x64xf32> to vector<16x32xf32>
    %147 = vector.extract_strided_slice %122 {offsets = [0, 32], sizes = [16, 32], strides = [1, 1]} : vector<16x64xf32> to vector<16x32xf32>
    %148 = tpu.concatenate %143, %144, %145, %146, %147 in 1 : vector<16x32xf32>, vector<16x32xf32>, vector<16x32xf32>, vector<16x32xf32>, vector<16x32xf32> -> vector<16x160xf32>
    %cst_70 = arith.constant dense<0.000000e+00> : vector<16x32xf32>
    %149 = tpu.matmul %57, %13, %cst_70 {dimension_numbers = #tpu.dot_dimension_numbers<[1], [0], [0], [1], [0, 0, 1, 1], [], []>} : vector<16x10xf32>, vector<10x32xf32>, vector<16x32xf32> -> vector<16x32xf32>
    %cst_71 = arith.constant dense<0.000000e+00> : vector<16x32xf32>
    %150 = tpu.matmul %148, %16, %cst_71 {dimension_numbers = #tpu.dot_dimension_numbers<[1], [0], [0], [1], [0, 0, 1, 1], [], []>} : vector<16x160xf32>, vector<160x32xf32>, vector<16x32xf32> -> vector<16x32xf32>
    %151 = arith.addf %149, %150 : vector<16x32xf32>
    %152 = vector.broadcast %19 : vector<1x32xf32> to vector<16x32xf32>
    %153 = arith.addf %151, %152 : vector<16x32xf32>
    %154 = math.tanh %153 : vector<16x32xf32>
    %155 = arith.mulf %109, %23 : vector<16x32xf32>
    %cst_72 = arith.constant 1.000000e+00 : f32
    %156 = vector.broadcast %cst_72 : f32 to vector<16x32xf32>
    %157 = arith.subf %156, %109 : vector<16x32xf32>
    %158 = arith.mulf %157, %154 : vector<16x32xf32>
    %159 = arith.addf %155, %158 : vector<16x32xf32>
    %c1_73 = arith.constant 1 : index
    %c0_74 = arith.constant 0 : index
    %c0_75 = arith.constant 0 : index
    %160 = vector.load %arg25[%c1_73, %c0_74, %c0_75] : memref<4x16x32xf32, #tpu.memory_space<vmem>>, vector<1x16x32xf32>
    %161 = vector.shape_cast %160 : vector<1x16x32xf32> to vector<16x32xf32>
    %162 = vector.shape_cast %159 : vector<16x32xf32> to vector<1x16x32xf32>
    tpu.vector_store %arg25[%c1_73, %c0_74, %c0_75], %162 {strides = array<i32>} : memref<4x16x32xf32, #tpu.memory_space<vmem>>, vector<1x16x32xf32>,
    %c0_76 = arith.constant 0 : index
    %c0_77 = arith.constant 0 : index
    %163 = vector.load %arg13[%c0_76, %c0_77] : memref<160x32xf32, #tpu.memory_space<vmem>>, vector<160x32xf32>
    %c0_78 = arith.constant 0 : index
    %c0_79 = arith.constant 0 : index
    %164 = vector.load %arg14[%c0_78, %c0_79] : memref<160x32xf32, #tpu.memory_space<vmem>>, vector<160x32xf32>
    %c0_80 = arith.constant 0 : index
    %c0_81 = arith.constant 0 : index
    %165 = vector.load %arg15[%c0_80, %c0_81] : memref<160x32xf32, #tpu.memory_space<vmem>>, vector<160x32xf32>
    %c0_82 = arith.constant 0 : index
    %c0_83 = arith.constant 0 : index
    %166 = vector.load %arg16[%c0_82, %c0_83] : memref<160x32xf32, #tpu.memory_space<vmem>>, vector<160x32xf32>
    %c0_84 = arith.constant 0 : index
    %c0_85 = arith.constant 0 : index
    %167 = vector.load %arg17[%c0_84, %c0_85] : memref<160x32xf32, #tpu.memory_space<vmem>>, vector<160x32xf32>
    %c0_86 = arith.constant 0 : index
    %c0_87 = arith.constant 0 : index
    %168 = vector.load %arg18[%c0_86, %c0_87] : memref<160x32xf32, #tpu.memory_space<vmem>>, vector<160x32xf32>
    %c0_88 = arith.constant 0 : index
    %c0_89 = arith.constant 0 : index
    %169 = vector.load %arg19[%c0_88, %c0_89] : memref<1x32xf32, #tpu.memory_space<vmem>>, vector<1x32xf32>
    %c0_90 = arith.constant 0 : index
    %c0_91 = arith.constant 0 : index
    %170 = vector.load %arg20[%c0_90, %c0_91] : memref<1x32xf32, #tpu.memory_space<vmem>>, vector<1x32xf32>
    %c0_92 = arith.constant 0 : index
    %c0_93 = arith.constant 0 : index
    %171 = vector.load %arg21[%c0_92, %c0_93] : memref<1x32xf32, #tpu.memory_space<vmem>>, vector<1x32xf32>
    %c2 = arith.constant 2 : index
    %c0_94 = arith.constant 0 : index
    %c0_95 = arith.constant 0 : index
    %172 = vector.load %arg25[%c2, %c0_94, %c0_95] : memref<4x16x32xf32, #tpu.memory_space<vmem>>, vector<1x16x32xf32>
    %173 = vector.shape_cast %172 : vector<1x16x32xf32> to vector<16x32xf32>
    %c3 = arith.constant 3 : index
    %c0_96 = arith.constant 0 : index
    %c0_97 = arith.constant 0 : index
    %174 = vector.load %arg25[%c3, %c0_96, %c0_97] : memref<4x16x32xf32, #tpu.memory_space<vmem>>, vector<1x16x32xf32>
    %175 = vector.shape_cast %174 : vector<1x16x32xf32> to vector<16x32xf32>
    %176 = tpu.concatenate %139, %159 in 1 : vector<16x32xf32>, vector<16x32xf32> -> vector<16x64xf32>
    %cst_98 = arith.constant dense<0.000000e+00> : vector<16x64xf32>
    %177 = tpu.matmul %4, %176, %cst_98 {dimension_numbers = #tpu.dot_dimension_numbers<[1], [0], [0], [1], [0, 0, 1, 1], [], []>} : vector<16x16xf32>, vector<16x64xf32>, vector<16x64xf32> -> vector<16x64xf32>
    %cst_99 = arith.constant dense<0.000000e+00> : vector<16x64xf32>
    %178 = tpu.matmul %4, %177, %cst_99 {dimension_numbers = #tpu.dot_dimension_numbers<[1], [0], [0], [1], [0, 0, 1, 1], [], []>} : vector<16x16xf32>, vector<16x64xf32>, vector<16x64xf32> -> vector<16x64xf32>
    %cst_100 = arith.constant 2.000000e+00 : f32
    %179 = vector.broadcast %cst_100 : f32 to vector<16x64xf32>
    %180 = arith.mulf %179, %178 : vector<16x64xf32>
    %181 = arith.subf %180, %176 : vector<16x64xf32>
    %cst_101 = arith.constant dense<0.000000e+00> : vector<16x64xf32>
    %182 = tpu.matmul %6, %177, %cst_101 {dimension_numbers = #tpu.dot_dimension_numbers<[1], [0], [0], [1], [0, 0, 1, 1], [], []>} : vector<16x16xf32>, vector<16x64xf32>, vector<16x64xf32> -> vector<16x64xf32>
    %cst_102 = arith.constant dense<0.000000e+00> : vector<16x64xf32>
    %183 = tpu.matmul %6, %182, %cst_102 {dimension_numbers = #tpu.dot_dimension_numbers<[1], [0], [0], [1], [0, 0, 1, 1], [], []>} : vector<16x16xf32>, vector<16x64xf32>, vector<16x64xf32> -> vector<16x64xf32>
    %cst_103 = arith.constant 2.000000e+00 : f32
    %184 = vector.broadcast %cst_103 : f32 to vector<16x64xf32>
    %185 = arith.mulf %184, %183 : vector<16x64xf32>
    %186 = arith.subf %185, %177 : vector<16x64xf32>
    %187 = tpu.concatenate %173, %175 in 1 : vector<16x32xf32>, vector<16x32xf32> -> vector<16x64xf32>
    %cst_104 = arith.constant dense<0.000000e+00> : vector<16x64xf32>
    %188 = tpu.matmul %4, %187, %cst_104 {dimension_numbers = #tpu.dot_dimension_numbers<[1], [0], [0], [1], [0, 0, 1, 1], [], []>} : vector<16x16xf32>, vector<16x64xf32>, vector<16x64xf32> -> vector<16x64xf32>
    %cst_105 = arith.constant dense<0.000000e+00> : vector<16x64xf32>
    %189 = tpu.matmul %4, %188, %cst_105 {dimension_numbers = #tpu.dot_dimension_numbers<[1], [0], [0], [1], [0, 0, 1, 1], [], []>} : vector<16x16xf32>, vector<16x64xf32>, vector<16x64xf32> -> vector<16x64xf32>
    %cst_106 = arith.constant 2.000000e+00 : f32
    %190 = vector.broadcast %cst_106 : f32 to vector<16x64xf32>
    %191 = arith.mulf %190, %189 : vector<16x64xf32>
    %192 = arith.subf %191, %187 : vector<16x64xf32>
    %cst_107 = arith.constant dense<0.000000e+00> : vector<16x64xf32>
    %193 = tpu.matmul %6, %188, %cst_107 {dimension_numbers = #tpu.dot_dimension_numbers<[1], [0], [0], [1], [0, 0, 1, 1], [], []>} : vector<16x16xf32>, vector<16x64xf32>, vector<16x64xf32> -> vector<16x64xf32>
    %cst_108 = arith.constant dense<0.000000e+00> : vector<16x64xf32>
    %194 = tpu.matmul %6, %193, %cst_108 {dimension_numbers = #tpu.dot_dimension_numbers<[1], [0], [0], [1], [0, 0, 1, 1], [], []>} : vector<16x16xf32>, vector<16x64xf32>, vector<16x64xf32> -> vector<16x64xf32>
    %cst_109 = arith.constant 2.000000e+00 : f32
    %195 = vector.broadcast %cst_109 : f32 to vector<16x64xf32>
    %196 = arith.mulf %195, %194 : vector<16x64xf32>
    %197 = arith.subf %196, %188 : vector<16x64xf32>
    %198 = vector.extract_strided_slice %176 {offsets = [0, 0], sizes = [16, 32], strides = [1, 1]} : vector<16x64xf32> to vector<16x32xf32>
    %199 = vector.extract_strided_slice %177 {offsets = [0, 0], sizes = [16, 32], strides = [1, 1]} : vector<16x64xf32> to vector<16x32xf32>
    %200 = vector.extract_strided_slice %181 {offsets = [0, 0], sizes = [16, 32], strides = [1, 1]} : vector<16x64xf32> to vector<16x32xf32>
    %201 = vector.extract_strided_slice %182 {offsets = [0, 0], sizes = [16, 32], strides = [1, 1]} : vector<16x64xf32> to vector<16x32xf32>
    %202 = vector.extract_strided_slice %186 {offsets = [0, 0], sizes = [16, 32], strides = [1, 1]} : vector<16x64xf32> to vector<16x32xf32>
    %203 = tpu.concatenate %198, %199, %200, %201, %202 in 1 : vector<16x32xf32>, vector<16x32xf32>, vector<16x32xf32>, vector<16x32xf32>, vector<16x32xf32> -> vector<16x160xf32>
    %204 = vector.extract_strided_slice %176 {offsets = [0, 32], sizes = [16, 32], strides = [1, 1]} : vector<16x64xf32> to vector<16x32xf32>
    %205 = vector.extract_strided_slice %177 {offsets = [0, 32], sizes = [16, 32], strides = [1, 1]} : vector<16x64xf32> to vector<16x32xf32>
    %206 = vector.extract_strided_slice %181 {offsets = [0, 32], sizes = [16, 32], strides = [1, 1]} : vector<16x64xf32> to vector<16x32xf32>
    %207 = vector.extract_strided_slice %182 {offsets = [0, 32], sizes = [16, 32], strides = [1, 1]} : vector<16x64xf32> to vector<16x32xf32>
    %208 = vector.extract_strided_slice %186 {offsets = [0, 32], sizes = [16, 32], strides = [1, 1]} : vector<16x64xf32> to vector<16x32xf32>
    %209 = tpu.concatenate %204, %205, %206, %207, %208 in 1 : vector<16x32xf32>, vector<16x32xf32>, vector<16x32xf32>, vector<16x32xf32>, vector<16x32xf32> -> vector<16x160xf32>
    %210 = vector.extract_strided_slice %187 {offsets = [0, 0], sizes = [16, 32], strides = [1, 1]} : vector<16x64xf32> to vector<16x32xf32>
    %211 = vector.extract_strided_slice %188 {offsets = [0, 0], sizes = [16, 32], strides = [1, 1]} : vector<16x64xf32> to vector<16x32xf32>
    %212 = vector.extract_strided_slice %192 {offsets = [0, 0], sizes = [16, 32], strides = [1, 1]} : vector<16x64xf32> to vector<16x32xf32>
    %213 = vector.extract_strided_slice %193 {offsets = [0, 0], sizes = [16, 32], strides = [1, 1]} : vector<16x64xf32> to vector<16x32xf32>
    %214 = vector.extract_strided_slice %197 {offsets = [0, 0], sizes = [16, 32], strides = [1, 1]} : vector<16x64xf32> to vector<16x32xf32>
    %215 = tpu.concatenate %210, %211, %212, %213, %214 in 1 : vector<16x32xf32>, vector<16x32xf32>, vector<16x32xf32>, vector<16x32xf32>, vector<16x32xf32> -> vector<16x160xf32>
    %216 = vector.extract_strided_slice %187 {offsets = [0, 32], sizes = [16, 32], strides = [1, 1]} : vector<16x64xf32> to vector<16x32xf32>
    %217 = vector.extract_strided_slice %188 {offsets = [0, 32], sizes = [16, 32], strides = [1, 1]} : vector<16x64xf32> to vector<16x32xf32>
    %218 = vector.extract_strided_slice %192 {offsets = [0, 32], sizes = [16, 32], strides = [1, 1]} : vector<16x64xf32> to vector<16x32xf32>
    %219 = vector.extract_strided_slice %193 {offsets = [0, 32], sizes = [16, 32], strides = [1, 1]} : vector<16x64xf32> to vector<16x32xf32>
    %220 = vector.extract_strided_slice %197 {offsets = [0, 32], sizes = [16, 32], strides = [1, 1]} : vector<16x64xf32> to vector<16x32xf32>
    %221 = tpu.concatenate %216, %217, %218, %219, %220 in 1 : vector<16x32xf32>, vector<16x32xf32>, vector<16x32xf32>, vector<16x32xf32>, vector<16x32xf32> -> vector<16x160xf32>
    %cst_110 = arith.constant dense<0.000000e+00> : vector<16x32xf32>
    %222 = tpu.matmul %203, %163, %cst_110 {dimension_numbers = #tpu.dot_dimension_numbers<[1], [0], [0], [1], [0, 0, 1, 1], [], []>} : vector<16x160xf32>, vector<160x32xf32>, vector<16x32xf32> -> vector<16x32xf32>
    %cst_111 = arith.constant dense<0.000000e+00> : vector<16x32xf32>
    %223 = tpu.matmul %215, %166, %cst_111 {dimension_numbers = #tpu.dot_dimension_numbers<[1], [0], [0], [1], [0, 0, 1, 1], [], []>} : vector<16x160xf32>, vector<160x32xf32>, vector<16x32xf32> -> vector<16x32xf32>
    %224 = arith.addf %222, %223 : vector<16x32xf32>
    %225 = vector.broadcast %169 : vector<1x32xf32> to vector<16x32xf32>
    %226 = arith.addf %224, %225 : vector<16x32xf32>
    %227 = arith.negf %226 : vector<16x32xf32>
    %228 = math.exp %227 : vector<16x32xf32>
    %cst_112 = arith.constant 1.000000e+00 : f32
    %229 = vector.broadcast %cst_112 : f32 to vector<16x32xf32>
    %230 = arith.addf %229, %228 : vector<16x32xf32>
    %231 = arith.divf %229, %230 : vector<16x32xf32>
    %cst_113 = arith.constant dense<0.000000e+00> : vector<16x32xf32>
    %232 = tpu.matmul %203, %164, %cst_113 {dimension_numbers = #tpu.dot_dimension_numbers<[1], [0], [0], [1], [0, 0, 1, 1], [], []>} : vector<16x160xf32>, vector<160x32xf32>, vector<16x32xf32> -> vector<16x32xf32>
    %cst_114 = arith.constant dense<0.000000e+00> : vector<16x32xf32>
    %233 = tpu.matmul %215, %167, %cst_114 {dimension_numbers = #tpu.dot_dimension_numbers<[1], [0], [0], [1], [0, 0, 1, 1], [], []>} : vector<16x160xf32>, vector<160x32xf32>, vector<16x32xf32> -> vector<16x32xf32>
    %234 = arith.addf %232, %233 : vector<16x32xf32>
    %235 = vector.broadcast %170 : vector<1x32xf32> to vector<16x32xf32>
    %236 = arith.addf %234, %235 : vector<16x32xf32>
    %237 = arith.negf %236 : vector<16x32xf32>
    %238 = math.exp %237 : vector<16x32xf32>
    %cst_115 = arith.constant 1.000000e+00 : f32
    %239 = vector.broadcast %cst_115 : f32 to vector<16x32xf32>
    %240 = arith.addf %239, %238 : vector<16x32xf32>
    %241 = arith.divf %239, %240 : vector<16x32xf32>
    %cst_116 = arith.constant dense<0.000000e+00> : vector<16x32xf32>
    %242 = tpu.matmul %209, %163, %cst_116 {dimension_numbers = #tpu.dot_dimension_numbers<[1], [0], [0], [1], [0, 0, 1, 1], [], []>} : vector<16x160xf32>, vector<160x32xf32>, vector<16x32xf32> -> vector<16x32xf32>
    %cst_117 = arith.constant dense<0.000000e+00> : vector<16x32xf32>
    %243 = tpu.matmul %221, %166, %cst_117 {dimension_numbers = #tpu.dot_dimension_numbers<[1], [0], [0], [1], [0, 0, 1, 1], [], []>} : vector<16x160xf32>, vector<160x32xf32>, vector<16x32xf32> -> vector<16x32xf32>
    %244 = arith.addf %242, %243 : vector<16x32xf32>
    %245 = vector.broadcast %169 : vector<1x32xf32> to vector<16x32xf32>
    %246 = arith.addf %244, %245 : vector<16x32xf32>
    %247 = arith.negf %246 : vector<16x32xf32>
    %248 = math.exp %247 : vector<16x32xf32>
    %cst_118 = arith.constant 1.000000e+00 : f32
    %249 = vector.broadcast %cst_118 : f32 to vector<16x32xf32>
    %250 = arith.addf %249, %248 : vector<16x32xf32>
    %251 = arith.divf %249, %250 : vector<16x32xf32>
    %cst_119 = arith.constant dense<0.000000e+00> : vector<16x32xf32>
    %252 = tpu.matmul %209, %164, %cst_119 {dimension_numbers = #tpu.dot_dimension_numbers<[1], [0], [0], [1], [0, 0, 1, 1], [], []>} : vector<16x160xf32>, vector<160x32xf32>, vector<16x32xf32> -> vector<16x32xf32>
    %cst_120 = arith.constant dense<0.000000e+00> : vector<16x32xf32>
    %253 = tpu.matmul %221, %167, %cst_120 {dimension_numbers = #tpu.dot_dimension_numbers<[1], [0], [0], [1], [0, 0, 1, 1], [], []>} : vector<16x160xf32>, vector<160x32xf32>, vector<16x32xf32> -> vector<16x32xf32>
    %254 = arith.addf %252, %253 : vector<16x32xf32>
    %255 = vector.broadcast %170 : vector<1x32xf32> to vector<16x32xf32>
    %256 = arith.addf %254, %255 : vector<16x32xf32>
    %257 = arith.negf %256 : vector<16x32xf32>
    %258 = math.exp %257 : vector<16x32xf32>
    %cst_121 = arith.constant 1.000000e+00 : f32
    %259 = vector.broadcast %cst_121 : f32 to vector<16x32xf32>
    %260 = arith.addf %259, %258 : vector<16x32xf32>
    %261 = arith.divf %259, %260 : vector<16x32xf32>
    %262 = arith.mulf %231, %173 : vector<16x32xf32>
    %263 = arith.mulf %251, %175 : vector<16x32xf32>
    %264 = tpu.concatenate %262, %263 in 1 : vector<16x32xf32>, vector<16x32xf32> -> vector<16x64xf32>
    %cst_122 = arith.constant dense<0.000000e+00> : vector<16x64xf32>
    %265 = tpu.matmul %4, %264, %cst_122 {dimension_numbers = #tpu.dot_dimension_numbers<[1], [0], [0], [1], [0, 0, 1, 1], [], []>} : vector<16x16xf32>, vector<16x64xf32>, vector<16x64xf32> -> vector<16x64xf32>
    %cst_123 = arith.constant dense<0.000000e+00> : vector<16x64xf32>
    %266 = tpu.matmul %4, %265, %cst_123 {dimension_numbers = #tpu.dot_dimension_numbers<[1], [0], [0], [1], [0, 0, 1, 1], [], []>} : vector<16x16xf32>, vector<16x64xf32>, vector<16x64xf32> -> vector<16x64xf32>
    %cst_124 = arith.constant 2.000000e+00 : f32
    %267 = vector.broadcast %cst_124 : f32 to vector<16x64xf32>
    %268 = arith.mulf %267, %266 : vector<16x64xf32>
    %269 = arith.subf %268, %264 : vector<16x64xf32>
    %cst_125 = arith.constant dense<0.000000e+00> : vector<16x64xf32>
    %270 = tpu.matmul %6, %265, %cst_125 {dimension_numbers = #tpu.dot_dimension_numbers<[1], [0], [0], [1], [0, 0, 1, 1], [], []>} : vector<16x16xf32>, vector<16x64xf32>, vector<16x64xf32> -> vector<16x64xf32>
    %cst_126 = arith.constant dense<0.000000e+00> : vector<16x64xf32>
    %271 = tpu.matmul %6, %270, %cst_126 {dimension_numbers = #tpu.dot_dimension_numbers<[1], [0], [0], [1], [0, 0, 1, 1], [], []>} : vector<16x16xf32>, vector<16x64xf32>, vector<16x64xf32> -> vector<16x64xf32>
    %cst_127 = arith.constant 2.000000e+00 : f32
    %272 = vector.broadcast %cst_127 : f32 to vector<16x64xf32>
    %273 = arith.mulf %272, %271 : vector<16x64xf32>
    %274 = arith.subf %273, %265 : vector<16x64xf32>
    %275 = vector.extract_strided_slice %264 {offsets = [0, 0], sizes = [16, 32], strides = [1, 1]} : vector<16x64xf32> to vector<16x32xf32>
    %276 = vector.extract_strided_slice %265 {offsets = [0, 0], sizes = [16, 32], strides = [1, 1]} : vector<16x64xf32> to vector<16x32xf32>
    %277 = vector.extract_strided_slice %269 {offsets = [0, 0], sizes = [16, 32], strides = [1, 1]} : vector<16x64xf32> to vector<16x32xf32>
    %278 = vector.extract_strided_slice %270 {offsets = [0, 0], sizes = [16, 32], strides = [1, 1]} : vector<16x64xf32> to vector<16x32xf32>
    %279 = vector.extract_strided_slice %274 {offsets = [0, 0], sizes = [16, 32], strides = [1, 1]} : vector<16x64xf32> to vector<16x32xf32>
    %280 = tpu.concatenate %275, %276, %277, %278, %279 in 1 : vector<16x32xf32>, vector<16x32xf32>, vector<16x32xf32>, vector<16x32xf32>, vector<16x32xf32> -> vector<16x160xf32>
    %cst_128 = arith.constant dense<0.000000e+00> : vector<16x32xf32>
    %281 = tpu.matmul %203, %165, %cst_128 {dimension_numbers = #tpu.dot_dimension_numbers<[1], [0], [0], [1], [0, 0, 1, 1], [], []>} : vector<16x160xf32>, vector<160x32xf32>, vector<16x32xf32> -> vector<16x32xf32>
    %cst_129 = arith.constant dense<0.000000e+00> : vector<16x32xf32>
    %282 = tpu.matmul %280, %168, %cst_129 {dimension_numbers = #tpu.dot_dimension_numbers<[1], [0], [0], [1], [0, 0, 1, 1], [], []>} : vector<16x160xf32>, vector<160x32xf32>, vector<16x32xf32> -> vector<16x32xf32>
    %283 = arith.addf %281, %282 : vector<16x32xf32>
    %284 = vector.broadcast %171 : vector<1x32xf32> to vector<16x32xf32>
    %285 = arith.addf %283, %284 : vector<16x32xf32>
    %286 = math.tanh %285 : vector<16x32xf32>
    %287 = arith.mulf %241, %173 : vector<16x32xf32>
    %cst_130 = arith.constant 1.000000e+00 : f32
    %288 = vector.broadcast %cst_130 : f32 to vector<16x32xf32>
    %289 = arith.subf %288, %241 : vector<16x32xf32>
    %290 = arith.mulf %289, %286 : vector<16x32xf32>
    %291 = arith.addf %287, %290 : vector<16x32xf32>
    %c2_131 = arith.constant 2 : index
    %c0_132 = arith.constant 0 : index
    %c0_133 = arith.constant 0 : index
    %292 = vector.load %arg25[%c2_131, %c0_132, %c0_133] : memref<4x16x32xf32, #tpu.memory_space<vmem>>, vector<1x16x32xf32>
    %293 = vector.shape_cast %292 : vector<1x16x32xf32> to vector<16x32xf32>
    %294 = vector.shape_cast %291 : vector<16x32xf32> to vector<1x16x32xf32>
    tpu.vector_store %arg25[%c2_131, %c0_132, %c0_133], %294 {strides = array<i32>} : memref<4x16x32xf32, #tpu.memory_space<vmem>>, vector<1x16x32xf32>,
    %295 = vector.extract_strided_slice %264 {offsets = [0, 32], sizes = [16, 32], strides = [1, 1]} : vector<16x64xf32> to vector<16x32xf32>
    %296 = vector.extract_strided_slice %265 {offsets = [0, 32], sizes = [16, 32], strides = [1, 1]} : vector<16x64xf32> to vector<16x32xf32>
    %297 = vector.extract_strided_slice %269 {offsets = [0, 32], sizes = [16, 32], strides = [1, 1]} : vector<16x64xf32> to vector<16x32xf32>
    %298 = vector.extract_strided_slice %270 {offsets = [0, 32], sizes = [16, 32], strides = [1, 1]} : vector<16x64xf32> to vector<16x32xf32>
    %299 = vector.extract_strided_slice %274 {offsets = [0, 32], sizes = [16, 32], strides = [1, 1]} : vector<16x64xf32> to vector<16x32xf32>
    %300 = tpu.concatenate %295, %296, %297, %298, %299 in 1 : vector<16x32xf32>, vector<16x32xf32>, vector<16x32xf32>, vector<16x32xf32>, vector<16x32xf32> -> vector<16x160xf32>
    %cst_134 = arith.constant dense<0.000000e+00> : vector<16x32xf32>
    %301 = tpu.matmul %209, %165, %cst_134 {dimension_numbers = #tpu.dot_dimension_numbers<[1], [0], [0], [1], [0, 0, 1, 1], [], []>} : vector<16x160xf32>, vector<160x32xf32>, vector<16x32xf32> -> vector<16x32xf32>
    %cst_135 = arith.constant dense<0.000000e+00> : vector<16x32xf32>
    %302 = tpu.matmul %300, %168, %cst_135 {dimension_numbers = #tpu.dot_dimension_numbers<[1], [0], [0], [1], [0, 0, 1, 1], [], []>} : vector<16x160xf32>, vector<160x32xf32>, vector<16x32xf32> -> vector<16x32xf32>
    %303 = arith.addf %301, %302 : vector<16x32xf32>
    %304 = vector.broadcast %171 : vector<1x32xf32> to vector<16x32xf32>
    %305 = arith.addf %303, %304 : vector<16x32xf32>
    %306 = math.tanh %305 : vector<16x32xf32>
    %307 = arith.mulf %261, %175 : vector<16x32xf32>
    %cst_136 = arith.constant 1.000000e+00 : f32
    %308 = vector.broadcast %cst_136 : f32 to vector<16x32xf32>
    %309 = arith.subf %308, %261 : vector<16x32xf32>
    %310 = arith.mulf %309, %306 : vector<16x32xf32>
    %311 = arith.addf %307, %310 : vector<16x32xf32>
    %c3_137 = arith.constant 3 : index
    %c0_138 = arith.constant 0 : index
    %c0_139 = arith.constant 0 : index
    %312 = vector.load %arg25[%c3_137, %c0_138, %c0_139] : memref<4x16x32xf32, #tpu.memory_space<vmem>>, vector<1x16x32xf32>
    %313 = vector.shape_cast %312 : vector<1x16x32xf32> to vector<16x32xf32>
    %314 = vector.shape_cast %311 : vector<16x32xf32> to vector<1x16x32xf32>
    tpu.vector_store %arg25[%c3_137, %c0_138, %c0_139], %314 {strides = array<i32>} : memref<4x16x32xf32, #tpu.memory_space<vmem>>, vector<1x16x32xf32>,
    %c0_140 = arith.constant 0 : index
    %c0_141 = arith.constant 0 : index
    %315 = vector.load %arg22[%c0_140, %c0_141] : memref<32x2xf32, #tpu.memory_space<vmem>>, vector<32x2xf32>
    %c0_142 = arith.constant 0 : index
    %c0_143 = arith.constant 0 : index
    %316 = vector.load %arg23[%c0_142, %c0_143] : memref<1x2xf32, #tpu.memory_space<vmem>>, vector<1x2xf32>
    %cst_144 = arith.constant dense<0.000000e+00> : vector<16x2xf32>
    %317 = tpu.matmul %291, %315, %cst_144 {dimension_numbers = #tpu.dot_dimension_numbers<[1], [0], [0], [1], [0, 0, 1, 1], [], []>} : vector<16x32xf32>, vector<32x2xf32>, vector<16x2xf32> -> vector<16x2xf32>
    %318 = vector.broadcast %316 : vector<1x2xf32> to vector<16x2xf32>
    %319 = arith.addf %317, %318 : vector<16x2xf32>
    %c0_145 = arith.constant 0 : index
    %c0_146 = arith.constant 0 : index
    %c0_147 = arith.constant 0 : index
    %c0_148 = arith.constant 0 : index
    %320 = vector.load %arg24[%c0_145, %c0_146, %c0_147, %c0_148] : memref<1x1x32x2xf32, #tpu.memory_space<vmem>>, vector<1x1x16x2xf32>
    %321 = vector.shape_cast %320 : vector<1x1x16x2xf32> to vector<16x2xf32>
    %322 = vector.shape_cast %319 : vector<16x2xf32> to vector<1x1x16x2xf32>
    tpu.vector_store %arg24[%c0_145, %c0_146, %c0_147, %c0_148], %322 {strides = array<i32>} : memref<1x1x32x2xf32, #tpu.memory_space<vmem>>, vector<1x1x16x2xf32>,
    %c0_149 = arith.constant 0 : index
    %c0_150 = arith.constant 0 : index
    %c0_151 = arith.constant 0 : index
    %323 = vector.load %arg26[%c0_149, %c0_150, %c0_151] : memref<2x16x2xf32, #tpu.memory_space<vmem>>, vector<1x16x2xf32>
    %324 = vector.shape_cast %323 : vector<1x16x2xf32> to vector<16x2xf32>
    %325 = vector.shape_cast %319 : vector<16x2xf32> to vector<1x16x2xf32>
    tpu.vector_store %arg26[%c0_149, %c0_150, %c0_151], %325 {strides = array<i32>} : memref<2x16x2xf32, #tpu.memory_space<vmem>>, vector<1x16x2xf32>,
    %cst_152 = arith.constant dense<0.000000e+00> : vector<16x2xf32>
    %326 = tpu.matmul %311, %315, %cst_152 {dimension_numbers = #tpu.dot_dimension_numbers<[1], [0], [0], [1], [0, 0, 1, 1], [], []>} : vector<16x32xf32>, vector<32x2xf32>, vector<16x2xf32> -> vector<16x2xf32>
    %327 = vector.broadcast %316 : vector<1x2xf32> to vector<16x2xf32>
    %328 = arith.addf %326, %327 : vector<16x2xf32>
    %c0_153 = arith.constant 0 : index
    %c0_154 = arith.constant 0 : index
    %c16 = arith.constant 16 : index
    %c0_155 = arith.constant 0 : index
    %329 = vector.load %arg24[%c0_153, %c0_154, %c16, %c0_155] : memref<1x1x32x2xf32, #tpu.memory_space<vmem>>, vector<1x1x16x2xf32>
    %330 = vector.shape_cast %329 : vector<1x1x16x2xf32> to vector<16x2xf32>
    %331 = vector.shape_cast %328 : vector<16x2xf32> to vector<1x1x16x2xf32>
    tpu.vector_store %arg24[%c0_153, %c0_154, %c16, %c0_155], %331 {strides = array<i32>} : memref<1x1x32x2xf32, #tpu.memory_space<vmem>>, vector<1x1x16x2xf32>,
    %c1_156 = arith.constant 1 : index
    %c0_157 = arith.constant 0 : index
    %c0_158 = arith.constant 0 : index
    %332 = vector.load %arg26[%c1_156, %c0_157, %c0_158] : memref<2x16x2xf32, #tpu.memory_space<vmem>>, vector<1x16x2xf32>
    %333 = vector.shape_cast %332 : vector<1x16x2xf32> to vector<16x2xf32>
    %334 = vector.shape_cast %328 : vector<16x2xf32> to vector<1x16x2xf32>
    tpu.vector_store %arg26[%c1_156, %c0_157, %c0_158], %334 {strides = array<i32>} : memref<2x16x2xf32, #tpu.memory_space<vmem>>, vector<1x16x2xf32>,
    return
  }
  func.func @transform_0(%arg0: i32, %arg1: i32) -> (i32, i32, i32, i32) {
    %c0_i32 = arith.constant 0 : i32
    %c0_i32_0 = arith.constant 0 : i32
    %c0_i32_1 = arith.constant 0 : i32
    %c0_i32_2 = arith.constant 0 : i32
    return %arg0, %c0_i32, %c0_i32_0, %c0_i32_1 : i32, i32, i32, i32
  }
  func.func @transform_1(%arg0: i32, %arg1: i32) -> (i32, i32, i32) {
    %c0_i32 = arith.constant 0 : i32
    %c0_i32_0 = arith.constant 0 : i32
    %c0_i32_1 = arith.constant 0 : i32
    %c0_i32_2 = arith.constant 0 : i32
    return %c0_i32, %c0_i32_0, %c0_i32_1 : i32, i32, i32
  }
  func.func @transform_2(%arg0: i32, %arg1: i32) -> (i32, i32) {
    %c0_i32 = arith.constant 0 : i32
    %c0_i32_0 = arith.constant 0 : i32
    %c0_i32_1 = arith.constant 0 : i32
    return %c0_i32, %c0_i32_0 : i32, i32
  }
  func.func @transform_3(%arg0: i32, %arg1: i32) -> (i32, i32) {
    %c0_i32 = arith.constant 0 : i32
    %c0_i32_0 = arith.constant 0 : i32
    %c0_i32_1 = arith.constant 0 : i32
    return %c0_i32, %c0_i32_0 : i32, i32
  }
  func.func @transform_4(%arg0: i32, %arg1: i32) -> (i32, i32) {
    %c0_i32 = arith.constant 0 : i32
    %c0_i32_0 = arith.constant 0 : i32
    %c0_i32_1 = arith.constant 0 : i32
    return %c0_i32, %c0_i32_0 : i32, i32
  }
  func.func @transform_5(%arg0: i32, %arg1: i32) -> (i32, i32) {
    %c0_i32 = arith.constant 0 : i32
    %c0_i32_0 = arith.constant 0 : i32
    %c0_i32_1 = arith.constant 0 : i32
    return %c0_i32, %c0_i32_0 : i32, i32
  }
  func.func @transform_6(%arg0: i32, %arg1: i32) -> (i32, i32) {
    %c0_i32 = arith.constant 0 : i32
    %c0_i32_0 = arith.constant 0 : i32
    %c0_i32_1 = arith.constant 0 : i32
    return %c0_i32, %c0_i32_0 : i32, i32
  }
  func.func @transform_7(%arg0: i32, %arg1: i32) -> (i32, i32) {
    %c0_i32 = arith.constant 0 : i32
    %c0_i32_0 = arith.constant 0 : i32
    %c0_i32_1 = arith.constant 0 : i32
    return %c0_i32, %c0_i32_0 : i32, i32
  }
  func.func @transform_8(%arg0: i32, %arg1: i32) -> (i32, i32) {
    %c0_i32 = arith.constant 0 : i32
    %c0_i32_0 = arith.constant 0 : i32
    %c0_i32_1 = arith.constant 0 : i32
    return %c0_i32, %c0_i32_0 : i32, i32
  }
  func.func @transform_9(%arg0: i32, %arg1: i32) -> (i32, i32) {
    %c0_i32 = arith.constant 0 : i32
    %c0_i32_0 = arith.constant 0 : i32
    %c0_i32_1 = arith.constant 0 : i32
    return %c0_i32, %c0_i32_0 : i32, i32
  }
  func.func @transform_10(%arg0: i32, %arg1: i32) -> (i32, i32) {
    %c0_i32 = arith.constant 0 : i32
    %c0_i32_0 = arith.constant 0 : i32
    %c0_i32_1 = arith.constant 0 : i32
    return %c0_i32, %c0_i32_0 : i32, i32
  }
  func.func @transform_11(%arg0: i32, %arg1: i32) -> (i32, i32) {
    %c0_i32 = arith.constant 0 : i32
    %c0_i32_0 = arith.constant 0 : i32
    %c0_i32_1 = arith.constant 0 : i32
    return %c0_i32, %c0_i32_0 : i32, i32
  }
  func.func @transform_12(%arg0: i32, %arg1: i32) -> (i32, i32) {
    %c0_i32 = arith.constant 0 : i32
    %c0_i32_0 = arith.constant 0 : i32
    %c0_i32_1 = arith.constant 0 : i32
    return %c0_i32, %c0_i32_0 : i32, i32
  }
  func.func @transform_13(%arg0: i32, %arg1: i32) -> (i32, i32) {
    %c0_i32 = arith.constant 0 : i32
    %c0_i32_0 = arith.constant 0 : i32
    %c0_i32_1 = arith.constant 0 : i32
    return %c0_i32, %c0_i32_0 : i32, i32
  }
  func.func @transform_14(%arg0: i32, %arg1: i32) -> (i32, i32) {
    %c0_i32 = arith.constant 0 : i32
    %c0_i32_0 = arith.constant 0 : i32
    %c0_i32_1 = arith.constant 0 : i32
    return %c0_i32, %c0_i32_0 : i32, i32
  }
  func.func @transform_15(%arg0: i32, %arg1: i32) -> (i32, i32) {
    %c0_i32 = arith.constant 0 : i32
    %c0_i32_0 = arith.constant 0 : i32
    %c0_i32_1 = arith.constant 0 : i32
    return %c0_i32, %c0_i32_0 : i32, i32
  }
  func.func @transform_16(%arg0: i32, %arg1: i32) -> (i32, i32) {
    %c0_i32 = arith.constant 0 : i32
    %c0_i32_0 = arith.constant 0 : i32
    %c0_i32_1 = arith.constant 0 : i32
    return %c0_i32, %c0_i32_0 : i32, i32
  }
  func.func @transform_17(%arg0: i32, %arg1: i32) -> (i32, i32) {
    %c0_i32 = arith.constant 0 : i32
    %c0_i32_0 = arith.constant 0 : i32
    %c0_i32_1 = arith.constant 0 : i32
    return %c0_i32, %c0_i32_0 : i32, i32
  }
  func.func @transform_18(%arg0: i32, %arg1: i32) -> (i32, i32) {
    %c0_i32 = arith.constant 0 : i32
    %c0_i32_0 = arith.constant 0 : i32
    %c0_i32_1 = arith.constant 0 : i32
    return %c0_i32, %c0_i32_0 : i32, i32
  }
  func.func @transform_19(%arg0: i32, %arg1: i32) -> (i32, i32) {
    %c0_i32 = arith.constant 0 : i32
    %c0_i32_0 = arith.constant 0 : i32
    %c0_i32_1 = arith.constant 0 : i32
    return %c0_i32, %c0_i32_0 : i32, i32
  }
  func.func @transform_20(%arg0: i32, %arg1: i32) -> (i32, i32) {
    %c0_i32 = arith.constant 0 : i32
    %c0_i32_0 = arith.constant 0 : i32
    %c0_i32_1 = arith.constant 0 : i32
    return %c0_i32, %c0_i32_0 : i32, i32
  }
  func.func @transform_21(%arg0: i32, %arg1: i32) -> (i32, i32) {
    %c0_i32 = arith.constant 0 : i32
    %c0_i32_0 = arith.constant 0 : i32
    %c0_i32_1 = arith.constant 0 : i32
    return %c0_i32, %c0_i32_0 : i32, i32
  }
  func.func @transform_22(%arg0: i32, %arg1: i32) -> (i32, i32, i32, i32) {
    %c0_i32 = arith.constant 0 : i32
    %c0_i32_0 = arith.constant 0 : i32
    %c0_i32_1 = arith.constant 0 : i32
    return %arg0, %arg1, %c0_i32, %c0_i32_0 : i32, i32, i32, i32
  }
}

</mosaic_0001>

<llo_original>
// kernel: dcrnn_decoder_forward.1
$region0: #{dcrnn_decoder_forward.1}
  #allocation0 [shape = 'u32[]', space=smem, size = 0x4, offset = 0x4, fixed_abs, tag = 'smem constant byte address 0x4 - core index']
  #allocation1 [shape = 'u32[72,128]{1,0:T(1,128)}', space=vmem, size = 0x9000, scoped, tag = 'internal scratch']
  #allocation2 [shape = 'f32[4,16,32]{2,1,0:T(8,128)}', space=vmem, size = 0x8000, scoped, tag = 'scratch operand']
  #allocation3 [shape = 'f32[2,16,2]{2,1,0:T(8,128)}', space=vmem, size = 0x4000, scoped, tag = 'scratch operand']
  %s0 = inlined_call_operand.vmem [shape: f32[2,4,16,32], index: 0, kind: input, shape index: {}]
  %s1 = inlined_call_operand.vmem [shape: f32[2,16,16], index: 1, kind: input, shape index: {}]
  %s2 = inlined_call_operand.vmem [shape: f32[10,32], index: 2, kind: input, shape index: {}]
  %s3 = inlined_call_operand.vmem [shape: f32[10,32], index: 3, kind: input, shape index: {}]
  %s4 = inlined_call_operand.vmem [shape: f32[10,32], index: 4, kind: input, shape index: {}]
  %s5 = inlined_call_operand.vmem [shape: f32[160,32], index: 5, kind: input, shape index: {}]
  %s6 = inlined_call_operand.vmem [shape: f32[160,32], index: 6, kind: input, shape index: {}]
  %s7 = inlined_call_operand.vmem [shape: f32[160,32], index: 7, kind: input, shape index: {}]
  %s8 = inlined_call_operand.vmem [shape: f32[1,32], index: 8, kind: input, shape index: {}]
  %s9 = inlined_call_operand.vmem [shape: f32[1,32], index: 9, kind: input, shape index: {}]
  %s10 = inlined_call_operand.vmem [shape: f32[1,32], index: 10, kind: input, shape index: {}]
  %s11 = inlined_call_operand.vmem [shape: f32[160,32], index: 11, kind: input, shape index: {}]
  %s12 = inlined_call_operand.vmem [shape: f32[160,32], index: 12, kind: input, shape index: {}]
  %s13 = inlined_call_operand.vmem [shape: f32[160,32], index: 13, kind: input, shape index: {}]
  %s14 = inlined_call_operand.vmem [shape: f32[160,32], index: 14, kind: input, shape index: {}]
  %s15 = inlined_call_operand.vmem [shape: f32[160,32], index: 15, kind: input, shape index: {}]
  %s16 = inlined_call_operand.vmem [shape: f32[160,32], index: 16, kind: input, shape index: {}]
  %s17 = inlined_call_operand.vmem [shape: f32[1,32], index: 17, kind: input, shape index: {}]
  %s18 = inlined_call_operand.vmem [shape: f32[1,32], index: 18, kind: input, shape index: {}]
  %s19 = inlined_call_operand.vmem [shape: f32[1,32], index: 19, kind: input, shape index: {}]
  %s20 = inlined_call_operand.vmem [shape: f32[32,2], index: 20, kind: input, shape index: {}]
  %s21 = inlined_call_operand.vmem [shape: f32[1,2], index: 21, kind: input, shape index: {}]
  %s22 = inlined_call_operand.vmem [shape: f32[2,4,32,2], index: 22, kind: output, shape index: {}]
  %s23 = sld [smem:[#allocation0]]
  $region125: #{dcrnn_decoder_forward.1} parent=0
    _
  %s25 = ssub.s32 1, %s23
  %s26 = scalar_select 0, %s25, %s23
  loop: start=0, step=1, limit=10
  $region2: #{dcrnn_decoder_forward.1} parent=0 // loop_pre_header
    _
  $region3: #{dcrnn_decoder_forward.1} parent=0 // loop_header
    %s28 = sphi 0, %s32
    %p29 = scmp.ge.s32.totalorder %s28, 10
    %s35 = sphi 0, %s47
    %s36 = sphi 0, %s43
    %s37 = sphi 0, %s35
    %s38 = sphi 0, %s36
    %s39 = sphi 0, %s37
    %s40 = sphi 0, %s38
    %s50 = sphi 0, %s52
    %s53 = sphi 0, %s50
    %s54 = sphi 0, %s53
    %s70 = sphi 0, %s54
    %s74 = sphi 0, %s74
    %s76 = sphi 0, %s74
    %s77 = sphi 0, %s76
    %s91 = sphi 0, %s77
    %s95 = sphi 0, %s95
    %s97 = sphi 0, %s95
    %s98 = sphi 0, %s97
    %s112 = sphi 0, %s98
    %s116 = sphi 0, %s116
    %s118 = sphi 0, %s116
    %s119 = sphi 0, %s118
    %s133 = sphi 0, %s119
    %s137 = sphi 0, %s137
    %s139 = sphi 0, %s137
    %s140 = sphi 0, %s139
    %s154 = sphi 0, %s140
    %s158 = sphi 0, %s158
    %s160 = sphi 0, %s158
    %s161 = sphi 0, %s160
    %s175 = sphi 0, %s161
    %s179 = sphi 0, %s179
    %s181 = sphi 0, %s179
    %s182 = sphi 0, %s181
    %s196 = sphi 0, %s182
    %s200 = sphi 0, %s200
    %s202 = sphi 0, %s200
    %s203 = sphi 0, %s202
    %s217 = sphi 0, %s203
    %s221 = sphi 0, %s221
    %s223 = sphi 0, %s221
    %s224 = sphi 0, %s223
    %s238 = sphi 0, %s224
    %s242 = sphi 0, %s242
    %s244 = sphi 0, %s242
    %s245 = sphi 0, %s244
    %s259 = sphi 0, %s245
    %s263 = sphi 0, %s263
    %s265 = sphi 0, %s263
    %s266 = sphi 0, %s265
    %s280 = sphi 0, %s266
    %s284 = sphi 0, %s284
    %s286 = sphi 0, %s284
    %s287 = sphi 0, %s286
    %s301 = sphi 0, %s287
    %s305 = sphi 0, %s305
    %s307 = sphi 0, %s305
    %s308 = sphi 0, %s307
    %s322 = sphi 0, %s308
    %s326 = sphi 0, %s326
    %s328 = sphi 0, %s326
    %s329 = sphi 0, %s328
    %s343 = sphi 0, %s329
    %s347 = sphi 0, %s347
    %s349 = sphi 0, %s347
    %s350 = sphi 0, %s349
    %s364 = sphi 0, %s350
    %s368 = sphi 0, %s368
    %s370 = sphi 0, %s368
    %s371 = sphi 0, %s370
    %s385 = sphi 0, %s371
    %s389 = sphi 0, %s389
    %s391 = sphi 0, %s389
    %s392 = sphi 0, %s391
    %s406 = sphi 0, %s392
    %s410 = sphi 0, %s410
    %s412 = sphi 0, %s410
    %s413 = sphi 0, %s412
    %s427 = sphi 0, %s413
    %s431 = sphi 0, %s431
    %s433 = sphi 0, %s431
    %s434 = sphi 0, %s433
    %s448 = sphi 0, %s434
    %s452 = sphi 0, %s452
    %s454 = sphi 0, %s452
    %s455 = sphi 0, %s454
    %s469 = sphi 0, %s455
    %s473 = sphi 0, %s473
    %s475 = sphi 0, %s473
    %s476 = sphi 0, %s475
    %s490 = sphi 0, %s476
    %s494 = sphi 0, %s494
    %s496 = sphi 0, %s494
    %s497 = sphi 0, %s496
    %s511 = sphi 0, %s497
    %s519 = sphi 0, %s521
    %s522 = sphi 0, %s519
    %s523 = sphi 0, %s522
    %s539 = sphi 0, %s523
  $region4: #{dcrnn_decoder_forward.1} parent=0 // loop_header_branch
    %31 = sbr.rel (%p29) target = $region8
  $region5: #{dcrnn_decoder_forward.1} parent=0 // loop_body
    %s33 = ssub.s32 %s28, 1
    %s34 = ssub.s32 %s28, 2
    %s41 = sadd.s32 1, %s36
    %p42 = scmp.ge.s32.totalorder %s41, 4
    %s43 = scalar_select %p42, 0, %s41
    %s44 = sadd.s32 1, %s35
    %s45 = scalar_select %p42, %s44, %s35
    %p46 = scmp.ge.s32.totalorder %s45, 2
    %s47 = scalar_select %p46, 0, %s45
    %s48 = ssub.s32 %s35, %s47
    %p49 = scmp.eq.s32.totalorder %s48, 0
    %s51 = sadd.s32 %s50, 1
    %s52 = scalar_select %p49, %s50, %s51
    %p55 = pneg %p49
    %p56 = scmp.eq.s32.totalorder %s28, 7
    %p57 = por %p55, %p56
    %p58 = scmp.ne.s32.totalorder %s50, %s53
    %p59 = scmp.eq.s32.totalorder %s28, 0
    %p60 = por %p58, %p59
    %p61 = scmp.ne.s32.totalorder %s50, %s53
    %p62 = scmp.eq.s32.totalorder %s33, 7
    %p63 = por %p61, %p62
    %p64 = scmp.ne.s32.totalorder %s53, %s54
    %p65 = scmp.eq.s32.totalorder %s33, 0
    %p66 = por %p64, %p65
    %p67 = scmp.ne.s32.totalorder %s53, %s54
    %p68 = scmp.eq.s32.totalorder %s34, 7
    %p69 = por %p67, %p68
    %p71 = scmp.ne.s32.totalorder %s54, %s70
    %p72 = scmp.eq.s32.totalorder %s34, 0
    %p73 = por %p71, %p72
    %s75 = sadd.s32 %s74, 1
    %p78 = scmp.eq.s32.totalorder %s28, 7
    %p79 = scmp.ne.s32.totalorder %s74, %s76
    %p80 = scmp.eq.s32.totalorder %s28, 0
    %p81 = por %p79, %p80
    %p82 = scmp.ne.s32.totalorder %s74, %s76
    %p83 = scmp.eq.s32.totalorder %s33, 7
    %p84 = por %p82, %p83
    %p85 = scmp.ne.s32.totalorder %s76, %s77
    %p86 = scmp.eq.s32.totalorder %s33, 0
    %p87 = por %p85, %p86
    %p88 = scmp.ne.s32.totalorder %s76, %s77
    %p89 = scmp.eq.s32.totalorder %s34, 7
    %p90 = por %p88, %p89
    %p92 = scmp.ne.s32.totalorder %s77, %s91
    %p93 = scmp.eq.s32.totalorder %s34, 0
    %p94 = por %p92, %p93
    %s96 = sadd.s32 %s95, 1
    %p99 = scmp.eq.s32.totalorder %s28, 7
    %p100 = scmp.ne.s32.totalorder %s95, %s97
    %p101 = scmp.eq.s32.totalorder %s28, 0
    %p102 = por %p100, %p101
    %p103 = scmp.ne.s32.totalorder %s95, %s97
    %p104 = scmp.eq.s32.totalorder %s33, 7
    %p105 = por %p103, %p104
    %p106 = scmp.ne.s32.totalorder %s97, %s98
    %p107 = scmp.eq.s32.totalorder %s33, 0
    %p108 = por %p106, %p107
    %p109 = scmp.ne.s32.totalorder %s97, %s98
    %p110 = scmp.eq.s32.totalorder %s34, 7
    %p111 = por %p109, %p110
    %p113 = scmp.ne.s32.totalorder %s98, %s112
    %p114 = scmp.eq.s32.totalorder %s34, 0
    %p115 = por %p113, %p114
    %s117 = sadd.s32 %s116, 1
    %p120 = scmp.eq.s32.totalorder %s28, 7
    %p121 = scmp.ne.s32.totalorder %s116, %s118
    %p122 = scmp.eq.s32.totalorder %s28, 0
    %p123 = por %p121, %p122
    %p124 = scmp.ne.s32.totalorder %s116, %s118
    %p125 = scmp.eq.s32.totalorder %s33, 7
    %p126 = por %p124, %p125
    %p127 = scmp.ne.s32.totalorder %s118, %s119
    %p128 = scmp.eq.s32.totalorder %s33, 0
    %p129 = por %p127, %p128
    %p130 = scmp.ne.s32.totalorder %s118, %s119
    %p131 = scmp.eq.s32.totalorder %s34, 7
    %p132 = por %p130, %p131
    %p134 = scmp.ne.s32.totalorder %s119, %s133
    %p135 = scmp.eq.s32.totalorder %s34, 0
    %p136 = por %p134, %p135
    %s138 = sadd.s32 %s137, 1
    %p141 = scmp.eq.s32.totalorder %s28, 7
    %p142 = scmp.ne.s32.totalorder %s137, %s139
    %p143 = scmp.eq.s32.totalorder %s28, 0
    %p144 = por %p142, %p143
    %p145 = scmp.ne.s32.totalorder %s137, %s139
    %p146 = scmp.eq.s32.totalorder %s33, 7
    %p147 = por %p145, %p146
    %p148 = scmp.ne.s32.totalorder %s139, %s140
    %p149 = scmp.eq.s32.totalorder %s33, 0
    %p150 = por %p148, %p149
    %p151 = scmp.ne.s32.totalorder %s139, %s140
    %p152 = scmp.eq.s32.totalorder %s34, 7
    %p153 = por %p151, %p152
    %p155 = scmp.ne.s32.totalorder %s140, %s154
    %p156 = scmp.eq.s32.totalorder %s34, 0
    %p157 = por %p155, %p156
    %s159 = sadd.s32 %s158, 1
    %p162 = scmp.eq.s32.totalorder %s28, 7
    %p163 = scmp.ne.s32.totalorder %s158, %s160
    %p164 = scmp.eq.s32.totalorder %s28, 0
    %p165 = por %p163, %p164
    %p166 = scmp.ne.s32.totalorder %s158, %s160
    %p167 = scmp.eq.s32.totalorder %s33, 7
    %p168 = por %p166, %p167
    %p169 = scmp.ne.s32.totalorder %s160, %s161
    %p170 = scmp.eq.s32.totalorder %s33, 0
    %p171 = por %p169, %p170
    %p172 = scmp.ne.s32.totalorder %s160, %s161
    %p173 = scmp.eq.s32.totalorder %s34, 7
    %p174 = por %p172, %p173
    %p176 = scmp.ne.s32.totalorder %s161, %s175
    %p177 = scmp.eq.s32.totalorder %s34, 0
    %p178 = por %p176, %p177
    %s180 = sadd.s32 %s179, 1
    %p183 = scmp.eq.s32.totalorder %s28, 7
    %p184 = scmp.ne.s32.totalorder %s179, %s181
    %p185 = scmp.eq.s32.totalorder %s28, 0
    %p186 = por %p184, %p185
    %p187 = scmp.ne.s32.totalorder %s179, %s181
    %p188 = scmp.eq.s32.totalorder %s33, 7
    %p189 = por %p187, %p188
    %p190 = scmp.ne.s32.totalorder %s181, %s182
    %p191 = scmp.eq.s32.totalorder %s33, 0
    %p192 = por %p190, %p191
    %p193 = scmp.ne.s32.totalorder %s181, %s182
    %p194 = scmp.eq.s32.totalorder %s34, 7
    %p195 = por %p193, %p194
    %p197 = scmp.ne.s32.totalorder %s182, %s196
    %p198 = scmp.eq.s32.totalorder %s34, 0
    %p199 = por %p197, %p198
    %s201 = sadd.s32 %s200, 1
    %p204 = scmp.eq.s32.totalorder %s28, 7
    %p205 = scmp.ne.s32.totalorder %s200, %s202
    %p206 = scmp.eq.s32.totalorder %s28, 0
    %p207 = por %p205, %p206
    %p208 = scmp.ne.s32.totalorder %s200, %s202
    %p209 = scmp.eq.s32.totalorder %s33, 7
    %p210 = por %p208, %p209
    %p211 = scmp.ne.s32.totalorder %s202, %s203
    %p212 = scmp.eq.s32.totalorder %s33, 0
    %p213 = por %p211, %p212
    %p214 = scmp.ne.s32.totalorder %s202, %s203
    %p215 = scmp.eq.s32.totalorder %s34, 7
    %p216 = por %p214, %p215
    %p218 = scmp.ne.s32.totalorder %s203, %s217
    %p219 = scmp.eq.s32.totalorder %s34, 0
    %p220 = por %p218, %p219
    %s222 = sadd.s32 %s221, 1
    %p225 = scmp.eq.s32.totalorder %s28, 7
    %p226 = scmp.ne.s32.totalorder %s221, %s223
    %p227 = scmp.eq.s32.totalorder %s28, 0
    %p228 = por %p226, %p227
    %p229 = scmp.ne.s32.totalorder %s221, %s223
    %p230 = scmp.eq.s32.totalorder %s33, 7
    %p231 = por %p229, %p230
    %p232 = scmp.ne.s32.totalorder %s223, %s224
    %p233 = scmp.eq.s32.totalorder %s33, 0
    %p234 = por %p232, %p233
    %p235 = scmp.ne.s32.totalorder %s223, %s224
    %p236 = scmp.eq.s32.totalorder %s34, 7
    %p237 = por %p235, %p236
    %p239 = scmp.ne.s32.totalorder %s224, %s238
    %p240 = scmp.eq.s32.totalorder %s34, 0
    %p241 = por %p239, %p240
    %s243 = sadd.s32 %s242, 1
    %p246 = scmp.eq.s32.totalorder %s28, 7
    %p247 = scmp.ne.s32.totalorder %s242, %s244
    %p248 = scmp.eq.s32.totalorder %s28, 0
    %p249 = por %p247, %p248
    %p250 = scmp.ne.s32.totalorder %s242, %s244
    %p251 = scmp.eq.s32.totalorder %s33, 7
    %p252 = por %p250, %p251
    %p253 = scmp.ne.s32.totalorder %s244, %s245
    %p254 = scmp.eq.s32.totalorder %s33, 0
    %p255 = por %p253, %p254
    %p256 = scmp.ne.s32.totalorder %s244, %s245
    %p257 = scmp.eq.s32.totalorder %s34, 7
    %p258 = por %p256, %p257
    %p260 = scmp.ne.s32.totalorder %s245, %s259
    %p261 = scmp.eq.s32.totalorder %s34, 0
    %p262 = por %p260, %p261
    %s264 = sadd.s32 %s263, 1
    %p267 = scmp.eq.s32.totalorder %s28, 7
    %p268 = scmp.ne.s32.totalorder %s263, %s265
    %p269 = scmp.eq.s32.totalorder %s28, 0
    %p270 = por %p268, %p269
    %p271 = scmp.ne.s32.totalorder %s263, %s265
    %p272 = scmp.eq.s32.totalorder %s33, 7
    %p273 = por %p271, %p272
    %p274 = scmp.ne.s32.totalorder %s265, %s266
    %p275 = scmp.eq.s32.totalorder %s33, 0
    %p276 = por %p274, %p275
    %p277 = scmp.ne.s32.totalorder %s265, %s266
    %p278 = scmp.eq.s32.totalorder %s34, 7
    %p279 = por %p277, %p278
    %p281 = scmp.ne.s32.totalorder %s266, %s280
    %p282 = scmp.eq.s32.totalorder %s34, 0
    %p283 = por %p281, %p282
    %s285 = sadd.s32 %s284, 1
    %p288 = scmp.eq.s32.totalorder %s28, 7
    %p289 = scmp.ne.s32.totalorder %s284, %s286
    %p290 = scmp.eq.s32.totalorder %s28, 0
    %p291 = por %p289, %p290
    %p292 = scmp.ne.s32.totalorder %s284, %s286
    %p293 = scmp.eq.s32.totalorder %s33, 7
    %p294 = por %p292, %p293
    %p295 = scmp.ne.s32.totalorder %s286, %s287
    %p296 = scmp.eq.s32.totalorder %s33, 0
    %p297 = por %p295, %p296
    %p298 = scmp.ne.s32.totalorder %s286, %s287
    %p299 = scmp.eq.s32.totalorder %s34, 7
    %p300 = por %p298, %p299
    %p302 = scmp.ne.s32.totalorder %s287, %s301
    %p303 = scmp.eq.s32.totalorder %s34, 0
    %p304 = por %p302, %p303
    %s306 = sadd.s32 %s305, 1
    %p309 = scmp.eq.s32.totalorder %s28, 7
    %p310 = scmp.ne.s32.totalorder %s305, %s307
    %p311 = scmp.eq.s32.totalorder %s28, 0
    %p312 = por %p310, %p311
    %p313 = scmp.ne.s32.totalorder %s305, %s307
    %p314 = scmp.eq.s32.totalorder %s33, 7
    %p315 = por %p313, %p314
    %p316 = scmp.ne.s32.totalorder %s307, %s308
    %p317 = scmp.eq.s32.totalorder %s33, 0
    %p318 = por %p316, %p317
    %p319 = scmp.ne.s32.totalorder %s307, %s308
    %p320 = scmp.eq.s32.totalorder %s34, 7
    %p321 = por %p319, %p320
    %p323 = scmp.ne.s32.totalorder %s308, %s322
    %p324 = scmp.eq.s32.totalorder %s34, 0
    %p325 = por %p323, %p324
    %s327 = sadd.s32 %s326, 1
    %p330 = scmp.eq.s32.totalorder %s28, 7
    %p331 = scmp.ne.s32.totalorder %s326, %s328
    %p332 = scmp.eq.s32.totalorder %s28, 0
    %p333 = por %p331, %p332
    %p334 = scmp.ne.s32.totalorder %s326, %s328
    %p335 = scmp.eq.s32.totalorder %s33, 7
    %p336 = por %p334, %p335
    %p337 = scmp.ne.s32.totalorder %s328, %s329
    %p338 = scmp.eq.s32.totalorder %s33, 0
    %p339 = por %p337, %p338
    %p340 = scmp.ne.s32.totalorder %s328, %s329
    %p341 = scmp.eq.s32.totalorder %s34, 7
    %p342 = por %p340, %p341
    %p344 = scmp.ne.s32.totalorder %s329, %s343
    %p345 = scmp.eq.s32.totalorder %s34, 0
    %p346 = por %p344, %p345
    %s348 = sadd.s32 %s347, 1
    %p351 = scmp.eq.s32.totalorder %s28, 7
    %p352 = scmp.ne.s32.totalorder %s347, %s349
    %p353 = scmp.eq.s32.totalorder %s28, 0
    %p354 = por %p352, %p353
    %p355 = scmp.ne.s32.totalorder %s347, %s349
    %p356 = scmp.eq.s32.totalorder %s33, 7
    %p357 = por %p355, %p356
    %p358 = scmp.ne.s32.totalorder %s349, %s350
    %p359 = scmp.eq.s32.totalorder %s33, 0
    %p360 = por %p358, %p359
    %p361 = scmp.ne.s32.totalorder %s349, %s350
    %p362 = scmp.eq.s32.totalorder %s34, 7
    %p363 = por %p361, %p362
    %p365 = scmp.ne.s32.totalorder %s350, %s364
    %p366 = scmp.eq.s32.totalorder %s34, 0
    %p367 = por %p365, %p366
    %s369 = sadd.s32 %s368, 1
    %p372 = scmp.eq.s32.totalorder %s28, 7
    %p373 = scmp.ne.s32.totalorder %s368, %s370
    %p374 = scmp.eq.s32.totalorder %s28, 0
    %p375 = por %p373, %p374
    %p376 = scmp.ne.s32.totalorder %s368, %s370
    %p377 = scmp.eq.s32.totalorder %s33, 7
    %p378 = por %p376, %p377
    %p379 = scmp.ne.s32.totalorder %s370, %s371
    %p380 = scmp.eq.s32.totalorder %s33, 0
    %p381 = por %p379, %p380
    %p382 = scmp.ne.s32.totalorder %s370, %s371
    %p383 = scmp.eq.s32.totalorder %s34, 7
    %p384 = por %p382, %p383
    %p386 = scmp.ne.s32.totalorder %s371, %s385
    %p387 = scmp.eq.s32.totalorder %s34, 0
    %p388 = por %p386, %p387
    %s390 = sadd.s32 %s389, 1
    %p393 = scmp.eq.s32.totalorder %s28, 7
    %p394 = scmp.ne.s32.totalorder %s389, %s391
    %p395 = scmp.eq.s32.totalorder %s28, 0
    %p396 = por %p394, %p395
    %p397 = scmp.ne.s32.totalorder %s389, %s391
    %p398 = scmp.eq.s32.totalorder %s33, 7
    %p399 = por %p397, %p398
    %p400 = scmp.ne.s32.totalorder %s391, %s392
    %p401 = scmp.eq.s32.totalorder %s33, 0
    %p402 = por %p400, %p401
    %p403 = scmp.ne.s32.totalorder %s391, %s392
    %p404 = scmp.eq.s32.totalorder %s34, 7
    %p405 = por %p403, %p404
    %p407 = scmp.ne.s32.totalorder %s392, %s406
    %p408 = scmp.eq.s32.totalorder %s34, 0
    %p409 = por %p407, %p408
    %s411 = sadd.s32 %s410, 1
    %p414 = scmp.eq.s32.totalorder %s28, 7
    %p415 = scmp.ne.s32.totalorder %s410, %s412
    %p416 = scmp.eq.s32.totalorder %s28, 0
    %p417 = por %p415, %p416
    %p418 = scmp.ne.s32.totalorder %s410, %s412
    %p419 = scmp.eq.s32.totalorder %s33, 7
    %p420 = por %p418, %p419
    %p421 = scmp.ne.s32.totalorder %s412, %s413
    %p422 = scmp.eq.s32.totalorder %s33, 0
    %p423 = por %p421, %p422
    %p424 = scmp.ne.s32.totalorder %s412, %s413
    %p425 = scmp.eq.s32.totalorder %s34, 7
    %p426 = por %p424, %p425
    %p428 = scmp.ne.s32.totalorder %s413, %s427
    %p429 = scmp.eq.s32.totalorder %s34, 0
    %p430 = por %p428, %p429
    %s432 = sadd.s32 %s431, 1
    %p435 = scmp.eq.s32.totalorder %s28, 7
    %p436 = scmp.ne.s32.totalorder %s431, %s433
    %p437 = scmp.eq.s32.totalorder %s28, 0
    %p438 = por %p436, %p437
    %p439 = scmp.ne.s32.totalorder %s431, %s433
    %p440 = scmp.eq.s32.totalorder %s33, 7
    %p441 = por %p439, %p440
    %p442 = scmp.ne.s32.totalorder %s433, %s434
    %p443 = scmp.eq.s32.totalorder %s33, 0
    %p444 = por %p442, %p443
    %p445 = scmp.ne.s32.totalorder %s433, %s434
    %p446 = scmp.eq.s32.totalorder %s34, 7
    %p447 = por %p445, %p446
    %p449 = scmp.ne.s32.totalorder %s434, %s448
    %p450 = scmp.eq.s32.totalorder %s34, 0
    %p451 = por %p449, %p450
    %s453 = sadd.s32 %s452, 1
    %p456 = scmp.eq.s32.totalorder %s28, 7
    %p457 = scmp.ne.s32.totalorder %s452, %s454
    %p458 = scmp.eq.s32.totalorder %s28, 0
    %p459 = por %p457, %p458
    %p460 = scmp.ne.s32.totalorder %s452, %s454
    %p461 = scmp.eq.s32.totalorder %s33, 7
    %p462 = por %p460, %p461
    %p463 = scmp.ne.s32.totalorder %s454, %s455
    %p464 = scmp.eq.s32.totalorder %s33, 0
    %p465 = por %p463, %p464
    %p466 = scmp.ne.s32.totalorder %s454, %s455
    %p467 = scmp.eq.s32.totalorder %s34, 7
    %p468 = por %p466, %p467
    %p470 = scmp.ne.s32.totalorder %s455, %s469
    %p471 = scmp.eq.s32.totalorder %s34, 0
    %p472 = por %p470, %p471
    %s474 = sadd.s32 %s473, 1
    %p477 = scmp.eq.s32.totalorder %s28, 7
    %p478 = scmp.ne.s32.totalorder %s473, %s475
    %p479 = scmp.eq.s32.totalorder %s28, 0
    %p480 = por %p478, %p479
    %p481 = scmp.ne.s32.totalorder %s473, %s475
    %p482 = scmp.eq.s32.totalorder %s33, 7
    %p483 = por %p481, %p482
    %p484 = scmp.ne.s32.totalorder %s475, %s476
    %p485 = scmp.eq.s32.totalorder %s33, 0
    %p486 = por %p484, %p485
    %p487 = scmp.ne.s32.totalorder %s475, %s476
    %p488 = scmp.eq.s32.totalorder %s34, 7
    %p489 = por %p487, %p488
    %p491 = scmp.ne.s32.totalorder %s476, %s490
    %p492 = scmp.eq.s32.totalorder %s34, 0
    %p493 = por %p491, %p492
    %s495 = sadd.s32 %s494, 1
    %p498 = scmp.eq.s32.totalorder %s28, 7
    %p499 = scmp.ne.s32.totalorder %s494, %s496
    %p500 = scmp.eq.s32.totalorder %s28, 0
    %p501 = por %p499, %p500
    %p502 = scmp.ne.s32.totalorder %s494, %s496
    %p503 = scmp.eq.s32.totalorder %s33, 7
    %p504 = por %p502, %p503
    %p505 = scmp.ne.s32.totalorder %s496, %s497
    %p506 = scmp.eq.s32.totalorder %s33, 0
    %p507 = por %p505, %p506
    %p508 = scmp.ne.s32.totalorder %s496, %s497
    %p509 = scmp.eq.s32.totalorder %s34, 7
    %p510 = por %p508, %p509
    %p512 = scmp.ne.s32.totalorder %s497, %s511
    %p513 = scmp.eq.s32.totalorder %s34, 0
    %p514 = por %p512, %p513
    %s515 = ssub.s32 %s35, %s47
    %s516 = ssub.s32 %s36, %s43
    %s517 = sor.u32 %s515, %s516
    %p518 = scmp.eq.s32.totalorder %s517, 0
    %s520 = sadd.s32 %s519, 1
    %s521 = scalar_select %p518, %s519, %s520
    %p524 = pneg %p518
    %p525 = scmp.eq.s32.totalorder %s28, 7
    %p526 = por %p524, %p525
    %p527 = scmp.ne.s32.totalorder %s519, %s522
    %p528 = scmp.eq.s32.totalorder %s28, 0
    %p529 = por %p527, %p528
    %p530 = scmp.ne.s32.totalorder %s519, %s522
    %p531 = scmp.eq.s32.totalorder %s33, 7
    %p532 = por %p530, %p531
    %p533 = scmp.ne.s32.totalorder %s522, %s523
    %p534 = scmp.eq.s32.totalorder %s33, 0
    %p535 = por %p533, %p534
    %p536 = scmp.ne.s32.totalorder %s522, %s523
    %p537 = scmp.eq.s32.totalorder %s34, 7
    %p538 = por %p536, %p537
    %p540 = scmp.ne.s32.totalorder %s523, %s539
    %p541 = scmp.eq.s32.totalorder %s34, 0
    %p542 = por %p540, %p541
    %p543 = scmp.le.s32.totalorder 1, %s28
    %p544 = scmp.lt.s32.totalorder %s28, 9
    %p545 = pnand %p543, %p544
    %p546 = pneg %p545
    // Predicated region
    $region9: #{dcrnn_decoder_forward.1} parent=5 // pred_check
      _
    $region10: #{dcrnn_decoder_forward.1} parent=5 // pred_check_branch
      %548 = sbr.rel (%p545) target = $region12
    $region11: #{dcrnn_decoder_forward.1} parent=5 // pred_region
      %s549 = ssub.s32 %s28, 1
      // Predicated region
      $region13: #{dcrnn_decoder_forward.1} parent=11 // pred_check
        %p550 = pneg %p87
      $region14: #{dcrnn_decoder_forward.1} parent=11 // pred_check_branch
        %552 = sbr.rel (%p550) target = $region16
      $region15: #{dcrnn_decoder_forward.1} parent=11 // pred_region
        _
      $region16: #{dcrnn_decoder_forward.1} parent=11 // pred_fallthru
        _
      // Predicated region
      $region17: #{dcrnn_decoder_forward.1} parent=11 // pred_check
        %p553 = pneg %p108
      $region18: #{dcrnn_decoder_forward.1} parent=11 // pred_check_branch
        %555 = sbr.rel (%p553) target = $region20
      $region19: #{dcrnn_decoder_forward.1} parent=11 // pred_region
        _
      $region20: #{dcrnn_decoder_forward.1} parent=11 // pred_fallthru
        _
      // Predicated region
      $region21: #{dcrnn_decoder_forward.1} parent=11 // pred_check
        %p556 = pneg %p129
      $region22: #{dcrnn_decoder_forward.1} parent=11 // pred_check_branch
        %558 = sbr.rel (%p556) target = $region24
      $region23: #{dcrnn_decoder_forward.1} parent=11 // pred_region
        _
      $region24: #{dcrnn_decoder_forward.1} parent=11 // pred_fallthru
        _
      // Predicated region
      $region25: #{dcrnn_decoder_forward.1} parent=11 // pred_check
        %p559 = pneg %p150
      $region26: #{dcrnn_decoder_forward.1} parent=11 // pred_check_branch
        %561 = sbr.rel (%p559) target = $region28
      $region27: #{dcrnn_decoder_forward.1} parent=11 // pred_region
        _
      $region28: #{dcrnn_decoder_forward.1} parent=11 // pred_fallthru
        _
      // Predicated region
      $region29: #{dcrnn_decoder_forward.1} parent=11 // pred_check
        %p562 = pneg %p171
      $region30: #{dcrnn_decoder_forward.1} parent=11 // pred_check_branch
        %564 = sbr.rel (%p562) target = $region32
      $region31: #{dcrnn_decoder_forward.1} parent=11 // pred_region
        _
      $region32: #{dcrnn_decoder_forward.1} parent=11 // pred_fallthru
        _
      // Predicated region
      $region33: #{dcrnn_decoder_forward.1} parent=11 // pred_check
        %p565 = pneg %p192
      $region34: #{dcrnn_decoder_forward.1} parent=11 // pred_check_branch
        %567 = sbr.rel (%p565) target = $region36
      $region35: #{dcrnn_decoder_forward.1} parent=11 // pred_region
        _
      $region36: #{dcrnn_decoder_forward.1} parent=11 // pred_fallthru
        _
      // Predicated region
      $region37: #{dcrnn_decoder_forward.1} parent=11 // pred_check
        %p568 = pneg %p213
      $region38: #{dcrnn_decoder_forward.1} parent=11 // pred_check_branch
        %570 = sbr.rel (%p568) target = $region40
      $region39: #{dcrnn_decoder_forward.1} parent=11 // pred_region
        _
      $region40: #{dcrnn_decoder_forward.1} parent=11 // pred_fallthru
        _
      // Predicated region
      $region41: #{dcrnn_decoder_forward.1} parent=11 // pred_check
        %p571 = pneg %p234
      $region42: #{dcrnn_decoder_forward.1} parent=11 // pred_check_branch
        %573 = sbr.rel (%p571) target = $region44
      $region43: #{dcrnn_decoder_forward.1} parent=11 // pred_region
        _
      $region44: #{dcrnn_decoder_forward.1} parent=11 // pred_fallthru
        _
      // Predicated region
      $region45: #{dcrnn_decoder_forward.1} parent=11 // pred_check
        %p574 = pneg %p255
      $region46: #{dcrnn_decoder_forward.1} parent=11 // pred_check_branch
        %576 = sbr.rel (%p574) target = $region48
      $region47: #{dcrnn_decoder_forward.1} parent=11 // pred_region
        _
      $region48: #{dcrnn_decoder_forward.1} parent=11 // pred_fallthru
        _
      // Predicated region
      $region49: #{dcrnn_decoder_forward.1} parent=11 // pred_check
        %p577 = pneg %p276
      $region50: #{dcrnn_decoder_forward.1} parent=11 // pred_check_branch
        %579 = sbr.rel (%p577) target = $region52
      $region51: #{dcrnn_decoder_forward.1} parent=11 // pred_region
        _
      $region52: #{dcrnn_decoder_forward.1} parent=11 // pred_fallthru
        _
      // Predicated region
      $region53: #{dcrnn_decoder_forward.1} parent=11 // pred_check
        %p580 = pneg %p297
      $region54: #{dcrnn_decoder_forward.1} parent=11 // pred_check_branch
        %582 = sbr.rel (%p580) target = $region56
      $region55: #{dcrnn_decoder_forward.1} parent=11 // pred_region
        _
      $region56: #{dcrnn_decoder_forward.1} parent=11 // pred_fallthru
        _
      // Predicated region
      $region57: #{dcrnn_decoder_forward.1} parent=11 // pred_check
        %p583 = pneg %p318
      $region58: #{dcrnn_decoder_forward.1} parent=11 // pred_check_branch
        %585 = sbr.rel (%p583) target = $region60
      $region59: #{dcrnn_decoder_forward.1} parent=11 // pred_region
        _
      $region60: #{dcrnn_decoder_forward.1} parent=11 // pred_fallthru
        _
      // Predicated region
      $region61: #{dcrnn_decoder_forward.1} parent=11 // pred_check
        %p586 = pneg %p339
      $region62: #{dcrnn_decoder_forward.1} parent=11 // pred_check_branch
        %588 = sbr.rel (%p586) target = $region64
      $region63: #{dcrnn_decoder_forward.1} parent=11 // pred_region
        _
      $region64: #{dcrnn_decoder_forward.1} parent=11 // pred_fallthru
        _
      // Predicated region
      $region65: #{dcrnn_decoder_forward.1} parent=11 // pred_check
        %p589 = pneg %p360
      $region66: #{dcrnn_decoder_forward.1} parent=11 // pred_check_branch
        %591 = sbr.rel (%p589) target = $region68
      $region67: #{dcrnn_decoder_forward.1} parent=11 // pred_region
        _
      $region68: #{dcrnn_decoder_forward.1} parent=11 // pred_fallthru
        _
      // Predicated region
      $region69: #{dcrnn_decoder_forward.1} parent=11 // pred_check
        %p592 = pneg %p381
      $region70: #{dcrnn_decoder_forward.1} parent=11 // pred_check_branch
        %594 = sbr.rel (%p592) target = $region72
      $region71: #{dcrnn_decoder_forward.1} parent=11 // pred_region
        _
      $region72: #{dcrnn_decoder_forward.1} parent=11 // pred_fallthru
        _
      // Predicated region
      $region73: #{dcrnn_decoder_forward.1} parent=11 // pred_check
        %p595 = pneg %p402
      $region74: #{dcrnn_decoder_forward.1} parent=11 // pred_check_branch
        %597 = sbr.rel (%p595) target = $region76
      $region75: #{dcrnn_decoder_forward.1} parent=11 // pred_region
        _
      $region76: #{dcrnn_decoder_forward.1} parent=11 // pred_fallthru
        _
      // Predicated region
      $region77: #{dcrnn_decoder_forward.1} parent=11 // pred_check
        %p598 = pneg %p423
      $region78: #{dcrnn_decoder_forward.1} parent=11 // pred_check_branch
        %600 = sbr.rel (%p598) target = $region80
      $region79: #{dcrnn_decoder_forward.1} parent=11 // pred_region
        _
      $region80: #{dcrnn_decoder_forward.1} parent=11 // pred_fallthru
        _
      // Predicated region
      $region81: #{dcrnn_decoder_forward.1} parent=11 // pred_check
        %p601 = pneg %p444
      $region82: #{dcrnn_decoder_forward.1} parent=11 // pred_check_branch
        %603 = sbr.rel (%p601) target = $region84
      $region83: #{dcrnn_decoder_forward.1} parent=11 // pred_region
        _
      $region84: #{dcrnn_decoder_forward.1} parent=11 // pred_fallthru
        _
      // Predicated region
      $region85: #{dcrnn_decoder_forward.1} parent=11 // pred_check
        %p604 = pneg %p465
      $region86: #{dcrnn_decoder_forward.1} parent=11 // pred_check_branch
        %606 = sbr.rel (%p604) target = $region88
      $region87: #{dcrnn_decoder_forward.1} parent=11 // pred_region
        _
      $region88: #{dcrnn_decoder_forward.1} parent=11 // pred_fallthru
        _
      // Predicated region
      $region89: #{dcrnn_decoder_forward.1} parent=11 // pred_check
        %p607 = pneg %p486
      $region90: #{dcrnn_decoder_forward.1} parent=11 // pred_check_branch
        %609 = sbr.rel (%p607) target = $region92
      $region91: #{dcrnn_decoder_forward.1} parent=11 // pred_region
        _
      $region92: #{dcrnn_decoder_forward.1} parent=11 // pred_fallthru
        _
      // Predicated region
      $region93: #{dcrnn_decoder_forward.1} parent=11 // pred_check
        %p610 = pneg %p507
      $region94: #{dcrnn_decoder_forward.1} parent=11 // pred_check_branch
        %612 = sbr.rel (%p610) target = $region96
      $region95: #{dcrnn_decoder_forward.1} parent=11 // pred_region
        _
      $region96: #{dcrnn_decoder_forward.1} parent=11 // pred_fallthru
        _
    $region12: #{dcrnn_decoder_forward.1} parent=5 // pred_fallthru
      _
    %p613 = scmp.lt.s32.totalorder %s28, 8
    // Predicated region
    $region97: #{dcrnn_decoder_forward.1} parent=5 // pred_check
      %p614 = pneg %p613
    $region98: #{dcrnn_decoder_forward.1} parent=5 // pred_check_branch
      %616 = sbr.rel (%p614) target = $region100
    $region99: #{dcrnn_decoder_forward.1} parent=5 // pred_region
      // Predicated region
      $region101: #{dcrnn_decoder_forward.1} parent=99 // pred_check
        %p617 = pneg %p60
      $region102: #{dcrnn_decoder_forward.1} parent=99 // pred_check_branch
        %619 = sbr.rel (%p617) target = $region104
      $region103: #{dcrnn_decoder_forward.1} parent=99 // pred_region
        %p620 = scmp.lt.s32.totalorder %s35, 1
        %s621 = scalar_select %p620, %s35, 1
        %s622 = smul.addr %s621, 8
        %s623 = smul.addr %s622, 8
        %s624 = scalar_lea.vmem %s0, %s623
      $region104: #{dcrnn_decoder_forward.1} parent=99 // pred_fallthru
        _
    $region100: #{dcrnn_decoder_forward.1} parent=5 // pred_fallthru
      _
    %p625 = scmp.le.s32.totalorder 1, %s28
    %p626 = scmp.lt.s32.totalorder %s28, 9
    %p627 = pnand %p625, %p626
    %p628 = pneg %p627
    // Predicated region
    $region105: #{dcrnn_decoder_forward.1} parent=5 // pred_check
      _
    $region106: #{dcrnn_decoder_forward.1} parent=5 // pred_check_branch
      %630 = sbr.rel (%p627) target = $region108
    $region107: #{dcrnn_decoder_forward.1} parent=5 // pred_region
      %s631 = ssub.s32 %s28, 1
      %p632 = scmp.lt.s32.totalorder %s37, 1
      %s633 = scalar_select %p632, %s37, 1
      %s634 = smul.addr %s633, 8
      %s635 = smul.addr %s634, 8
      %s636 = scalar_lea.vmem %s0, %s635
      %p637 = pneg %p66
      %p638 = pneg %p63
      %p639 = pneg %p87
      %p640 = pneg %p84
      %p641 = pneg %p108
      %p642 = pneg %p105
      %p643 = pneg %p129
      %p644 = pneg %p126
      %p645 = pneg %p150
      %p646 = pneg %p147
      %p647 = pneg %p171
      %p648 = pneg %p168
      %p649 = pneg %p192
      %p650 = pneg %p189
      %p651 = pneg %p213
      %p652 = pneg %p210
      %p653 = pneg %p234
      %p654 = pneg %p231
      %p655 = pneg %p255
      %p656 = pneg %p252
      %p657 = pneg %p276
      %p658 = pneg %p273
      %p659 = pneg %p297
      %p660 = pneg %p294
      %p661 = pneg %p318
      %p662 = pneg %p315
      %p663 = pneg %p339
      %p664 = pneg %p336
      %p665 = pneg %p360
      %p666 = pneg %p357
      %p667 = pneg %p381
      %p668 = pneg %p378
      %p669 = pneg %p402
      %p670 = pneg %p399
      %p671 = pneg %p423
      %p672 = pneg %p420
      %p673 = pneg %p444
      %p674 = pneg %p441
      %p675 = pneg %p465
      %p676 = pneg %p462
      %p677 = pneg %p486
      %p678 = pneg %p483
      %p679 = pneg %p507
      %p680 = pneg %p504
      %p681 = pneg %p535
      %p682 = pneg %p532
      %p683 = scmp.lt.s32.totalorder %s37, 1
      %s684 = scalar_select %p683, %s37, 1
      %p685 = scmp.lt.s32.totalorder %s38, 3
      %s686 = scalar_select %p685, %s38, 3
      %s687 = smul.addr %s686, 4
      %s688 = smul.addr %s684, 16
      %s689 = sadd.s32 %s687, %s688
      %s690 = smul.addr %s689, 8
      %s691 = scalar_lea.vmem %s22, %s690
      %p692 = scmp.lt.s32.totalorder %s37, 1
      %s693 = scalar_select %p692, %s37, 1
      %s694 = smul.addr %s693, 8
      %s695 = smul.addr %s694, 8
      %s696 = scalar_lea.vmem %s0, %s695
      %p697 = scmp.lt.s32.totalorder %s37, 1
      %s698 = scalar_select %p697, %s37, 1
      %p699 = scmp.lt.s32.totalorder %s38, 3
      %s700 = scalar_select %p699, %s38, 3
      %s701 = smul.addr %s700, 4
      %s702 = smul.addr %s698, 16
      %s703 = sadd.s32 %s701, %s702
      %s704 = smul.addr %s703, 8
      %s705 = scalar_lea.vmem %s22, %s704
      %p706 = scmp.eq.s32.totalorder %s38, 0
      // Predicated region
      $region109: #{dcrnn_decoder_forward.1} parent=107 // pred_check
        %p707 = pneg %p706
      $region110: #{dcrnn_decoder_forward.1} parent=107 // pred_check_branch
        %709 = sbr.rel (%p707) target = $region112
      $region111: #{dcrnn_decoder_forward.1} parent=107 // pred_region
        %v710 = vld [vmem:[%s696] sm:$0xff]
        %v711 = vld [vmem:[%s696 + $0x8] sm:$0xff]
        %v712 = vld [vmem:[%s696 + $0x10] sm:$0xff]
        %v713 = vld [vmem:[%s696 + $0x18] sm:$0xff]
        %v714 = vld [vmem:[%s696 + $0x20] sm:$0xff]
        %v715 = vld [vmem:[%s696 + $0x28] sm:$0xff]
        %v716 = vld [vmem:[%s696 + $0x30] sm:$0xff]
        %v717 = vld [vmem:[%s696 + $0x38] sm:$0xff]
        %vm718 = vcmask 261120
        %719 = vst.msk [vmem:[#allocation2] sm:$0xff] %vm718, %v710
        %720 = vst.msk [vmem:[#allocation2 + $0x8] sm:$0xff] %vm718, %v711
        %721 = vst.msk [vmem:[#allocation2 + $0x10] sm:$0xff] %vm718, %v712
        %722 = vst.msk [vmem:[#allocation2 + $0x18] sm:$0xff] %vm718, %v713
        %723 = vst.msk [vmem:[#allocation2 + $0x20] sm:$0xff] %vm718, %v714
        %724 = vst.msk [vmem:[#allocation2 + $0x28] sm:$0xff] %vm718, %v715
        %725 = vst.msk [vmem:[#allocation2 + $0x30] sm:$0xff] %vm718, %v716
        %726 = vst.msk [vmem:[#allocation2 + $0x38] sm:$0xff] %vm718, %v717
        %vm727 = vcmask 15360
        %728 = vst.msk [vmem:[#allocation3] sm:$0xff] %vm727, 0.0
        %729 = vst.msk [vmem:[#allocation3 + $0x8] sm:$0xff] %vm727, 0.0
        %730 = vst.msk [vmem:[#allocation3 + $0x10] sm:$0xff] %vm727, 0.0
        %731 = vst.msk [vmem:[#allocation3 + $0x18] sm:$0xff] %vm727, 0.0
      $region112: #{dcrnn_decoder_forward.1} parent=107 // pred_fallthru
        _
      %v732 = vld [vmem:[%s1] sm:$0xff]
      %v733 = vld [vmem:[%s1 + $0x8] sm:$0xff]
      %s734 = scalar_lea.vmem %s1, 16
      %v735 = vld [vmem:[%s734] sm:$0xff]
      %v736 = vld [vmem:[%s734 + $0x8] sm:$0xff]
      %v737 = vld [vmem:[#allocation3] sm:$0xff]
      %v738 = vld [vmem:[#allocation3 + $0x8] sm:$0xff]
      %s739 = scalar_lea.vmem [#allocation3], 16
      %v740 = vld [vmem:[%s739] sm:$0xff]
      %v741 = vld [vmem:[%s739 + $0x8] sm:$0xff]
      %v742 = vld [vmem:[%s2] sm:$0xff]
      %v743 = vld [vmem:[%s2 + $0x8] sm:$0x3]
      %v744 = vld [vmem:[%s3] sm:$0xff]
      %v745 = vld [vmem:[%s3 + $0x8] sm:$0x3]
      %v746 = vld [vmem:[%s4] sm:$0xff]
      %v747 = vld [vmem:[%s4 + $0x8] sm:$0x3]
      %v748 = vld [vmem:[%s5] sm:$0xff]
      %v749 = vld [vmem:[%s5 + $0x8] sm:$0xff]
      %v750 = vld [vmem:[%s5 + $0x10] sm:$0xff]
      %v751 = vld [vmem:[%s5 + $0x18] sm:$0xff]
      %v752 = vld [vmem:[%s5 + $0x20] sm:$0xff]
      %v753 = vld [vmem:[%s5 + $0x28] sm:$0xff]
      %v754 = vld [vmem:[%s5 + $0x30] sm:$0xff]
      %v755 = vld [vmem:[%s5 + $0x38] sm:$0xff]
      %v756 = vld [vmem:[%s5 + $0x40] sm:$0xff]
      %v757 = vld [vmem:[%s5 + $0x48] sm:$0xff]
      %v758 = vld [vmem:[%s5 + $0x50] sm:$0xff]
      %v759 = vld [vmem:[%s5 + $0x58] sm:$0xff]
      %v760 = vld [vmem:[%s5 + $0x60] sm:$0xff]
      %v761 = vld [vmem:[%s5 + $0x68] sm:$0xff]
      %v762 = vld [vmem:[%s5 + $0x70] sm:$0xff]
      %v763 = vld [vmem:[%s5 + $0x78] sm:$0xff]
      %v764 = vld [vmem:[%s5 + $0x80] sm:$0xff]
      %v765 = vld [vmem:[%s5 + $0x88] sm:$0xff]
      %v766 = vld [vmem:[%s5 + $0x90] sm:$0xff]
      %v767 = vld [vmem:[%s5 + $0x98] sm:$0xff]
      %v768 = vld [vmem:[%s6] sm:$0xff]
      %v769 = vld [vmem:[%s6 + $0x8] sm:$0xff]
      %v770 = vld [vmem:[%s6 + $0x10] sm:$0xff]
      %v771 = vld [vmem:[%s6 + $0x18] sm:$0xff]
      %v772 = vld [vmem:[%s6 + $0x20] sm:$0xff]
      %v773 = vld [vmem:[%s6 + $0x28] sm:$0xff]
      %v774 = vld [vmem:[%s6 + $0x30] sm:$0xff]
      %v775 = vld [vmem:[%s6 + $0x38] sm:$0xff]
      %v776 = vld [vmem:[%s6 + $0x40] sm:$0xff]
      %v777 = vld [vmem:[%s6 + $0x48] sm:$0xff]
      %v778 = vld [vmem:[%s6 + $0x50] sm:$0xff]
      %v779 = vld [vmem:[%s6 + $0x58] sm:$0xff]
      %v780 = vld [vmem:[%s6 + $0x60] sm:$0xff]
      %v781 = vld [vmem:[%s6 + $0x68] sm:$0xff]
      %v782 = vld [vmem:[%s6 + $0x70] sm:$0xff]
      %v783 = vld [vmem:[%s6 + $0x78] sm:$0xff]
      %v784 = vld [vmem:[%s6 + $0x80] sm:$0xff]
      %v785 = vld [vmem:[%s6 + $0x88] sm:$0xff]
      %v786 = vld [vmem:[%s6 + $0x90] sm:$0xff]
      %v787 = vld [vmem:[%s6 + $0x98] sm:$0xff]
      %v788 = vld [vmem:[%s7] sm:$0xff]
      %v789 = vld [vmem:[%s7 + $0x8] sm:$0xff]
      %v790 = vld [vmem:[%s7 + $0x10] sm:$0xff]
      %v791 = vld [vmem:[%s7 + $0x18] sm:$0xff]
      %v792 = vld [vmem:[%s7 + $0x20] sm:$0xff]
      %v793 = vld [vmem:[%s7 + $0x28] sm:$0xff]
      %v794 = vld [vmem:[%s7 + $0x30] sm:$0xff]
      %v795 = vld [vmem:[%s7 + $0x38] sm:$0xff]
      %v796 = vld [vmem:[%s7 + $0x40] sm:$0xff]
      %v797 = vld [vmem:[%s7 + $0x48] sm:$0xff]
      %v798 = vld [vmem:[%s7 + $0x50] sm:$0xff]
      %v799 = vld [vmem:[%s7 + $0x58] sm:$0xff]
      %v800 = vld [vmem:[%s7 + $0x60] sm:$0xff]
      %v801 = vld [vmem:[%s7 + $0x68] sm:$0xff]
      %v802 = vld [vmem:[%s7 + $0x70] sm:$0xff]
      %v803 = vld [vmem:[%s7 + $0x78] sm:$0xff]
      %v804 = vld [vmem:[%s7 + $0x80] sm:$0xff]
      %v805 = vld [vmem:[%s7 + $0x88] sm:$0xff]
      %v806 = vld [vmem:[%s7 + $0x90] sm:$0xff]
      %v807 = vld [vmem:[%s7 + $0x98] sm:$0xff]
      %v808 = vld [vmem:[%s8] sm:$0x1]
      %v809 = vld [vmem:[%s9] sm:$0x1]
      %v810 = vld [vmem:[%s10] sm:$0x1]
      %v811 = vld [vmem:[#allocation2] sm:$0xff]
      %v812 = vld [vmem:[#allocation2 + $0x8] sm:$0xff]
      %s813 = scalar_lea.vmem [#allocation2], 16
      %v814 = vld [vmem:[%s813] sm:$0xff]
      %v815 = vld [vmem:[%s813 + $0x8] sm:$0xff]
      %818 = vrot.lane.b32.xlu0 %v740, 2
      %v819 = vpop.permute.xlu0 %818
      %820 = vrot.lane.b32.xlu0 %v741, 2
      %v821 = vpop.permute.xlu0 %820
      %vm824 = vcmask 15360
      %v825 = vsel %vm824, %v737, %v819
      %v826 = vsel %vm824, %v738, %v821
      %vm827 = vcmask 130048
      %v829 = vsel %vm827, %v732, 0
      %v832 = vsel %vm827, %v733, 0
      %834 = vmatpush.msra.mxu0 0.0
      %835 = vmatpush.msra.mxu0 0.0
      %836 = vmatpush.msra.mxu0 0.0
      %837 = vmatpush.msra.mxu0 0.0
      %838 = vmatpush.msra.mxu0 0.0
      %839 = vmatpush.msra.mxu0 0.0
      %840 = vmatpush.msra.mxu0 0.0
      %841 = vmatpush.msra.mxu0 0.0
      %842 = vmatpush.msra.mxu0 0.0
      %843 = vmatpush.msra.mxu0 0.0
      %844 = vmatpush.msra.mxu0 0.0
      %845 = vmatpush.msra.mxu0 0.0
      %846 = vmatpush.msra.mxu0 0.0
      %847 = vmatpush.msra.mxu0 0.0
      %848 = vmatpush.msra.mxu0 %v826
      %849 = vmatpush.msra.mxu0 %v825
      %850 = vmatmul.f32.gmra.mxu0 %v829
      %v851 = vpop.f32.mrf.mxu0
      %v852 = vadd.f32 0.0, %v851
      %853 = vmatmul.f32.gmra.mxu0 %v832
      %v854 = vpop.f32.mrf.mxu0
      %v855 = vadd.f32 0.0, %v854
      %856 = vdwg.mxu0
      %857 = vmatpush.msra.mxu0 0.0
      %858 = vmatpush.msra.mxu0 0.0
      %859 = vmatpush.msra.mxu0 0.0
      %860 = vmatpush.msra.mxu0 0.0
      %861 = vmatpush.msra.mxu0 0.0
      %862 = vmatpush.msra.mxu0 0.0
      %863 = vmatpush.msra.mxu0 0.0
      %864 = vmatpush.msra.mxu0 0.0
      %865 = vmatpush.msra.mxu0 0.0
      %866 = vmatpush.msra.mxu0 0.0
      %867 = vmatpush.msra.mxu0 0.0
      %868 = vmatpush.msra.mxu0 0.0
      %869 = vmatpush.msra.mxu0 0.0
      %870 = vmatpush.msra.mxu0 0.0
      %871 = vmatpush.msra.mxu0 %v855
      %872 = vmatpush.msra.mxu0 %v852
      %873 = vmatmul.f32.gmra.mxu0 %v829
      %v874 = vpop.f32.mrf.mxu0
      %v875 = vadd.f32 0.0, %v874
      %876 = vmatmul.f32.gmra.mxu0 %v832
      %v877 = vpop.f32.mrf.mxu0
      %v878 = vadd.f32 0.0, %v877
      %879 = vdwg.mxu0
      %v880 = vmul.f32 %v875, 2.0
      %v881 = vmul.f32 %v878, 2.0
      %v882 = vsub.f32 %v880, %v825
      %v883 = vsub.f32 %v881, %v826
      %v885 = vsel %vm827, %v735, 0
      %v888 = vsel %vm827, %v736, 0
      %890 = vmatpush.msra.mxu0 0.0
      %891 = vmatpush.msra.mxu0 0.0
      %892 = vmatpush.msra.mxu0 0.0
      %893 = vmatpush.msra.mxu0 0.0
      %894 = vmatpush.msra.mxu0 0.0
      %895 = vmatpush.msra.mxu0 0.0
      %896 = vmatpush.msra.mxu0 0.0
      %897 = vmatpush.msra.mxu0 0.0
      %898 = vmatpush.msra.mxu0 0.0
      %899 = vmatpush.msra.mxu0 0.0
      %900 = vmatpush.msra.mxu0 0.0
      %901 = vmatpush.msra.mxu0 0.0
      %902 = vmatpush.msra.mxu0 0.0
      %903 = vmatpush.msra.mxu0 0.0
      %904 = vmatpush.msra.mxu0 %v855
      %905 = vmatpush.msra.mxu0 %v852
      %906 = vmatmul.f32.gmra.mxu0 %v885
      %v907 = vpop.f32.mrf.mxu0
      %v908 = vadd.f32 0.0, %v907
      %909 = vmatmul.f32.gmra.mxu0 %v888
      %v910 = vpop.f32.mrf.mxu0
      %v911 = vadd.f32 0.0, %v910
      %912 = vdwg.mxu0
      %913 = vmatpush.msra.mxu0 0.0
      %914 = vmatpush.msra.mxu0 0.0
      %915 = vmatpush.msra.mxu0 0.0
      %916 = vmatpush.msra.mxu0 0.0
      %917 = vmatpush.msra.mxu0 0.0
      %918 = vmatpush.msra.mxu0 0.0
      %919 = vmatpush.msra.mxu0 0.0
      %920 = vmatpush.msra.mxu0 0.0
      %921 = vmatpush.msra.mxu0 0.0
      %922 = vmatpush.msra.mxu0 0.0
      %923 = vmatpush.msra.mxu0 0.0
      %924 = vmatpush.msra.mxu0 0.0
      %925 = vmatpush.msra.mxu0 0.0
      %926 = vmatpush.msra.mxu0 0.0
      %927 = vmatpush.msra.mxu0 %v911
      %928 = vmatpush.msra.mxu0 %v908
      %929 = vmatmul.f32.gmra.mxu0 %v885
      %v930 = vpop.f32.mrf.mxu0
      %v931 = vadd.f32 0.0, %v930
      %932 = vmatmul.f32.gmra.mxu0 %v888
      %v933 = vpop.f32.mrf.mxu0
      %v934 = vadd.f32 0.0, %v933
      %935 = vdwg.mxu0
      %v936 = vmul.f32 %v931, 2.0
      %v937 = vmul.f32 %v934, 2.0
      %v938 = vsub.f32 %v936, %v852
      %v939 = vsub.f32 %v937, %v855
      %942 = vrot.lane.b32.xlu0 %v814, 32
      %v943 = vpop.permute.xlu0 %942
      %944 = vrot.lane.b32.xlu0 %v815, 32
      %v945 = vpop.permute.xlu0 %944
      %vm948 = vcmask 261120
      %v949 = vsel %vm948, %v811, %v943
      %v950 = vsel %vm948, %v812, %v945
      %951 = vmatpush.msra.mxu0 0.0
      %952 = vmatpush.msra.mxu0 0.0
      %953 = vmatpush.msra.mxu0 0.0
      %954 = vmatpush.msra.mxu0 0.0
      %955 = vmatpush.msra.mxu0 0.0
      %956 = vmatpush.msra.mxu0 0.0
      %957 = vmatpush.msra.mxu0 0.0
      %958 = vmatpush.msra.mxu0 0.0
      %959 = vmatpush.msra.mxu0 0.0
      %960 = vmatpush.msra.mxu0 0.0
      %961 = vmatpush.msra.mxu0 0.0
      %962 = vmatpush.msra.mxu0 0.0
      %963 = vmatpush.msra.mxu0 0.0
      %964 = vmatpush.msra.mxu0 0.0
      %965 = vmatpush.msra.mxu0 %v950
      %966 = vmatpush.msra.mxu0 %v949
      %967 = vmatmul.f32.gmra.mxu0 %v829
      %v968 = vpop.f32.mrf.mxu0
      %v969 = vadd.f32 0.0, %v968
      %970 = vmatmul.f32.gmra.mxu0 %v832
      %v971 = vpop.f32.mrf.mxu0
      %v972 = vadd.f32 0.0, %v971
      %973 = vdwg.mxu0
      %974 = vmatpush.msra.mxu0 0.0
      %975 = vmatpush.msra.mxu0 0.0
      %976 = vmatpush.msra.mxu0 0.0
      %977 = vmatpush.msra.mxu0 0.0
      %978 = vmatpush.msra.mxu0 0.0
      %979 = vmatpush.msra.mxu0 0.0
      %980 = vmatpush.msra.mxu0 0.0
      %981 = vmatpush.msra.mxu0 0.0
      %982 = vmatpush.msra.mxu0 0.0
      %983 = vmatpush.msra.mxu0 0.0
      %984 = vmatpush.msra.mxu0 0.0
      %985 = vmatpush.msra.mxu0 0.0
      %986 = vmatpush.msra.mxu0 0.0
      %987 = vmatpush.msra.mxu0 0.0
      %988 = vmatpush.msra.mxu0 %v972
      %989 = vmatpush.msra.mxu0 %v969
      %990 = vmatmul.f32.gmra.mxu0 %v829
      %v991 = vpop.f32.mrf.mxu0
      %v992 = vadd.f32 0.0, %v991
      %993 = vmatmul.f32.gmra.mxu0 %v832
      %v994 = vpop.f32.mrf.mxu0
      %v995 = vadd.f32 0.0, %v994
      %996 = vdwg.mxu0
      %v997 = vmul.f32 %v992, 2.0
      %v998 = vmul.f32 %v995, 2.0
      %v999 = vsub.f32 %v997, %v949
      %v1000 = vsub.f32 %v998, %v950
      %1001 = vmatpush.msra.mxu0 0.0
      %1002 = vmatpush.msra.mxu0 0.0
      %1003 = vmatpush.msra.mxu0 0.0
      %1004 = vmatpush.msra.mxu0 0.0
      %1005 = vmatpush.msra.mxu0 0.0
      %1006 = vmatpush.msra.mxu0 0.0
      %1007 = vmatpush.msra.mxu0 0.0
      %1008 = vmatpush.msra.mxu0 0.0
      %1009 = vmatpush.msra.mxu0 0.0
      %1010 = vmatpush.msra.mxu0 0.0
      %1011 = vmatpush.msra.mxu0 0.0
      %1012 = vmatpush.msra.mxu0 0.0
      %1013 = vmatpush.msra.mxu0 0.0
      %1014 = vmatpush.msra.mxu0 0.0
      %1015 = vmatpush.msra.mxu0 %v972
      %1016 = vmatpush.msra.mxu0 %v969
      %1017 = vmatmul.f32.gmra.mxu0 %v885
      %v1018 = vpop.f32.mrf.mxu0
      %v1019 = vadd.f32 0.0, %v1018
      %1020 = vmatmul.f32.gmra.mxu0 %v888
      %v1021 = vpop.f32.mrf.mxu0
      %v1022 = vadd.f32 0.0, %v1021
      %1023 = vdwg.mxu0
      %1024 = vmatpush.msra.mxu0 0.0
      %1025 = vmatpush.msra.mxu0 0.0
      %1026 = vmatpush.msra.mxu0 0.0
      %1027 = vmatpush.msra.mxu0 0.0
      %1028 = vmatpush.msra.mxu0 0.0
      %1029 = vmatpush.msra.mxu0 0.0
      %1030 = vmatpush.msra.mxu0 0.0
      %1031 = vmatpush.msra.mxu0 0.0
      %1032 = vmatpush.msra.mxu0 0.0
      %1033 = vmatpush.msra.mxu0 0.0
      %1034 = vmatpush.msra.mxu0 0.0
      %1035 = vmatpush.msra.mxu0 0.0
      %1036 = vmatpush.msra.mxu0 0.0
      %1037 = vmatpush.msra.mxu0 0.0
      %1038 = vmatpush.msra.mxu0 %v1022
      %1039 = vmatpush.msra.mxu0 %v1019
      %1040 = vmatmul.f32.gmra.mxu0 %v885
      %v1041 = vpop.f32.mrf.mxu0
      %v1042 = vadd.f32 0.0, %v1041
      %1043 = vmatmul.f32.gmra.mxu0 %v888
      %v1044 = vpop.f32.mrf.mxu0
      %v1045 = vadd.f32 0.0, %v1044
      %1046 = vdwg.mxu0
      %v1047 = vmul.f32 %v1042, 2.0
      %v1048 = vmul.f32 %v1045, 2.0
      %v1049 = vsub.f32 %v1047, %v969
      %v1050 = vsub.f32 %v1048, %v972
      %1053 = vrot.lane.b32.xlu0 %v852, 2
      %v1054 = vpop.permute.xlu0 %1053
      %1055 = vrot.lane.b32.xlu0 %v855, 2
      %v1056 = vpop.permute.xlu0 %1055
      %1061 = vrot.lane.b32.xlu0 %v882, 4
      %v1062 = vpop.permute.xlu0 %1061
      %1063 = vrot.lane.b32.xlu0 %v883, 4
      %v1064 = vpop.permute.xlu0 %1063
      %1069 = vrot.lane.b32.xlu0 %v908, 6
      %v1070 = vpop.permute.xlu0 %1069
      %1071 = vrot.lane.b32.xlu0 %v911, 6
      %v1072 = vpop.permute.xlu0 %1071
      %1077 = vrot.lane.b32.xlu0 %v938, 8
      %v1078 = vpop.permute.xlu0 %1077
      %1079 = vrot.lane.b32.xlu0 %v939, 8
      %v1080 = vpop.permute.xlu0 %1079
      %v1083 = vsel %vm824, %v825, %v1054
      %v1084 = vsel %vm824, %v826, %v1056
      %vm1085 = vcmask 31744
      %v1086 = vsel %vm1085, %v1083, %v1062
      %v1087 = vsel %vm1085, %v1084, %v1064
      %vm1088 = vcmask 48128
      %v1089 = vsel %vm1088, %v1086, %v1070
      %v1090 = vsel %vm1088, %v1087, %v1072
      %vm1091 = vcmask 64512
      %v1092 = vsel %vm1091, %v1089, %v1078
      %v1093 = vsel %vm1091, %v1090, %v1080
      %1096 = vrot.lane.b32.xlu0 %v825, 126
      %v1097 = vpop.permute.xlu0 %1096
      %1098 = vrot.lane.b32.xlu0 %v826, 126
      %v1099 = vpop.permute.xlu0 %1098
      %1102 = vrot.lane.b32.xlu0 %v882, 2
      %v1103 = vpop.permute.xlu0 %1102
      %1104 = vrot.lane.b32.xlu0 %v883, 2
      %v1105 = vpop.permute.xlu0 %1104
      %1108 = vrot.lane.b32.xlu0 %v908, 4
      %v1109 = vpop.permute.xlu0 %1108
      %1110 = vrot.lane.b32.xlu0 %v911, 4
      %v1111 = vpop.permute.xlu0 %1110
      %1114 = vrot.lane.b32.xlu0 %v938, 6
      %v1115 = vpop.permute.xlu0 %1114
      %1116 = vrot.lane.b32.xlu0 %v939, 6
      %v1117 = vpop.permute.xlu0 %1116
      %v1120 = vsel %vm824, %v1097, %v852
      %v1121 = vsel %vm824, %v1099, %v855
      %v1122 = vsel %vm1085, %v1120, %v1103
      %v1123 = vsel %vm1085, %v1121, %v1105
      %v1124 = vsel %vm1088, %v1122, %v1109
      %v1125 = vsel %vm1088, %v1123, %v1111
      %v1126 = vsel %vm1091, %v1124, %v1115
      %v1127 = vsel %vm1091, %v1125, %v1117
      %1130 = vrot.lane.b32.xlu0 %v969, 32
      %v1131 = vpop.permute.xlu0 %1130
      %1132 = vrot.lane.b32.xlu0 %v972, 32
      %v1133 = vpop.permute.xlu0 %1132
      %1138 = vrot.lane.b32.xlu0 %v999, 64
      %v1139 = vpop.permute.xlu0 %1138
      %1140 = vrot.lane.b32.xlu0 %v1000, 64
      %v1141 = vpop.permute.xlu0 %1140
      %1146 = vrot.lane.b32.xlu0 %v1019, 96
      %v1147 = vpop.permute.xlu0 %1146
      %1148 = vrot.lane.b32.xlu0 %v1022, 96
      %v1149 = vpop.permute.xlu0 %1148
      %v1152 = vsel %vm948, %v949, %v1131
      %v1153 = vsel %vm948, %v950, %v1133
      %vm1154 = vcmask 523264
      %v1155 = vsel %vm1154, %v1152, %v1139
      %v1156 = vsel %vm1154, %v1153, %v1141
      %vm1157 = vcmask 785408
      %v1158 = vsel %vm1157, %v1155, %v1147
      %v1159 = vsel %vm1157, %v1156, %v1149
      %1162 = vrot.lane.b32.xlu0 %v949, 96
      %v1163 = vpop.permute.xlu0 %1162
      %1164 = vrot.lane.b32.xlu0 %v950, 96
      %v1165 = vpop.permute.xlu0 %1164
      %1168 = vrot.lane.b32.xlu0 %v999, 32
      %v1169 = vpop.permute.xlu0 %1168
      %1170 = vrot.lane.b32.xlu0 %v1000, 32
      %v1171 = vpop.permute.xlu0 %1170
      %1174 = vrot.lane.b32.xlu0 %v1019, 64
      %v1175 = vpop.permute.xlu0 %1174
      %1176 = vrot.lane.b32.xlu0 %v1022, 64
      %v1177 = vpop.permute.xlu0 %1176
      %1182 = vrot.lane.b32.xlu0 %v1049, 96
      %v1183 = vpop.permute.xlu0 %1182
      %1184 = vrot.lane.b32.xlu0 %v1050, 96
      %v1185 = vpop.permute.xlu0 %1184
      %v1186 = vsel %vm948, %v1163, %v969
      %v1187 = vsel %vm948, %v1165, %v972
      %v1188 = vsel %vm1154, %v1186, %v1169
      %v1189 = vsel %vm1154, %v1187, %v1171
      %v1190 = vsel %vm1157, %v1188, %v1175
      %v1191 = vsel %vm1157, %v1189, %v1177
      %v1192 = vsel %vm948, %v1049, 0
      %v1194 = vsel %vm948, %v1050, 0
      %1196 = vmatpush.msra.mxu0 %v763
      %1197 = vmatpush.msra.mxu0 %v762
      %1198 = vmatpush.msra.mxu0 %v761
      %1199 = vmatpush.msra.mxu0 %v760
      %1200 = vmatpush.msra.mxu0 %v759
      %1201 = vmatpush.msra.mxu0 %v758
      %1202 = vmatpush.msra.mxu0 %v757
      %1203 = vmatpush.msra.mxu0 %v756
      %1204 = vmatpush.msra.mxu0 %v755
      %1205 = vmatpush.msra.mxu0 %v754
      %1206 = vmatpush.msra.mxu0 %v753
      %1207 = vmatpush.msra.mxu0 %v752
      %1208 = vmatpush.msra.mxu0 %v751
      %1209 = vmatpush.msra.mxu0 %v750
      %1210 = vmatpush.msra.mxu0 %v749
      %1211 = vmatpush.msra.mxu0 %v748
      %1212 = vmatmul.f32.gmra.mxu0 %v1158
      %v1213 = vpop.f32.mrf.mxu0
      %v1214 = vadd.f32 0.0, %v1213
      %1215 = vmatmul.f32.gmra.mxu0 %v1159
      %v1216 = vpop.f32.mrf.mxu0
      %v1217 = vadd.f32 0.0, %v1216
      %1218 = vdwg.mxu0
      %1219 = vmatpush.msra.mxu0 0.0
      %1220 = vmatpush.msra.mxu0 0.0
      %1221 = vmatpush.msra.mxu0 0.0
      %1222 = vmatpush.msra.mxu0 0.0
      %1223 = vmatpush.msra.mxu0 0.0
      %1224 = vmatpush.msra.mxu0 0.0
      %1225 = vmatpush.msra.mxu0 0.0
      %1226 = vmatpush.msra.mxu0 0.0
      %1227 = vmatpush.msra.mxu0 0.0
      %1228 = vmatpush.msra.mxu0 0.0
      %1229 = vmatpush.msra.mxu0 0.0
      %1230 = vmatpush.msra.mxu0 0.0
      %1231 = vmatpush.msra.mxu0 %v767
      %1232 = vmatpush.msra.mxu0 %v766
      %1233 = vmatpush.msra.mxu0 %v765
      %1234 = vmatpush.msra.mxu0 %v764
      %1235 = vmatmul.f32.gmra.mxu0 %v1192
      %v1236 = vpop.f32.mrf.mxu0
      %v1237 = vadd.f32 %v1214, %v1236
      %1238 = vmatmul.f32.gmra.mxu0 %v1194
      %v1239 = vpop.f32.mrf.mxu0
      %v1240 = vadd.f32 %v1217, %v1239
      %1241 = vdwg.mxu0
      %vm1242 = vcmask 80896
      %v1244 = vsel %vm1242, %v1092, 0
      %v1247 = vsel %vm1242, %v1093, 0
      %vm1249 = vcmask 1041408
      %v1251 = vsel %vm1249, %v743, 0
      %1253 = vmatpush.msra.mxu0 0.0
      %1254 = vmatpush.msra.mxu0 0.0
      %1255 = vmatpush.msra.mxu0 0.0
      %1256 = vmatpush.msra.mxu0 0.0
      %1257 = vmatpush.msra.mxu0 0.0
      %1258 = vmatpush.msra.mxu0 0.0
      %1259 = vmatpush.msra.mxu0 0.0
      %1260 = vmatpush.msra.mxu0 0.0
      %1261 = vmatpush.msra.mxu0 0.0
      %1262 = vmatpush.msra.mxu0 0.0
      %1263 = vmatpush.msra.mxu0 0.0
      %1264 = vmatpush.msra.mxu0 0.0
      %1265 = vmatpush.msra.mxu0 0.0
      %1266 = vmatpush.msra.mxu0 0.0
      %1267 = vmatpush.msra.mxu0 %v1251
      %1268 = vmatpush.msra.mxu0 %v742
      %1269 = vmatmul.f32.gmra.mxu0 %v1244
      %v1270 = vpop.f32.mrf.mxu0
      %v1271 = vadd.f32 %v1237, %v1270
      %1272 = vmatmul.f32.gmra.mxu0 %v1247
      %v1273 = vpop.f32.mrf.mxu0
      %v1274 = vadd.f32 %v1240, %v1273
      %1275 = vdwg.mxu0
      %v1277 = vperm.slane %v808, 0
      %v1279 = vadd.f32 %v1271, %v1277
      %v1280 = vadd.f32 %v1274, %v1277
      %v1281 = vxor.u32 %v1279, 2147483648
      %v1282 = vxor.u32 %v1280, 2147483648
      %v1283 = vmul.f32 %v1281, 1.442695
      %v1284 = vpow.pop %v1283
      %v1285 = vmul.f32 %v1282, 1.442695
      %v1286 = vpow.pop %v1285
      %v1287 = vadd.f32 %v1284, 1.0
      %v1288 = vadd.f32 %v1286, 1.0
      %v1289 = vrcp.pop %v1287
      %v1290 = vmul.f32 %v1287, %v1289
      %v1291 = vsub.f32 1.0, %v1290
      %v1292 = vmul.f32 %v1289, %v1291
      %v1293 = vadd.f32 %v1289, %v1292
      %vm1294 = vweird.f32 %v1287
      %vm1295 = vweird.f32 %v1289
      %vm1296 = vmor %vm1294, %vm1295
      %v1297 = vsel %vm1296, %v1289, %v1293
      %v1298 = vand.u32 2147483647, %v1287
      %vm1299 = vcmp.eq.f32.partialorder %v1298, 8.507059e+37
      %v1300 = vand.u32 %v1287, 2147483648
      %v1301 = vor.u32 1.1754944e-38, %v1300
      %v1302 = vsel %vm1299, %v1301, %v1297
      %v1303 = vmul.f32 1.0, %v1302
      %v1304 = vrcp.pop %v1288
      %v1305 = vmul.f32 %v1288, %v1304
      %v1306 = vsub.f32 1.0, %v1305
      %v1307 = vmul.f32 %v1304, %v1306
      %v1308 = vadd.f32 %v1304, %v1307
      %vm1309 = vweird.f32 %v1288
      %vm1310 = vweird.f32 %v1304
      %vm1311 = vmor %vm1309, %vm1310
      %v1312 = vsel %vm1311, %v1304, %v1308
      %v1313 = vand.u32 2147483647, %v1288
      %vm1314 = vcmp.eq.f32.partialorder %v1313, 8.507059e+37
      %v1315 = vand.u32 %v1288, 2147483648
      %v1316 = vor.u32 1.1754944e-38, %v1315
      %v1317 = vsel %vm1314, %v1316, %v1312
      %v1318 = vmul.f32 1.0, %v1317
      %1319 = vmatpush.msra.mxu0 %v783
      %1320 = vmatpush.msra.mxu0 %v782
      %1321 = vmatpush.msra.mxu0 %v781
      %1322 = vmatpush.msra.mxu0 %v780
      %1323 = vmatpush.msra.mxu0 %v779
      %1324 = vmatpush.msra.mxu0 %v778
      %1325 = vmatpush.msra.mxu0 %v777
      %1326 = vmatpush.msra.mxu0 %v776
      %1327 = vmatpush.msra.mxu0 %v775
      %1328 = vmatpush.msra.mxu0 %v774
      %1329 = vmatpush.msra.mxu0 %v773
      %1330 = vmatpush.msra.mxu0 %v772
      %1331 = vmatpush.msra.mxu0 %v771
      %1332 = vmatpush.msra.mxu0 %v770
      %1333 = vmatpush.msra.mxu0 %v769
      %1334 = vmatpush.msra.mxu0 %v768
      %1335 = vmatmul.f32.gmra.mxu0 %v1158
      %v1336 = vpop.f32.mrf.mxu0
      %v1337 = vadd.f32 0.0, %v1336
      %1338 = vmatmul.f32.gmra.mxu0 %v1159
      %v1339 = vpop.f32.mrf.mxu0
      %v1340 = vadd.f32 0.0, %v1339
      %1341 = vdwg.mxu0
      %1342 = vmatpush.msra.mxu0 0.0
      %1343 = vmatpush.msra.mxu0 0.0
      %1344 = vmatpush.msra.mxu0 0.0
      %1345 = vmatpush.msra.mxu0 0.0
      %1346 = vmatpush.msra.mxu0 0.0
      %1347 = vmatpush.msra.mxu0 0.0
      %1348 = vmatpush.msra.mxu0 0.0
      %1349 = vmatpush.msra.mxu0 0.0
      %1350 = vmatpush.msra.mxu0 0.0
      %1351 = vmatpush.msra.mxu0 0.0
      %1352 = vmatpush.msra.mxu0 0.0
      %1353 = vmatpush.msra.mxu0 0.0
      %1354 = vmatpush.msra.mxu0 %v787
      %1355 = vmatpush.msra.mxu0 %v786
      %1356 = vmatpush.msra.mxu0 %v785
      %1357 = vmatpush.msra.mxu0 %v784
      %1358 = vmatmul.f32.gmra.mxu0 %v1192
      %v1359 = vpop.f32.mrf.mxu0
      %v1360 = vadd.f32 %v1337, %v1359
      %1361 = vmatmul.f32.gmra.mxu0 %v1194
      %v1362 = vpop.f32.mrf.mxu0
      %v1363 = vadd.f32 %v1340, %v1362
      %1364 = vdwg.mxu0
      %v1366 = vsel %vm1249, %v745, 0
      %1368 = vmatpush.msra.mxu0 0.0
      %1369 = vmatpush.msra.mxu0 0.0
      %1370 = vmatpush.msra.mxu0 0.0
      %1371 = vmatpush.msra.mxu0 0.0
      %1372 = vmatpush.msra.mxu0 0.0
      %1373 = vmatpush.msra.mxu0 0.0
      %1374 = vmatpush.msra.mxu0 0.0
      %1375 = vmatpush.msra.mxu0 0.0
      %1376 = vmatpush.msra.mxu0 0.0
      %1377 = vmatpush.msra.mxu0 0.0
      %1378 = vmatpush.msra.mxu0 0.0
      %1379 = vmatpush.msra.mxu0 0.0
      %1380 = vmatpush.msra.mxu0 0.0
      %1381 = vmatpush.msra.mxu0 0.0
      %1382 = vmatpush.msra.mxu0 %v1366
      %1383 = vmatpush.msra.mxu0 %v744
      %1384 = vmatmul.f32.gmra.mxu0 %v1244
      %v1385 = vpop.f32.mrf.mxu0
      %v1386 = vadd.f32 %v1360, %v1385
      %1387 = vmatmul.f32.gmra.mxu0 %v1247
      %v1388 = vpop.f32.mrf.mxu0
      %v1389 = vadd.f32 %v1363, %v1388
      %1390 = vdwg.mxu0
      %v1392 = vperm.slane %v809, 0
      %v1394 = vadd.f32 %v1386, %v1392
      %v1395 = vadd.f32 %v1389, %v1392
      %v1396 = vxor.u32 %v1394, 2147483648
      %v1397 = vxor.u32 %v1395, 2147483648
      %v1398 = vmul.f32 %v1396, 1.442695
      %v1399 = vpow.pop %v1398
      %v1400 = vmul.f32 %v1397, 1.442695
      %v1401 = vpow.pop %v1400
      %v1402 = vadd.f32 %v1399, 1.0
      %v1403 = vadd.f32 %v1401, 1.0
      %v1404 = vrcp.pop %v1402
      %v1405 = vmul.f32 %v1402, %v1404
      %v1406 = vsub.f32 1.0, %v1405
      %v1407 = vmul.f32 %v1404, %v1406
      %v1408 = vadd.f32 %v1404, %v1407
      %vm1409 = vweird.f32 %v1402
      %vm1410 = vweird.f32 %v1404
      %vm1411 = vmor %vm1409, %vm1410
      %v1412 = vsel %vm1411, %v1404, %v1408
      %v1413 = vand.u32 2147483647, %v1402
      %vm1414 = vcmp.eq.f32.partialorder %v1413, 8.507059e+37
      %v1415 = vand.u32 %v1402, 2147483648
      %v1416 = vor.u32 1.1754944e-38, %v1415
      %v1417 = vsel %vm1414, %v1416, %v1412
      %v1418 = vmul.f32 1.0, %v1417
      %v1419 = vrcp.pop %v1403
      %v1420 = vmul.f32 %v1403, %v1419
      %v1421 = vsub.f32 1.0, %v1420
      %v1422 = vmul.f32 %v1419, %v1421
      %v1423 = vadd.f32 %v1419, %v1422
      %vm1424 = vweird.f32 %v1403
      %vm1425 = vweird.f32 %v1419
      %vm1426 = vmor %vm1424, %vm1425
      %v1427 = vsel %vm1426, %v1419, %v1423
      %v1428 = vand.u32 2147483647, %v1403
      %vm1429 = vcmp.eq.f32.partialorder %v1428, 8.507059e+37
      %v1430 = vand.u32 %v1403, 2147483648
      %v1431 = vor.u32 1.1754944e-38, %v1430
      %v1432 = vsel %vm1429, %v1431, %v1427
      %v1433 = vmul.f32 1.0, %v1432
      %v1434 = vsel %vm948, %v1183, 0
      %v1436 = vsel %vm948, %v1185, 0
      %1438 = vmatpush.msra.mxu0 %v763
      %1439 = vmatpush.msra.mxu0 %v762
      %1440 = vmatpush.msra.mxu0 %v761
      %1441 = vmatpush.msra.mxu0 %v760
      %1442 = vmatpush.msra.mxu0 %v759
      %1443 = vmatpush.msra.mxu0 %v758
      %1444 = vmatpush.msra.mxu0 %v757
      %1445 = vmatpush.msra.mxu0 %v756
      %1446 = vmatpush.msra.mxu0 %v755
      %1447 = vmatpush.msra.mxu0 %v754
      %1448 = vmatpush.msra.mxu0 %v753
      %1449 = vmatpush.msra.mxu0 %v752
      %1450 = vmatpush.msra.mxu0 %v751
      %1451 = vmatpush.msra.mxu0 %v750
      %1452 = vmatpush.msra.mxu0 %v749
      %1453 = vmatpush.msra.mxu0 %v748
      %1454 = vmatmul.f32.gmra.mxu0 %v1190
      %v1455 = vpop.f32.mrf.mxu0
      %v1456 = vadd.f32 0.0, %v1455
      %1457 = vmatmul.f32.gmra.mxu0 %v1191
      %v1458 = vpop.f32.mrf.mxu0
      %v1459 = vadd.f32 0.0, %v1458
      %1460 = vdwg.mxu0
      %1461 = vmatpush.msra.mxu0 0.0
      %1462 = vmatpush.msra.mxu0 0.0
      %1463 = vmatpush.msra.mxu0 0.0
      %1464 = vmatpush.msra.mxu0 0.0
      %1465 = vmatpush.msra.mxu0 0.0
      %1466 = vmatpush.msra.mxu0 0.0
      %1467 = vmatpush.msra.mxu0 0.0
      %1468 = vmatpush.msra.mxu0 0.0
      %1469 = vmatpush.msra.mxu0 0.0
      %1470 = vmatpush.msra.mxu0 0.0
      %1471 = vmatpush.msra.mxu0 0.0
      %1472 = vmatpush.msra.mxu0 0.0
      %1473 = vmatpush.msra.mxu0 %v767
      %1474 = vmatpush.msra.mxu0 %v766
      %1475 = vmatpush.msra.mxu0 %v765
      %1476 = vmatpush.msra.mxu0 %v764
      %1477 = vmatmul.f32.gmra.mxu0 %v1434
      %v1478 = vpop.f32.mrf.mxu0
      %v1479 = vadd.f32 %v1456, %v1478
      %1480 = vmatmul.f32.gmra.mxu0 %v1436
      %v1481 = vpop.f32.mrf.mxu0
      %v1482 = vadd.f32 %v1459, %v1481
      %1483 = vdwg.mxu0
      %v1485 = vsel %vm1242, %v1126, 0
      %v1488 = vsel %vm1242, %v1127, 0
      %1490 = vmatpush.msra.mxu0 0.0
      %1491 = vmatpush.msra.mxu0 0.0
      %1492 = vmatpush.msra.mxu0 0.0
      %1493 = vmatpush.msra.mxu0 0.0
      %1494 = vmatpush.msra.mxu0 0.0
      %1495 = vmatpush.msra.mxu0 0.0
      %1496 = vmatpush.msra.mxu0 0.0
      %1497 = vmatpush.msra.mxu0 0.0
      %1498 = vmatpush.msra.mxu0 0.0
      %1499 = vmatpush.msra.mxu0 0.0
      %1500 = vmatpush.msra.mxu0 0.0
      %1501 = vmatpush.msra.mxu0 0.0
      %1502 = vmatpush.msra.mxu0 0.0
      %1503 = vmatpush.msra.mxu0 0.0
      %1504 = vmatpush.msra.mxu0 %v1251
      %1505 = vmatpush.msra.mxu0 %v742
      %1506 = vmatmul.f32.gmra.mxu0 %v1485
      %v1507 = vpop.f32.mrf.mxu0
      %v1508 = vadd.f32 %v1479, %v1507
      %1509 = vmatmul.f32.gmra.mxu0 %v1488
      %v1510 = vpop.f32.mrf.mxu0
      %v1511 = vadd.f32 %v1482, %v1510
      %1512 = vdwg.mxu0
      %v1513 = vadd.f32 %v1508, %v1277
      %v1514 = vadd.f32 %v1511, %v1277
      %v1515 = vxor.u32 %v1513, 2147483648
      %v1516 = vxor.u32 %v1514, 2147483648
      %v1517 = vmul.f32 %v1515, 1.442695
      %v1518 = vpow.pop %v1517
      %v1519 = vmul.f32 %v1516, 1.442695
      %v1520 = vpow.pop %v1519
      %v1521 = vadd.f32 %v1518, 1.0
      %v1522 = vadd.f32 %v1520, 1.0
      %v1523 = vrcp.pop %v1521
      %v1524 = vmul.f32 %v1521, %v1523
      %v1525 = vsub.f32 1.0, %v1524
      %v1526 = vmul.f32 %v1523, %v1525
      %v1527 = vadd.f32 %v1523, %v1526
      %vm1528 = vweird.f32 %v1521
      %vm1529 = vweird.f32 %v1523
      %vm1530 = vmor %vm1528, %vm1529
      %v1531 = vsel %vm1530, %v1523, %v1527
      %v1532 = vand.u32 2147483647, %v1521
      %vm1533 = vcmp.eq.f32.partialorder %v1532, 8.507059e+37
      %v1534 = vand.u32 %v1521, 2147483648
      %v1535 = vor.u32 1.1754944e-38, %v1534
      %v1536 = vsel %vm1533, %v1535, %v1531
      %v1537 = vmul.f32 1.0, %v1536
      %v1538 = vrcp.pop %v1522
      %v1539 = vmul.f32 %v1522, %v1538
      %v1540 = vsub.f32 1.0, %v1539
      %v1541 = vmul.f32 %v1538, %v1540
      %v1542 = vadd.f32 %v1538, %v1541
      %vm1543 = vweird.f32 %v1522
      %vm1544 = vweird.f32 %v1538
      %vm1545 = vmor %vm1543, %vm1544
      %v1546 = vsel %vm1545, %v1538, %v1542
      %v1547 = vand.u32 2147483647, %v1522
      %vm1548 = vcmp.eq.f32.partialorder %v1547, 8.507059e+37
      %v1549 = vand.u32 %v1522, 2147483648
      %v1550 = vor.u32 1.1754944e-38, %v1549
      %v1551 = vsel %vm1548, %v1550, %v1546
      %v1552 = vmul.f32 1.0, %v1551
      %1553 = vmatpush.msra.mxu0 %v783
      %1554 = vmatpush.msra.mxu0 %v782
      %1555 = vmatpush.msra.mxu0 %v781
      %1556 = vmatpush.msra.mxu0 %v780
      %1557 = vmatpush.msra.mxu0 %v779
      %1558 = vmatpush.msra.mxu0 %v778
      %1559 = vmatpush.msra.mxu0 %v777
      %1560 = vmatpush.msra.mxu0 %v776
      %1561 = vmatpush.msra.mxu0 %v775
      %1562 = vmatpush.msra.mxu0 %v774
      %1563 = vmatpush.msra.mxu0 %v773
      %1564 = vmatpush.msra.mxu0 %v772
      %1565 = vmatpush.msra.mxu0 %v771
      %1566 = vmatpush.msra.mxu0 %v770
      %1567 = vmatpush.msra.mxu0 %v769
      %1568 = vmatpush.msra.mxu0 %v768
      %1569 = vmatmul.f32.gmra.mxu0 %v1190
      %v1570 = vpop.f32.mrf.mxu0
      %v1571 = vadd.f32 0.0, %v1570
      %1572 = vmatmul.f32.gmra.mxu0 %v1191
      %v1573 = vpop.f32.mrf.mxu0
      %v1574 = vadd.f32 0.0, %v1573
      %1575 = vdwg.mxu0
      %1576 = vmatpush.msra.mxu0 0.0
      %1577 = vmatpush.msra.mxu0 0.0
      %1578 = vmatpush.msra.mxu0 0.0
      %1579 = vmatpush.msra.mxu0 0.0
      %1580 = vmatpush.msra.mxu0 0.0
      %1581 = vmatpush.msra.mxu0 0.0
      %1582 = vmatpush.msra.mxu0 0.0
      %1583 = vmatpush.msra.mxu0 0.0
      %1584 = vmatpush.msra.mxu0 0.0
      %1585 = vmatpush.msra.mxu0 0.0
      %1586 = vmatpush.msra.mxu0 0.0
      %1587 = vmatpush.msra.mxu0 0.0
      %1588 = vmatpush.msra.mxu0 %v787
      %1589 = vmatpush.msra.mxu0 %v786
      %1590 = vmatpush.msra.mxu0 %v785
      %1591 = vmatpush.msra.mxu0 %v784
      %1592 = vmatmul.f32.gmra.mxu0 %v1434
      %v1593 = vpop.f32.mrf.mxu0
      %v1594 = vadd.f32 %v1571, %v1593
      %1595 = vmatmul.f32.gmra.mxu0 %v1436
      %v1596 = vpop.f32.mrf.mxu0
      %v1597 = vadd.f32 %v1574, %v1596
      %1598 = vdwg.mxu0
      %1599 = vmatpush.msra.mxu0 0.0
      %1600 = vmatpush.msra.mxu0 0.0
      %1601 = vmatpush.msra.mxu0 0.0
      %1602 = vmatpush.msra.mxu0 0.0
      %1603 = vmatpush.msra.mxu0 0.0
      %1604 = vmatpush.msra.mxu0 0.0
      %1605 = vmatpush.msra.mxu0 0.0
      %1606 = vmatpush.msra.mxu0 0.0
      %1607 = vmatpush.msra.mxu0 0.0
      %1608 = vmatpush.msra.mxu0 0.0
      %1609 = vmatpush.msra.mxu0 0.0
      %1610 = vmatpush.msra.mxu0 0.0
      %1611 = vmatpush.msra.mxu0 0.0
      %1612 = vmatpush.msra.mxu0 0.0
      %1613 = vmatpush.msra.mxu0 %v1366
      %1614 = vmatpush.msra.mxu0 %v744
      %1615 = vmatmul.f32.gmra.mxu0 %v1485
      %v1616 = vpop.f32.mrf.mxu0
      %v1617 = vadd.f32 %v1594, %v1616
      %1618 = vmatmul.f32.gmra.mxu0 %v1488
      %v1619 = vpop.f32.mrf.mxu0
      %v1620 = vadd.f32 %v1597, %v1619
      %1621 = vdwg.mxu0
      %v1622 = vadd.f32 %v1617, %v1392
      %v1623 = vadd.f32 %v1620, %v1392
      %v1624 = vxor.u32 %v1622, 2147483648
      %v1625 = vxor.u32 %v1623, 2147483648
      %v1626 = vmul.f32 %v1624, 1.442695
      %v1627 = vpow.pop %v1626
      %v1628 = vmul.f32 %v1625, 1.442695
      %v1629 = vpow.pop %v1628
      %v1630 = vadd.f32 %v1627, 1.0
      %v1631 = vadd.f32 %v1629, 1.0
      %v1632 = vrcp.pop %v1630
      %v1633 = vmul.f32 %v1630, %v1632
      %v1634 = vsub.f32 1.0, %v1633
      %v1635 = vmul.f32 %v1632, %v1634
      %v1636 = vadd.f32 %v1632, %v1635
      %vm1637 = vweird.f32 %v1630
      %vm1638 = vweird.f32 %v1632
      %vm1639 = vmor %vm1637, %vm1638
      %v1640 = vsel %vm1639, %v1632, %v1636
      %v1641 = vand.u32 2147483647, %v1630
      %vm1642 = vcmp.eq.f32.partialorder %v1641, 8.507059e+37
      %v1643 = vand.u32 %v1630, 2147483648
      %v1644 = vor.u32 1.1754944e-38, %v1643
      %v1645 = vsel %vm1642, %v1644, %v1640
      %v1646 = vmul.f32 1.0, %v1645
      %v1647 = vrcp.pop %v1631
      %v1648 = vmul.f32 %v1631, %v1647
      %v1649 = vsub.f32 1.0, %v1648
      %v1650 = vmul.f32 %v1647, %v1649
      %v1651 = vadd.f32 %v1647, %v1650
      %vm1652 = vweird.f32 %v1631
      %vm1653 = vweird.f32 %v1647
      %vm1654 = vmor %vm1652, %vm1653
      %v1655 = vsel %vm1654, %v1647, %v1651
      %v1656 = vand.u32 2147483647, %v1631
      %vm1657 = vcmp.eq.f32.partialorder %v1656, 8.507059e+37
      %v1658 = vand.u32 %v1631, 2147483648
      %v1659 = vor.u32 1.1754944e-38, %v1658
      %v1660 = vsel %vm1657, %v1659, %v1655
      %v1661 = vmul.f32 1.0, %v1660
      %v1662 = vmul.f32 %v1303, %v811
      %v1663 = vmul.f32 %v1318, %v812
      %v1664 = vmul.f32 %v1537, %v814
      %v1665 = vmul.f32 %v1552, %v815
      %1668 = vrot.lane.b32.xlu0 %v1664, 32
      %v1669 = vpop.permute.xlu0 %1668
      %1670 = vrot.lane.b32.xlu0 %v1665, 32
      %v1671 = vpop.permute.xlu0 %1670
      %v1674 = vsel %vm948, %v1662, %v1669
      %v1675 = vsel %vm948, %v1663, %v1671
      %1676 = vmatpush.msra.mxu0 0.0
      %1677 = vmatpush.msra.mxu0 0.0
      %1678 = vmatpush.msra.mxu0 0.0
      %1679 = vmatpush.msra.mxu0 0.0
      %1680 = vmatpush.msra.mxu0 0.0
      %1681 = vmatpush.msra.mxu0 0.0
      %1682 = vmatpush.msra.mxu0 0.0
      %1683 = vmatpush.msra.mxu0 0.0
      %1684 = vmatpush.msra.mxu0 0.0
      %1685 = vmatpush.msra.mxu0 0.0
      %1686 = vmatpush.msra.mxu0 0.0
      %1687 = vmatpush.msra.mxu0 0.0
      %1688 = vmatpush.msra.mxu0 0.0
      %1689 = vmatpush.msra.mxu0 0.0
      %1690 = vmatpush.msra.mxu0 %v1675
      %1691 = vmatpush.msra.mxu0 %v1674
      %1692 = vmatmul.f32.gmra.mxu0 %v829
      %v1693 = vpop.f32.mrf.mxu0
      %v1694 = vadd.f32 0.0, %v1693
      %1695 = vmatmul.f32.gmra.mxu0 %v832
      %v1696 = vpop.f32.mrf.mxu0
      %v1697 = vadd.f32 0.0, %v1696
      %1698 = vdwg.mxu0
      %1699 = vmatpush.msra.mxu0 0.0
      %1700 = vmatpush.msra.mxu0 0.0
      %1701 = vmatpush.msra.mxu0 0.0
      %1702 = vmatpush.msra.mxu0 0.0
      %1703 = vmatpush.msra.mxu0 0.0
      %1704 = vmatpush.msra.mxu0 0.0
      %1705 = vmatpush.msra.mxu0 0.0
      %1706 = vmatpush.msra.mxu0 0.0
      %1707 = vmatpush.msra.mxu0 0.0
      %1708 = vmatpush.msra.mxu0 0.0
      %1709 = vmatpush.msra.mxu0 0.0
      %1710 = vmatpush.msra.mxu0 0.0
      %1711 = vmatpush.msra.mxu0 0.0
      %1712 = vmatpush.msra.mxu0 0.0
      %1713 = vmatpush.msra.mxu0 %v1697
      %1714 = vmatpush.msra.mxu0 %v1694
      %1715 = vmatmul.f32.gmra.mxu0 %v829
      %v1716 = vpop.f32.mrf.mxu0
      %v1717 = vadd.f32 0.0, %v1716
      %1718 = vmatmul.f32.gmra.mxu0 %v832
      %v1719 = vpop.f32.mrf.mxu0
      %v1720 = vadd.f32 0.0, %v1719
      %1721 = vdwg.mxu0
      %v1722 = vmul.f32 %v1717, 2.0
      %v1723 = vmul.f32 %v1720, 2.0
      %v1724 = vsub.f32 %v1722, %v1674
      %v1725 = vsub.f32 %v1723, %v1675
      %1726 = vmatpush.msra.mxu0 0.0
      %1727 = vmatpush.msra.mxu0 0.0
      %1728 = vmatpush.msra.mxu0 0.0
      %1729 = vmatpush.msra.mxu0 0.0
      %1730 = vmatpush.msra.mxu0 0.0
      %1731 = vmatpush.msra.mxu0 0.0
      %1732 = vmatpush.msra.mxu0 0.0
      %1733 = vmatpush.msra.mxu0 0.0
      %1734 = vmatpush.msra.mxu0 0.0
      %1735 = vmatpush.msra.mxu0 0.0
      %1736 = vmatpush.msra.mxu0 0.0
      %1737 = vmatpush.msra.mxu0 0.0
      %1738 = vmatpush.msra.mxu0 0.0
      %1739 = vmatpush.msra.mxu0 0.0
      %1740 = vmatpush.msra.mxu0 %v1697
      %1741 = vmatpush.msra.mxu0 %v1694
      %1742 = vmatmul.f32.gmra.mxu0 %v885
      %v1743 = vpop.f32.mrf.mxu0
      %v1744 = vadd.f32 0.0, %v1743
      %1745 = vmatmul.f32.gmra.mxu0 %v888
      %v1746 = vpop.f32.mrf.mxu0
      %v1747 = vadd.f32 0.0, %v1746
      %1748 = vdwg.mxu0
      %1749 = vmatpush.msra.mxu0 0.0
      %1750 = vmatpush.msra.mxu0 0.0
      %1751 = vmatpush.msra.mxu0 0.0
      %1752 = vmatpush.msra.mxu0 0.0
      %1753 = vmatpush.msra.mxu0 0.0
      %1754 = vmatpush.msra.mxu0 0.0
      %1755 = vmatpush.msra.mxu0 0.0
      %1756 = vmatpush.msra.mxu0 0.0
      %1757 = vmatpush.msra.mxu0 0.0
      %1758 = vmatpush.msra.mxu0 0.0
      %1759 = vmatpush.msra.mxu0 0.0
      %1760 = vmatpush.msra.mxu0 0.0
      %1761 = vmatpush.msra.mxu0 0.0
      %1762 = vmatpush.msra.mxu0 0.0
      %1763 = vmatpush.msra.mxu0 %v1747
      %1764 = vmatpush.msra.mxu0 %v1744
      %1765 = vmatmul.f32.gmra.mxu0 %v885
      %v1766 = vpop.f32.mrf.mxu0
      %v1767 = vadd.f32 0.0, %v1766
      %1768 = vmatmul.f32.gmra.mxu0 %v888
      %v1769 = vpop.f32.mrf.mxu0
      %v1770 = vadd.f32 0.0, %v1769
      %1771 = vdwg.mxu0
      %v1772 = vmul.f32 %v1767, 2.0
      %v1773 = vmul.f32 %v1770, 2.0
      %v1774 = vsub.f32 %v1772, %v1694
      %v1775 = vsub.f32 %v1773, %v1697
      %1778 = vrot.lane.b32.xlu0 %v1694, 32
      %v1779 = vpop.permute.xlu0 %1778
      %1780 = vrot.lane.b32.xlu0 %v1697, 32
      %v1781 = vpop.permute.xlu0 %1780
      %1786 = vrot.lane.b32.xlu0 %v1724, 64
      %v1787 = vpop.permute.xlu0 %1786
      %1788 = vrot.lane.b32.xlu0 %v1725, 64
      %v1789 = vpop.permute.xlu0 %1788
      %1794 = vrot.lane.b32.xlu0 %v1744, 96
      %v1795 = vpop.permute.xlu0 %1794
      %1796 = vrot.lane.b32.xlu0 %v1747, 96
      %v1797 = vpop.permute.xlu0 %1796
      %v1800 = vsel %vm948, %v1674, %v1779
      %v1801 = vsel %vm948, %v1675, %v1781
      %v1802 = vsel %vm1154, %v1800, %v1787
      %v1803 = vsel %vm1154, %v1801, %v1789
      %v1804 = vsel %vm1157, %v1802, %v1795
      %v1805 = vsel %vm1157, %v1803, %v1797
      %v1807 = vsel %vm948, %v1774, 0
      %v1810 = vsel %vm948, %v1775, 0
      %1812 = vmatpush.msra.mxu0 %v803
      %1813 = vmatpush.msra.mxu0 %v802
      %1814 = vmatpush.msra.mxu0 %v801
      %1815 = vmatpush.msra.mxu0 %v800
      %1816 = vmatpush.msra.mxu0 %v799
      %1817 = vmatpush.msra.mxu0 %v798
      %1818 = vmatpush.msra.mxu0 %v797
      %1819 = vmatpush.msra.mxu0 %v796
      %1820 = vmatpush.msra.mxu0 %v795
      %1821 = vmatpush.msra.mxu0 %v794
      %1822 = vmatpush.msra.mxu0 %v793
      %1823 = vmatpush.msra.mxu0 %v792
      %1824 = vmatpush.msra.mxu0 %v791
      %1825 = vmatpush.msra.mxu0 %v790
      %1826 = vmatpush.msra.mxu0 %v789
      %1827 = vmatpush.msra.mxu0 %v788
      %1828 = vmatmul.f32.gmra.mxu0 %v1804
      %v1829 = vpop.f32.mrf.mxu0
      %v1830 = vadd.f32 0.0, %v1829
      %1831 = vmatmul.f32.gmra.mxu0 %v1805
      %v1832 = vpop.f32.mrf.mxu0
      %v1833 = vadd.f32 0.0, %v1832
      %1834 = vdwg.mxu0
      %1835 = vmatpush.msra.mxu0 0.0
      %1836 = vmatpush.msra.mxu0 0.0
      %1837 = vmatpush.msra.mxu0 0.0
      %1838 = vmatpush.msra.mxu0 0.0
      %1839 = vmatpush.msra.mxu0 0.0
      %1840 = vmatpush.msra.mxu0 0.0
      %1841 = vmatpush.msra.mxu0 0.0
      %1842 = vmatpush.msra.mxu0 0.0
      %1843 = vmatpush.msra.mxu0 0.0
      %1844 = vmatpush.msra.mxu0 0.0
      %1845 = vmatpush.msra.mxu0 0.0
      %1846 = vmatpush.msra.mxu0 0.0
      %1847 = vmatpush.msra.mxu0 %v807
      %1848 = vmatpush.msra.mxu0 %v806
      %1849 = vmatpush.msra.mxu0 %v805
      %1850 = vmatpush.msra.mxu0 %v804
      %1851 = vmatmul.f32.gmra.mxu0 %v1807
      %v1852 = vpop.f32.mrf.mxu0
      %v1853 = vadd.f32 %v1830, %v1852
      %1854 = vmatmul.f32.gmra.mxu0 %v1810
      %v1855 = vpop.f32.mrf.mxu0
      %v1856 = vadd.f32 %v1833, %v1855
      %1857 = vdwg.mxu0
      %v1859 = vsel %vm1249, %v747, 0
      %1861 = vmatpush.msra.mxu0 0.0
      %1862 = vmatpush.msra.mxu0 0.0
      %1863 = vmatpush.msra.mxu0 0.0
      %1864 = vmatpush.msra.mxu0 0.0
      %1865 = vmatpush.msra.mxu0 0.0
      %1866 = vmatpush.msra.mxu0 0.0
      %1867 = vmatpush.msra.mxu0 0.0
      %1868 = vmatpush.msra.mxu0 0.0
      %1869 = vmatpush.msra.mxu0 0.0
      %1870 = vmatpush.msra.mxu0 0.0
      %1871 = vmatpush.msra.mxu0 0.0
      %1872 = vmatpush.msra.mxu0 0.0
      %1873 = vmatpush.msra.mxu0 0.0
      %1874 = vmatpush.msra.mxu0 0.0
      %1875 = vmatpush.msra.mxu0 %v1859
      %1876 = vmatpush.msra.mxu0 %v746
      %1877 = vmatmul.f32.gmra.mxu0 %v1244
      %v1878 = vpop.f32.mrf.mxu0
      %v1879 = vadd.f32 %v1853, %v1878
      %1880 = vmatmul.f32.gmra.mxu0 %v1247
      %v1881 = vpop.f32.mrf.mxu0
      %v1882 = vadd.f32 %v1856, %v1881
      %1883 = vdwg.mxu0
      %v1885 = vperm.slane %v810, 0
      %v1887 = vadd.f32 %v1879, %v1885
      %v1888 = vadd.f32 %v1882, %v1885
      %v1889 = vtanh.pop %v1887
      %v1890 = vtanh.pop %v1888
      %v1891 = vmul.f32 %v1418, %v811
      %v1892 = vmul.f32 %v1433, %v812
      %v1893 = vsub.f32 1.0, %v1418
      %v1894 = vsub.f32 1.0, %v1433
      %v1895 = vmul.f32 %v1893, %v1889
      %v1896 = vmul.f32 %v1894, %v1890
      %v1897 = vadd.f32 %v1891, %v1895
      %v1898 = vadd.f32 %v1892, %v1896
      %1899 = vst.msk [vmem:[#allocation2] sm:$0xff] %vm948, %v1897
      %1900 = vst.msk [vmem:[#allocation2 + $0x8] sm:$0xff] %vm948, %v1898
      %1903 = vrot.lane.b32.xlu0 %v1674, 96
      %v1904 = vpop.permute.xlu0 %1903
      %1905 = vrot.lane.b32.xlu0 %v1675, 96
      %v1906 = vpop.permute.xlu0 %1905
      %1909 = vrot.lane.b32.xlu0 %v1724, 32
      %v1910 = vpop.permute.xlu0 %1909
      %1911 = vrot.lane.b32.xlu0 %v1725, 32
      %v1912 = vpop.permute.xlu0 %1911
      %1915 = vrot.lane.b32.xlu0 %v1744, 64
      %v1916 = vpop.permute.xlu0 %1915
      %1917 = vrot.lane.b32.xlu0 %v1747, 64
      %v1918 = vpop.permute.xlu0 %1917
      %1921 = vrot.lane.b32.xlu0 %v1774, 96
      %v1922 = vpop.permute.xlu0 %1921
      %1923 = vrot.lane.b32.xlu0 %v1775, 96
      %v1924 = vpop.permute.xlu0 %1923
      %v1925 = vsel %vm948, %v1904, %v1694
      %v1926 = vsel %vm948, %v1906, %v1697
      %v1927 = vsel %vm1154, %v1925, %v1910
      %v1928 = vsel %vm1154, %v1926, %v1912
      %v1929 = vsel %vm1157, %v1927, %v1916
      %v1930 = vsel %vm1157, %v1928, %v1918
      %v1931 = vsel %vm948, %v1922, 0
      %v1933 = vsel %vm948, %v1924, 0
      %1935 = vmatpush.msra.mxu0 %v803
      %1936 = vmatpush.msra.mxu0 %v802
      %1937 = vmatpush.msra.mxu0 %v801
      %1938 = vmatpush.msra.mxu0 %v800
      %1939 = vmatpush.msra.mxu0 %v799
      %1940 = vmatpush.msra.mxu0 %v798
      %1941 = vmatpush.msra.mxu0 %v797
      %1942 = vmatpush.msra.mxu0 %v796
      %1943 = vmatpush.msra.mxu0 %v795
      %1944 = vmatpush.msra.mxu0 %v794
      %1945 = vmatpush.msra.mxu0 %v793
      %1946 = vmatpush.msra.mxu0 %v792
      %1947 = vmatpush.msra.mxu0 %v791
      %1948 = vmatpush.msra.mxu0 %v790
      %1949 = vmatpush.msra.mxu0 %v789
      %1950 = vmatpush.msra.mxu0 %v788
      %1951 = vmatmul.f32.gmra.mxu0 %v1929
      %v1952 = vpop.f32.mrf.mxu0
      %v1953 = vadd.f32 0.0, %v1952
      %1954 = vmatmul.f32.gmra.mxu0 %v1930
      %v1955 = vpop.f32.mrf.mxu0
      %v1956 = vadd.f32 0.0, %v1955
      %1957 = vdwg.mxu0
      %1958 = vmatpush.msra.mxu0 0.0
      %1959 = vmatpush.msra.mxu0 0.0
      %1960 = vmatpush.msra.mxu0 0.0
      %1961 = vmatpush.msra.mxu0 0.0
      %1962 = vmatpush.msra.mxu0 0.0
      %1963 = vmatpush.msra.mxu0 0.0
      %1964 = vmatpush.msra.mxu0 0.0
      %1965 = vmatpush.msra.mxu0 0.0
      %1966 = vmatpush.msra.mxu0 0.0
      %1967 = vmatpush.msra.mxu0 0.0
      %1968 = vmatpush.msra.mxu0 0.0
      %1969 = vmatpush.msra.mxu0 0.0
      %1970 = vmatpush.msra.mxu0 %v807
      %1971 = vmatpush.msra.mxu0 %v806
      %1972 = vmatpush.msra.mxu0 %v805
      %1973 = vmatpush.msra.mxu0 %v804
      %1974 = vmatmul.f32.gmra.mxu0 %v1931
      %v1975 = vpop.f32.mrf.mxu0
      %v1976 = vadd.f32 %v1953, %v1975
      %1977 = vmatmul.f32.gmra.mxu0 %v1933
      %v1978 = vpop.f32.mrf.mxu0
      %v1979 = vadd.f32 %v1956, %v1978
      %1980 = vdwg.mxu0
      %1981 = vmatpush.msra.mxu0 0.0
      %1982 = vmatpush.msra.mxu0 0.0
      %1983 = vmatpush.msra.mxu0 0.0
      %1984 = vmatpush.msra.mxu0 0.0
      %1985 = vmatpush.msra.mxu0 0.0
      %1986 = vmatpush.msra.mxu0 0.0
      %1987 = vmatpush.msra.mxu0 0.0
      %1988 = vmatpush.msra.mxu0 0.0
      %1989 = vmatpush.msra.mxu0 0.0
      %1990 = vmatpush.msra.mxu0 0.0
      %1991 = vmatpush.msra.mxu0 0.0
      %1992 = vmatpush.msra.mxu0 0.0
      %1993 = vmatpush.msra.mxu0 0.0
      %1994 = vmatpush.msra.mxu0 0.0
      %1995 = vmatpush.msra.mxu0 %v1859
      %1996 = vmatpush.msra.mxu0 %v746
      %1997 = vmatmul.f32.gmra.mxu0 %v1485
      %v1998 = vpop.f32.mrf.mxu0
      %v1999 = vadd.f32 %v1976, %v1998
      %2000 = vmatmul.f32.gmra.mxu0 %v1488
      %v2001 = vpop.f32.mrf.mxu0
      %v2002 = vadd.f32 %v1979, %v2001
      %2003 = vdwg.mxu0
      %v2004 = vadd.f32 %v1999, %v1885
      %v2005 = vadd.f32 %v2002, %v1885
      %v2006 = vtanh.pop %v2004
      %v2007 = vtanh.pop %v2005
      %v2008 = vmul.f32 %v1646, %v814
      %v2009 = vmul.f32 %v1661, %v815
      %v2010 = vsub.f32 1.0, %v1646
      %v2011 = vsub.f32 1.0, %v1661
      %v2012 = vmul.f32 %v2010, %v2006
      %v2013 = vmul.f32 %v2011, %v2007
      %v2014 = vadd.f32 %v2008, %v2012
      %v2015 = vadd.f32 %v2009, %v2013
      %2016 = vst.msk [vmem:[%s813] sm:$0xff] %vm948, %v2014
      %2017 = vst.msk [vmem:[%s813 + $0x8] sm:$0xff] %vm948, %v2015
      %v2018 = vld [vmem:[%s11] sm:$0xff]
      %v2019 = vld [vmem:[%s11 + $0x8] sm:$0xff]
      %v2020 = vld [vmem:[%s11 + $0x10] sm:$0xff]
      %v2021 = vld [vmem:[%s11 + $0x18] sm:$0xff]
      %v2022 = vld [vmem:[%s11 + $0x20] sm:$0xff]
      %v2023 = vld [vmem:[%s11 + $0x28] sm:$0xff]
      %v2024 = vld [vmem:[%s11 + $0x30] sm:$0xff]
      %v2025 = vld [vmem:[%s11 + $0x38] sm:$0xff]
      %v2026 = vld [vmem:[%s11 + $0x40] sm:$0xff]
      %v2027 = vld [vmem:[%s11 + $0x48] sm:$0xff]
      %v2028 = vld [vmem:[%s11 + $0x50] sm:$0xff]
      %v2029 = vld [vmem:[%s11 + $0x58] sm:$0xff]
      %v2030 = vld [vmem:[%s11 + $0x60] sm:$0xff]
      %v2031 = vld [vmem:[%s11 + $0x68] sm:$0xff]
      %v2032 = vld [vmem:[%s11 + $0x70] sm:$0xff]
      %v2033 = vld [vmem:[%s11 + $0x78] sm:$0xff]
      %v2034 = vld [vmem:[%s11 + $0x80] sm:$0xff]
      %v2035 = vld [vmem:[%s11 + $0x88] sm:$0xff]
      %v2036 = vld [vmem:[%s11 + $0x90] sm:$0xff]
      %v2037 = vld [vmem:[%s11 + $0x98] sm:$0xff]
      %v2038 = vld [vmem:[%s12] sm:$0xff]
      %v2039 = vld [vmem:[%s12 + $0x8] sm:$0xff]
      %v2040 = vld [vmem:[%s12 + $0x10] sm:$0xff]
      %v2041 = vld [vmem:[%s12 + $0x18] sm:$0xff]
      %v2042 = vld [vmem:[%s12 + $0x20] sm:$0xff]
      %v2043 = vld [vmem:[%s12 + $0x28] sm:$0xff]
      %v2044 = vld [vmem:[%s12 + $0x30] sm:$0xff]
      %v2045 = vld [vmem:[%s12 + $0x38] sm:$0xff]
      %v2046 = vld [vmem:[%s12 + $0x40] sm:$0xff]
      %v2047 = vld [vmem:[%s12 + $0x48] sm:$0xff]
      %v2048 = vld [vmem:[%s12 + $0x50] sm:$0xff]
      %v2049 = vld [vmem:[%s12 + $0x58] sm:$0xff]
      %v2050 = vld [vmem:[%s12 + $0x60] sm:$0xff]
      %v2051 = vld [vmem:[%s12 + $0x68] sm:$0xff]
      %v2052 = vld [vmem:[%s12 + $0x70] sm:$0xff]
      %v2053 = vld [vmem:[%s12 + $0x78] sm:$0xff]
      %v2054 = vld [vmem:[%s12 + $0x80] sm:$0xff]
      %v2055 = vld [vmem:[%s12 + $0x88] sm:$0xff]
      %v2056 = vld [vmem:[%s12 + $0x90] sm:$0xff]
      %v2057 = vld [vmem:[%s12 + $0x98] sm:$0xff]
      %v2058 = vld [vmem:[%s13] sm:$0xff]
      %v2059 = vld [vmem:[%s13 + $0x8] sm:$0xff]
      %v2060 = vld [vmem:[%s13 + $0x10] sm:$0xff]
      %v2061 = vld [vmem:[%s13 + $0x18] sm:$0xff]
      %v2062 = vld [vmem:[%s13 + $0x20] sm:$0xff]
      %v2063 = vld [vmem:[%s13 + $0x28] sm:$0xff]
      %v2064 = vld [vmem:[%s13 + $0x30] sm:$0xff]
      %v2065 = vld [vmem:[%s13 + $0x38] sm:$0xff]
      %v2066 = vld [vmem:[%s13 + $0x40] sm:$0xff]
      %v2067 = vld [vmem:[%s13 + $0x48] sm:$0xff]
      %v2068 = vld [vmem:[%s13 + $0x50] sm:$0xff]
      %v2069 = vld [vmem:[%s13 + $0x58] sm:$0xff]
      %v2070 = vld [vmem:[%s13 + $0x60] sm:$0xff]
      %v2071 = vld [vmem:[%s13 + $0x68] sm:$0xff]
      %v2072 = vld [vmem:[%s13 + $0x70] sm:$0xff]
      %v2073 = vld [vmem:[%s13 + $0x78] sm:$0xff]
      %v2074 = vld [vmem:[%s13 + $0x80] sm:$0xff]
      %v2075 = vld [vmem:[%s13 + $0x88] sm:$0xff]
      %v2076 = vld [vmem:[%s13 + $0x90] sm:$0xff]
      %v2077 = vld [vmem:[%s13 + $0x98] sm:$0xff]
      %v2078 = vld [vmem:[%s14] sm:$0xff]
      %v2079 = vld [vmem:[%s14 + $0x8] sm:$0xff]
      %v2080 = vld [vmem:[%s14 + $0x10] sm:$0xff]
      %v2081 = vld [vmem:[%s14 + $0x18] sm:$0xff]
      %v2082 = vld [vmem:[%s14 + $0x20] sm:$0xff]
      %v2083 = vld [vmem:[%s14 + $0x28] sm:$0xff]
      %v2084 = vld [vmem:[%s14 + $0x30] sm:$0xff]
      %v2085 = vld [vmem:[%s14 + $0x38] sm:$0xff]
      %v2086 = vld [vmem:[%s14 + $0x40] sm:$0xff]
      %v2087 = vld [vmem:[%s14 + $0x48] sm:$0xff]
      %v2088 = vld [vmem:[%s14 + $0x50] sm:$0xff]
      %v2089 = vld [vmem:[%s14 + $0x58] sm:$0xff]
      %v2090 = vld [vmem:[%s14 + $0x60] sm:$0xff]
      %v2091 = vld [vmem:[%s14 + $0x68] sm:$0xff]
      %v2092 = vld [vmem:[%s14 + $0x70] sm:$0xff]
      %v2093 = vld [vmem:[%s14 + $0x78] sm:$0xff]
      %v2094 = vld [vmem:[%s14 + $0x80] sm:$0xff]
      %v2095 = vld [vmem:[%s14 + $0x88] sm:$0xff]
      %v2096 = vld [vmem:[%s14 + $0x90] sm:$0xff]
      %v2097 = vld [vmem:[%s14 + $0x98] sm:$0xff]
      %v2098 = vld [vmem:[%s15] sm:$0xff]
      %v2099 = vld [vmem:[%s15 + $0x8] sm:$0xff]
      %v2100 = vld [vmem:[%s15 + $0x10] sm:$0xff]
      %v2101 = vld [vmem:[%s15 + $0x18] sm:$0xff]
      %v2102 = vld [vmem:[%s15 + $0x20] sm:$0xff]
      %v2103 = vld [vmem:[%s15 + $0x28] sm:$0xff]
      %v2104 = vld [vmem:[%s15 + $0x30] sm:$0xff]
      %v2105 = vld [vmem:[%s15 + $0x38] sm:$0xff]
      %v2106 = vld [vmem:[%s15 + $0x40] sm:$0xff]
      %v2107 = vld [vmem:[%s15 + $0x48] sm:$0xff]
      %v2108 = vld [vmem:[%s15 + $0x50] sm:$0xff]
      %v2109 = vld [vmem:[%s15 + $0x58] sm:$0xff]
      %v2110 = vld [vmem:[%s15 + $0x60] sm:$0xff]
      %v2111 = vld [vmem:[%s15 + $0x68] sm:$0xff]
      %v2112 = vld [vmem:[%s15 + $0x70] sm:$0xff]
      %v2113 = vld [vmem:[%s15 + $0x78] sm:$0xff]
      %v2114 = vld [vmem:[%s15 + $0x80] sm:$0xff]
      %v2115 = vld [vmem:[%s15 + $0x88] sm:$0xff]
      %v2116 = vld [vmem:[%s15 + $0x90] sm:$0xff]
      %v2117 = vld [vmem:[%s15 + $0x98] sm:$0xff]
      %v2118 = vld [vmem:[%s16] sm:$0xff]
      %v2119 = vld [vmem:[%s16 + $0x8] sm:$0xff]
      %v2120 = vld [vmem:[%s16 + $0x10] sm:$0xff]
      %v2121 = vld [vmem:[%s16 + $0x18] sm:$0xff]
      %v2122 = vld [vmem:[%s16 + $0x20] sm:$0xff]
      %v2123 = vld [vmem:[%s16 + $0x28] sm:$0xff]
      %v2124 = vld [vmem:[%s16 + $0x30] sm:$0xff]
      %v2125 = vld [vmem:[%s16 + $0x38] sm:$0xff]
      %v2126 = vld [vmem:[%s16 + $0x40] sm:$0xff]
      %v2127 = vld [vmem:[%s16 + $0x48] sm:$0xff]
      %v2128 = vld [vmem:[%s16 + $0x50] sm:$0xff]
      %v2129 = vld [vmem:[%s16 + $0x58] sm:$0xff]
      %v2130 = vld [vmem:[%s16 + $0x60] sm:$0xff]
      %v2131 = vld [vmem:[%s16 + $0x68] sm:$0xff]
      %v2132 = vld [vmem:[%s16 + $0x70] sm:$0xff]
      %v2133 = vld [vmem:[%s16 + $0x78] sm:$0xff]
      %v2134 = vld [vmem:[%s16 + $0x80] sm:$0xff]
      %v2135 = vld [vmem:[%s16 + $0x88] sm:$0xff]
      %v2136 = vld [vmem:[%s16 + $0x90] sm:$0xff]
      %v2137 = vld [vmem:[%s16 + $0x98] sm:$0xff]
      %v2138 = vld [vmem:[%s17] sm:$0x1]
      %v2139 = vld [vmem:[%s18] sm:$0x1]
      %v2140 = vld [vmem:[%s19] sm:$0x1]
      %s2141 = scalar_lea.vmem [#allocation2], 32
      %v2142 = vld [vmem:[%s2141] sm:$0xff]
      %v2143 = vld [vmem:[%s2141 + $0x8] sm:$0xff]
      %s2144 = scalar_lea.vmem [#allocation2], 48
      %v2145 = vld [vmem:[%s2144] sm:$0xff]
      %v2146 = vld [vmem:[%s2144 + $0x8] sm:$0xff]
      %2149 = vrot.lane.b32.xlu0 %v2014, 32
      %v2150 = vpop.permute.xlu0 %2149
      %2151 = vrot.lane.b32.xlu0 %v2015, 32
      %v2152 = vpop.permute.xlu0 %2151
      %v2155 = vsel %vm948, %v1897, %v2150
      %v2156 = vsel %vm948, %v1898, %v2152
      %2157 = vmatpush.msra.mxu0 0.0
      %2158 = vmatpush.msra.mxu0 0.0
      %2159 = vmatpush.msra.mxu0 0.0
      %2160 = vmatpush.msra.mxu0 0.0
      %2161 = vmatpush.msra.mxu0 0.0
      %2162 = vmatpush.msra.mxu0 0.0
      %2163 = vmatpush.msra.mxu0 0.0
      %2164 = vmatpush.msra.mxu0 0.0
      %2165 = vmatpush.msra.mxu0 0.0
      %2166 = vmatpush.msra.mxu0 0.0
      %2167 = vmatpush.msra.mxu0 0.0
      %2168 = vmatpush.msra.mxu0 0.0
      %2169 = vmatpush.msra.mxu0 0.0
      %2170 = vmatpush.msra.mxu0 0.0
      %2171 = vmatpush.msra.mxu0 %v2156
      %2172 = vmatpush.msra.mxu0 %v2155
      %2173 = vmatmul.f32.gmra.mxu0 %v829
      %v2174 = vpop.f32.mrf.mxu0
      %v2175 = vadd.f32 0.0, %v2174
      %2176 = vmatmul.f32.gmra.mxu0 %v832
      %v2177 = vpop.f32.mrf.mxu0
      %v2178 = vadd.f32 0.0, %v2177
      %2179 = vdwg.mxu0
      %2180 = vmatpush.msra.mxu0 0.0
      %2181 = vmatpush.msra.mxu0 0.0
      %2182 = vmatpush.msra.mxu0 0.0
      %2183 = vmatpush.msra.mxu0 0.0
      %2184 = vmatpush.msra.mxu0 0.0
      %2185 = vmatpush.msra.mxu0 0.0
      %2186 = vmatpush.msra.mxu0 0.0
      %2187 = vmatpush.msra.mxu0 0.0
      %2188 = vmatpush.msra.mxu0 0.0
      %2189 = vmatpush.msra.mxu0 0.0
      %2190 = vmatpush.msra.mxu0 0.0
      %2191 = vmatpush.msra.mxu0 0.0
      %2192 = vmatpush.msra.mxu0 0.0
      %2193 = vmatpush.msra.mxu0 0.0
      %2194 = vmatpush.msra.mxu0 %v2178
      %2195 = vmatpush.msra.mxu0 %v2175
      %2196 = vmatmul.f32.gmra.mxu0 %v829
      %v2197 = vpop.f32.mrf.mxu0
      %v2198 = vadd.f32 0.0, %v2197
      %2199 = vmatmul.f32.gmra.mxu0 %v832
      %v2200 = vpop.f32.mrf.mxu0
      %v2201 = vadd.f32 0.0, %v2200
      %2202 = vdwg.mxu0
      %v2203 = vmul.f32 %v2198, 2.0
      %v2204 = vmul.f32 %v2201, 2.0
      %v2205 = vsub.f32 %v2203, %v2155
      %v2206 = vsub.f32 %v2204, %v2156
      %2207 = vmatpush.msra.mxu0 0.0
      %2208 = vmatpush.msra.mxu0 0.0
      %2209 = vmatpush.msra.mxu0 0.0
      %2210 = vmatpush.msra.mxu0 0.0
      %2211 = vmatpush.msra.mxu0 0.0
      %2212 = vmatpush.msra.mxu0 0.0
      %2213 = vmatpush.msra.mxu0 0.0
      %2214 = vmatpush.msra.mxu0 0.0
      %2215 = vmatpush.msra.mxu0 0.0
      %2216 = vmatpush.msra.mxu0 0.0
      %2217 = vmatpush.msra.mxu0 0.0
      %2218 = vmatpush.msra.mxu0 0.0
      %2219 = vmatpush.msra.mxu0 0.0
      %2220 = vmatpush.msra.mxu0 0.0
      %2221 = vmatpush.msra.mxu0 %v2178
      %2222 = vmatpush.msra.mxu0 %v2175
      %2223 = vmatmul.f32.gmra.mxu0 %v885
      %v2224 = vpop.f32.mrf.mxu0
      %v2225 = vadd.f32 0.0, %v2224
      %2226 = vmatmul.f32.gmra.mxu0 %v888
      %v2227 = vpop.f32.mrf.mxu0
      %v2228 = vadd.f32 0.0, %v2227
      %2229 = vdwg.mxu0
      %2230 = vmatpush.msra.mxu0 0.0
      %2231 = vmatpush.msra.mxu0 0.0
      %2232 = vmatpush.msra.mxu0 0.0
      %2233 = vmatpush.msra.mxu0 0.0
      %2234 = vmatpush.msra.mxu0 0.0
      %2235 = vmatpush.msra.mxu0 0.0
      %2236 = vmatpush.msra.mxu0 0.0
      %2237 = vmatpush.msra.mxu0 0.0
      %2238 = vmatpush.msra.mxu0 0.0
      %2239 = vmatpush.msra.mxu0 0.0
      %2240 = vmatpush.msra.mxu0 0.0
      %2241 = vmatpush.msra.mxu0 0.0
      %2242 = vmatpush.msra.mxu0 0.0
      %2243 = vmatpush.msra.mxu0 0.0
      %2244 = vmatpush.msra.mxu0 %v2228
      %2245 = vmatpush.msra.mxu0 %v2225
      %2246 = vmatmul.f32.gmra.mxu0 %v885
      %v2247 = vpop.f32.mrf.mxu0
      %v2248 = vadd.f32 0.0, %v2247
      %2249 = vmatmul.f32.gmra.mxu0 %v888
      %v2250 = vpop.f32.mrf.mxu0
      %v2251 = vadd.f32 0.0, %v2250
      %2252 = vdwg.mxu0
      %v2253 = vmul.f32 %v2248, 2.0
      %v2254 = vmul.f32 %v2251, 2.0
      %v2255 = vsub.f32 %v2253, %v2175
      %v2256 = vsub.f32 %v2254, %v2178
      %2259 = vrot.lane.b32.xlu0 %v2145, 32
      %v2260 = vpop.permute.xlu0 %2259
      %2261 = vrot.lane.b32.xlu0 %v2146, 32
      %v2262 = vpop.permute.xlu0 %2261
      %v2265 = vsel %vm948, %v2142, %v2260
      %v2266 = vsel %vm948, %v2143, %v2262
      %2267 = vmatpush.msra.mxu0 0.0
      %2268 = vmatpush.msra.mxu0 0.0
      %2269 = vmatpush.msra.mxu0 0.0
      %2270 = vmatpush.msra.mxu0 0.0
      %2271 = vmatpush.msra.mxu0 0.0
      %2272 = vmatpush.msra.mxu0 0.0
      %2273 = vmatpush.msra.mxu0 0.0
      %2274 = vmatpush.msra.mxu0 0.0
      %2275 = vmatpush.msra.mxu0 0.0
      %2276 = vmatpush.msra.mxu0 0.0
      %2277 = vmatpush.msra.mxu0 0.0
      %2278 = vmatpush.msra.mxu0 0.0
      %2279 = vmatpush.msra.mxu0 0.0
      %2280 = vmatpush.msra.mxu0 0.0
      %2281 = vmatpush.msra.mxu0 %v2266
      %2282 = vmatpush.msra.mxu0 %v2265
      %2283 = vmatmul.f32.gmra.mxu0 %v829
      %v2284 = vpop.f32.mrf.mxu0
      %v2285 = vadd.f32 0.0, %v2284
      %2286 = vmatmul.f32.gmra.mxu0 %v832
      %v2287 = vpop.f32.mrf.mxu0
      %v2288 = vadd.f32 0.0, %v2287
      %2289 = vdwg.mxu0
      %2290 = vmatpush.msra.mxu0 0.0
      %2291 = vmatpush.msra.mxu0 0.0
      %2292 = vmatpush.msra.mxu0 0.0
      %2293 = vmatpush.msra.mxu0 0.0
      %2294 = vmatpush.msra.mxu0 0.0
      %2295 = vmatpush.msra.mxu0 0.0
      %2296 = vmatpush.msra.mxu0 0.0
      %2297 = vmatpush.msra.mxu0 0.0
      %2298 = vmatpush.msra.mxu0 0.0
      %2299 = vmatpush.msra.mxu0 0.0
      %2300 = vmatpush.msra.mxu0 0.0
      %2301 = vmatpush.msra.mxu0 0.0
      %2302 = vmatpush.msra.mxu0 0.0
      %2303 = vmatpush.msra.mxu0 0.0
      %2304 = vmatpush.msra.mxu0 %v2288
      %2305 = vmatpush.msra.mxu0 %v2285
      %2306 = vmatmul.f32.gmra.mxu0 %v829
      %v2307 = vpop.f32.mrf.mxu0
      %v2308 = vadd.f32 0.0, %v2307
      %2309 = vmatmul.f32.gmra.mxu0 %v832
      %v2310 = vpop.f32.mrf.mxu0
      %v2311 = vadd.f32 0.0, %v2310
      %2312 = vdwg.mxu0
      %v2313 = vmul.f32 %v2308, 2.0
      %v2314 = vmul.f32 %v2311, 2.0
      %v2315 = vsub.f32 %v2313, %v2265
      %v2316 = vsub.f32 %v2314, %v2266
      %2317 = vmatpush.msra.mxu0 0.0
      %2318 = vmatpush.msra.mxu0 0.0
      %2319 = vmatpush.msra.mxu0 0.0
      %2320 = vmatpush.msra.mxu0 0.0
      %2321 = vmatpush.msra.mxu0 0.0
      %2322 = vmatpush.msra.mxu0 0.0
      %2323 = vmatpush.msra.mxu0 0.0
      %2324 = vmatpush.msra.mxu0 0.0
      %2325 = vmatpush.msra.mxu0 0.0
      %2326 = vmatpush.msra.mxu0 0.0
      %2327 = vmatpush.msra.mxu0 0.0
      %2328 = vmatpush.msra.mxu0 0.0
      %2329 = vmatpush.msra.mxu0 0.0
      %2330 = vmatpush.msra.mxu0 0.0
      %2331 = vmatpush.msra.mxu0 %v2288
      %2332 = vmatpush.msra.mxu0 %v2285
      %2333 = vmatmul.f32.gmra.mxu0 %v885
      %v2334 = vpop.f32.mrf.mxu0
      %v2335 = vadd.f32 0.0, %v2334
      %2336 = vmatmul.f32.gmra.mxu0 %v888
      %v2337 = vpop.f32.mrf.mxu0
      %v2338 = vadd.f32 0.0, %v2337
      %2339 = vdwg.mxu0
      %2340 = vmatpush.msra.mxu0 0.0
      %2341 = vmatpush.msra.mxu0 0.0
      %2342 = vmatpush.msra.mxu0 0.0
      %2343 = vmatpush.msra.mxu0 0.0
      %2344 = vmatpush.msra.mxu0 0.0
      %2345 = vmatpush.msra.mxu0 0.0
      %2346 = vmatpush.msra.mxu0 0.0
      %2347 = vmatpush.msra.mxu0 0.0
      %2348 = vmatpush.msra.mxu0 0.0
      %2349 = vmatpush.msra.mxu0 0.0
      %2350 = vmatpush.msra.mxu0 0.0
      %2351 = vmatpush.msra.mxu0 0.0
      %2352 = vmatpush.msra.mxu0 0.0
      %2353 = vmatpush.msra.mxu0 0.0
      %2354 = vmatpush.msra.mxu0 %v2338
      %2355 = vmatpush.msra.mxu0 %v2335
      %2356 = vmatmul.f32.gmra.mxu0 %v885
      %v2357 = vpop.f32.mrf.mxu0
      %v2358 = vadd.f32 0.0, %v2357
      %2359 = vmatmul.f32.gmra.mxu0 %v888
      %v2360 = vpop.f32.mrf.mxu0
      %v2361 = vadd.f32 0.0, %v2360
      %2362 = vdwg.mxu0
      %v2363 = vmul.f32 %v2358, 2.0
      %v2364 = vmul.f32 %v2361, 2.0
      %v2365 = vsub.f32 %v2363, %v2285
      %v2366 = vsub.f32 %v2364, %v2288
      %2369 = vrot.lane.b32.xlu0 %v2175, 32
      %v2370 = vpop.permute.xlu0 %2369
      %2371 = vrot.lane.b32.xlu0 %v2178, 32
      %v2372 = vpop.permute.xlu0 %2371
      %2377 = vrot.lane.b32.xlu0 %v2205, 64
      %v2378 = vpop.permute.xlu0 %2377
      %2379 = vrot.lane.b32.xlu0 %v2206, 64
      %v2380 = vpop.permute.xlu0 %2379
      %2385 = vrot.lane.b32.xlu0 %v2225, 96
      %v2386 = vpop.permute.xlu0 %2385
      %2387 = vrot.lane.b32.xlu0 %v2228, 96
      %v2388 = vpop.permute.xlu0 %2387
      %v2391 = vsel %vm948, %v2155, %v2370
      %v2392 = vsel %vm948, %v2156, %v2372
      %v2393 = vsel %vm1154, %v2391, %v2378
      %v2394 = vsel %vm1154, %v2392, %v2380
      %v2395 = vsel %vm1157, %v2393, %v2386
      %v2396 = vsel %vm1157, %v2394, %v2388
      %2399 = vrot.lane.b32.xlu0 %v2155, 96
      %v2400 = vpop.permute.xlu0 %2399
      %2401 = vrot.lane.b32.xlu0 %v2156, 96
      %v2402 = vpop.permute.xlu0 %2401
      %2405 = vrot.lane.b32.xlu0 %v2205, 32
      %v2406 = vpop.permute.xlu0 %2405
      %2407 = vrot.lane.b32.xlu0 %v2206, 32
      %v2408 = vpop.permute.xlu0 %2407
      %2411 = vrot.lane.b32.xlu0 %v2225, 64
      %v2412 = vpop.permute.xlu0 %2411
      %2413 = vrot.lane.b32.xlu0 %v2228, 64
      %v2414 = vpop.permute.xlu0 %2413
      %2419 = vrot.lane.b32.xlu0 %v2255, 96
      %v2420 = vpop.permute.xlu0 %2419
      %2421 = vrot.lane.b32.xlu0 %v2256, 96
      %v2422 = vpop.permute.xlu0 %2421
      %v2423 = vsel %vm948, %v2400, %v2175
      %v2424 = vsel %vm948, %v2402, %v2178
      %v2425 = vsel %vm1154, %v2423, %v2406
      %v2426 = vsel %vm1154, %v2424, %v2408
      %v2427 = vsel %vm1157, %v2425, %v2412
      %v2428 = vsel %vm1157, %v2426, %v2414
      %2431 = vrot.lane.b32.xlu0 %v2285, 32
      %v2432 = vpop.permute.xlu0 %2431
      %2433 = vrot.lane.b32.xlu0 %v2288, 32
      %v2434 = vpop.permute.xlu0 %2433
      %2439 = vrot.lane.b32.xlu0 %v2315, 64
      %v2440 = vpop.permute.xlu0 %2439
      %2441 = vrot.lane.b32.xlu0 %v2316, 64
      %v2442 = vpop.permute.xlu0 %2441
      %2447 = vrot.lane.b32.xlu0 %v2335, 96
      %v2448 = vpop.permute.xlu0 %2447
      %2449 = vrot.lane.b32.xlu0 %v2338, 96
      %v2450 = vpop.permute.xlu0 %2449
      %v2453 = vsel %vm948, %v2265, %v2432
      %v2454 = vsel %vm948, %v2266, %v2434
      %v2455 = vsel %vm1154, %v2453, %v2440
      %v2456 = vsel %vm1154, %v2454, %v2442
      %v2457 = vsel %vm1157, %v2455, %v2448
      %v2458 = vsel %vm1157, %v2456, %v2450
      %2461 = vrot.lane.b32.xlu0 %v2265, 96
      %v2462 = vpop.permute.xlu0 %2461
      %2463 = vrot.lane.b32.xlu0 %v2266, 96
      %v2464 = vpop.permute.xlu0 %2463
      %2467 = vrot.lane.b32.xlu0 %v2315, 32
      %v2468 = vpop.permute.xlu0 %2467
      %2469 = vrot.lane.b32.xlu0 %v2316, 32
      %v2470 = vpop.permute.xlu0 %2469
      %2473 = vrot.lane.b32.xlu0 %v2335, 64
      %v2474 = vpop.permute.xlu0 %2473
      %2475 = vrot.lane.b32.xlu0 %v2338, 64
      %v2476 = vpop.permute.xlu0 %2475
      %2481 = vrot.lane.b32.xlu0 %v2365, 96
      %v2482 = vpop.permute.xlu0 %2481
      %2483 = vrot.lane.b32.xlu0 %v2366, 96
      %v2484 = vpop.permute.xlu0 %2483
      %v2485 = vsel %vm948, %v2462, %v2285
      %v2486 = vsel %vm948, %v2464, %v2288
      %v2487 = vsel %vm1154, %v2485, %v2468
      %v2488 = vsel %vm1154, %v2486, %v2470
      %v2489 = vsel %vm1157, %v2487, %v2474
      %v2490 = vsel %vm1157, %v2488, %v2476
      %v2491 = vsel %vm948, %v2365, 0
      %v2493 = vsel %vm948, %v2366, 0
      %2495 = vmatpush.msra.mxu0 %v2093
      %2496 = vmatpush.msra.mxu0 %v2092
      %2497 = vmatpush.msra.mxu0 %v2091
      %2498 = vmatpush.msra.mxu0 %v2090
      %2499 = vmatpush.msra.mxu0 %v2089
      %2500 = vmatpush.msra.mxu0 %v2088
      %2501 = vmatpush.msra.mxu0 %v2087
      %2502 = vmatpush.msra.mxu0 %v2086
      %2503 = vmatpush.msra.mxu0 %v2085
      %2504 = vmatpush.msra.mxu0 %v2084
      %2505 = vmatpush.msra.mxu0 %v2083
      %2506 = vmatpush.msra.mxu0 %v2082
      %2507 = vmatpush.msra.mxu0 %v2081
      %2508 = vmatpush.msra.mxu0 %v2080
      %2509 = vmatpush.msra.mxu0 %v2079
      %2510 = vmatpush.msra.mxu0 %v2078
      %2511 = vmatmul.f32.gmra.mxu0 %v2457
      %v2512 = vpop.f32.mrf.mxu0
      %v2513 = vadd.f32 0.0, %v2512
      %2514 = vmatmul.f32.gmra.mxu0 %v2458
      %v2515 = vpop.f32.mrf.mxu0
      %v2516 = vadd.f32 0.0, %v2515
      %2517 = vdwg.mxu0
      %2518 = vmatpush.msra.mxu0 0.0
      %2519 = vmatpush.msra.mxu0 0.0
      %2520 = vmatpush.msra.mxu0 0.0
      %2521 = vmatpush.msra.mxu0 0.0
      %2522 = vmatpush.msra.mxu0 0.0
      %2523 = vmatpush.msra.mxu0 0.0
      %2524 = vmatpush.msra.mxu0 0.0
      %2525 = vmatpush.msra.mxu0 0.0
      %2526 = vmatpush.msra.mxu0 0.0
      %2527 = vmatpush.msra.mxu0 0.0
      %2528 = vmatpush.msra.mxu0 0.0
      %2529 = vmatpush.msra.mxu0 0.0
      %2530 = vmatpush.msra.mxu0 %v2097
      %2531 = vmatpush.msra.mxu0 %v2096
      %2532 = vmatpush.msra.mxu0 %v2095
      %2533 = vmatpush.msra.mxu0 %v2094
      %2534 = vmatmul.f32.gmra.mxu0 %v2491
      %v2535 = vpop.f32.mrf.mxu0
      %v2536 = vadd.f32 %v2513, %v2535
      %2537 = vmatmul.f32.gmra.mxu0 %v2493
      %v2538 = vpop.f32.mrf.mxu0
      %v2539 = vadd.f32 %v2516, %v2538
      %2540 = vdwg.mxu0
      %v2541 = vsel %vm948, %v2255, 0
      %v2543 = vsel %vm948, %v2256, 0
      %2545 = vmatpush.msra.mxu0 %v2033
      %2546 = vmatpush.msra.mxu0 %v2032
      %2547 = vmatpush.msra.mxu0 %v2031
      %2548 = vmatpush.msra.mxu0 %v2030
      %2549 = vmatpush.msra.mxu0 %v2029
      %2550 = vmatpush.msra.mxu0 %v2028
      %2551 = vmatpush.msra.mxu0 %v2027
      %2552 = vmatpush.msra.mxu0 %v2026
      %2553 = vmatpush.msra.mxu0 %v2025
      %2554 = vmatpush.msra.mxu0 %v2024
      %2555 = vmatpush.msra.mxu0 %v2023
      %2556 = vmatpush.msra.mxu0 %v2022
      %2557 = vmatpush.msra.mxu0 %v2021
      %2558 = vmatpush.msra.mxu0 %v2020
      %2559 = vmatpush.msra.mxu0 %v2019
      %2560 = vmatpush.msra.mxu0 %v2018
      %2561 = vmatmul.f32.gmra.mxu0 %v2395
      %v2562 = vpop.f32.mrf.mxu0
      %v2563 = vadd.f32 %v2536, %v2562
      %2564 = vmatmul.f32.gmra.mxu0 %v2396
      %v2565 = vpop.f32.mrf.mxu0
      %v2566 = vadd.f32 %v2539, %v2565
      %2567 = vdwg.mxu0
      %2568 = vmatpush.msra.mxu0 0.0
      %2569 = vmatpush.msra.mxu0 0.0
      %2570 = vmatpush.msra.mxu0 0.0
      %2571 = vmatpush.msra.mxu0 0.0
      %2572 = vmatpush.msra.mxu0 0.0
      %2573 = vmatpush.msra.mxu0 0.0
      %2574 = vmatpush.msra.mxu0 0.0
      %2575 = vmatpush.msra.mxu0 0.0
      %2576 = vmatpush.msra.mxu0 0.0
      %2577 = vmatpush.msra.mxu0 0.0
      %2578 = vmatpush.msra.mxu0 0.0
      %2579 = vmatpush.msra.mxu0 0.0
      %2580 = vmatpush.msra.mxu0 %v2037
      %2581 = vmatpush.msra.mxu0 %v2036
      %2582 = vmatpush.msra.mxu0 %v2035
      %2583 = vmatpush.msra.mxu0 %v2034
      %2584 = vmatmul.f32.gmra.mxu0 %v2541
      %v2585 = vpop.f32.mrf.mxu0
      %v2586 = vadd.f32 %v2563, %v2585
      %2587 = vmatmul.f32.gmra.mxu0 %v2543
      %v2588 = vpop.f32.mrf.mxu0
      %v2589 = vadd.f32 %v2566, %v2588
      %2590 = vdwg.mxu0
      %v2592 = vperm.slane %v2138, 0
      %v2594 = vadd.f32 %v2586, %v2592
      %v2595 = vadd.f32 %v2589, %v2592
      %v2596 = vxor.u32 %v2594, 2147483648
      %v2597 = vxor.u32 %v2595, 2147483648
      %v2598 = vmul.f32 %v2596, 1.442695
      %v2599 = vpow.pop %v2598
      %v2600 = vmul.f32 %v2597, 1.442695
      %v2601 = vpow.pop %v2600
      %v2602 = vadd.f32 %v2599, 1.0
      %v2603 = vadd.f32 %v2601, 1.0
      %v2604 = vrcp.pop %v2602
      %v2605 = vmul.f32 %v2602, %v2604
      %v2606 = vsub.f32 1.0, %v2605
      %v2607 = vmul.f32 %v2604, %v2606
      %v2608 = vadd.f32 %v2604, %v2607
      %vm2609 = vweird.f32 %v2602
      %vm2610 = vweird.f32 %v2604
      %vm2611 = vmor %vm2609, %vm2610
      %v2612 = vsel %vm2611, %v2604, %v2608
      %v2613 = vand.u32 2147483647, %v2602
      %vm2614 = vcmp.eq.f32.partialorder %v2613, 8.507059e+37
      %v2615 = vand.u32 %v2602, 2147483648
      %v2616 = vor.u32 1.1754944e-38, %v2615
      %v2617 = vsel %vm2614, %v2616, %v2612
      %v2618 = vmul.f32 1.0, %v2617
      %v2619 = vrcp.pop %v2603
      %v2620 = vmul.f32 %v2603, %v2619
      %v2621 = vsub.f32 1.0, %v2620
      %v2622 = vmul.f32 %v2619, %v2621
      %v2623 = vadd.f32 %v2619, %v2622
      %vm2624 = vweird.f32 %v2603
      %vm2625 = vweird.f32 %v2619
      %vm2626 = vmor %vm2624, %vm2625
      %v2627 = vsel %vm2626, %v2619, %v2623
      %v2628 = vand.u32 2147483647, %v2603
      %vm2629 = vcmp.eq.f32.partialorder %v2628, 8.507059e+37
      %v2630 = vand.u32 %v2603, 2147483648
      %v2631 = vor.u32 1.1754944e-38, %v2630
      %v2632 = vsel %vm2629, %v2631, %v2627
      %v2633 = vmul.f32 1.0, %v2632
      %2634 = vmatpush.msra.mxu0 %v2113
      %2635 = vmatpush.msra.mxu0 %v2112
      %2636 = vmatpush.msra.mxu0 %v2111
      %2637 = vmatpush.msra.mxu0 %v2110
      %2638 = vmatpush.msra.mxu0 %v2109
      %2639 = vmatpush.msra.mxu0 %v2108
      %2640 = vmatpush.msra.mxu0 %v2107
      %2641 = vmatpush.msra.mxu0 %v2106
      %2642 = vmatpush.msra.mxu0 %v2105
      %2643 = vmatpush.msra.mxu0 %v2104
      %2644 = vmatpush.msra.mxu0 %v2103
      %2645 = vmatpush.msra.mxu0 %v2102
      %2646 = vmatpush.msra.mxu0 %v2101
      %2647 = vmatpush.msra.mxu0 %v2100
      %2648 = vmatpush.msra.mxu0 %v2099
      %2649 = vmatpush.msra.mxu0 %v2098
      %2650 = vmatmul.f32.gmra.mxu0 %v2457
      %v2651 = vpop.f32.mrf.mxu0
      %v2652 = vadd.f32 0.0, %v2651
      %2653 = vmatmul.f32.gmra.mxu0 %v2458
      %v2654 = vpop.f32.mrf.mxu0
      %v2655 = vadd.f32 0.0, %v2654
      %2656 = vdwg.mxu0
      %2657 = vmatpush.msra.mxu0 0.0
      %2658 = vmatpush.msra.mxu0 0.0
      %2659 = vmatpush.msra.mxu0 0.0
      %2660 = vmatpush.msra.mxu0 0.0
      %2661 = vmatpush.msra.mxu0 0.0
      %2662 = vmatpush.msra.mxu0 0.0
      %2663 = vmatpush.msra.mxu0 0.0
      %2664 = vmatpush.msra.mxu0 0.0
      %2665 = vmatpush.msra.mxu0 0.0
      %2666 = vmatpush.msra.mxu0 0.0
      %2667 = vmatpush.msra.mxu0 0.0
      %2668 = vmatpush.msra.mxu0 0.0
      %2669 = vmatpush.msra.mxu0 %v2117
      %2670 = vmatpush.msra.mxu0 %v2116
      %2671 = vmatpush.msra.mxu0 %v2115
      %2672 = vmatpush.msra.mxu0 %v2114
      %2673 = vmatmul.f32.gmra.mxu0 %v2491
      %v2674 = vpop.f32.mrf.mxu0
      %v2675 = vadd.f32 %v2652, %v2674
      %2676 = vmatmul.f32.gmra.mxu0 %v2493
      %v2677 = vpop.f32.mrf.mxu0
      %v2678 = vadd.f32 %v2655, %v2677
      %2679 = vdwg.mxu0
      %2680 = vmatpush.msra.mxu0 %v2053
      %2681 = vmatpush.msra.mxu0 %v2052
      %2682 = vmatpush.msra.mxu0 %v2051
      %2683 = vmatpush.msra.mxu0 %v2050
      %2684 = vmatpush.msra.mxu0 %v2049
      %2685 = vmatpush.msra.mxu0 %v2048
      %2686 = vmatpush.msra.mxu0 %v2047
      %2687 = vmatpush.msra.mxu0 %v2046
      %2688 = vmatpush.msra.mxu0 %v2045
      %2689 = vmatpush.msra.mxu0 %v2044
      %2690 = vmatpush.msra.mxu0 %v2043
      %2691 = vmatpush.msra.mxu0 %v2042
      %2692 = vmatpush.msra.mxu0 %v2041
      %2693 = vmatpush.msra.mxu0 %v2040
      %2694 = vmatpush.msra.mxu0 %v2039
      %2695 = vmatpush.msra.mxu0 %v2038
      %2696 = vmatmul.f32.gmra.mxu0 %v2395
      %v2697 = vpop.f32.mrf.mxu0
      %v2698 = vadd.f32 %v2675, %v2697
      %2699 = vmatmul.f32.gmra.mxu0 %v2396
      %v2700 = vpop.f32.mrf.mxu0
      %v2701 = vadd.f32 %v2678, %v2700
      %2702 = vdwg.mxu0
      %2703 = vmatpush.msra.mxu0 0.0
      %2704 = vmatpush.msra.mxu0 0.0
      %2705 = vmatpush.msra.mxu0 0.0
      %2706 = vmatpush.msra.mxu0 0.0
      %2707 = vmatpush.msra.mxu0 0.0
      %2708 = vmatpush.msra.mxu0 0.0
      %2709 = vmatpush.msra.mxu0 0.0
      %2710 = vmatpush.msra.mxu0 0.0
      %2711 = vmatpush.msra.mxu0 0.0
      %2712 = vmatpush.msra.mxu0 0.0
      %2713 = vmatpush.msra.mxu0 0.0
      %2714 = vmatpush.msra.mxu0 0.0
      %2715 = vmatpush.msra.mxu0 %v2057
      %2716 = vmatpush.msra.mxu0 %v2056
      %2717 = vmatpush.msra.mxu0 %v2055
      %2718 = vmatpush.msra.mxu0 %v2054
      %2719 = vmatmul.f32.gmra.mxu0 %v2541
      %v2720 = vpop.f32.mrf.mxu0
      %v2721 = vadd.f32 %v2698, %v2720
      %2722 = vmatmul.f32.gmra.mxu0 %v2543
      %v2723 = vpop.f32.mrf.mxu0
      %v2724 = vadd.f32 %v2701, %v2723
      %2725 = vdwg.mxu0
      %v2727 = vperm.slane %v2139, 0
      %v2729 = vadd.f32 %v2721, %v2727
      %v2730 = vadd.f32 %v2724, %v2727
      %v2731 = vxor.u32 %v2729, 2147483648
      %v2732 = vxor.u32 %v2730, 2147483648
      %v2733 = vmul.f32 %v2731, 1.442695
      %v2734 = vpow.pop %v2733
      %v2735 = vmul.f32 %v2732, 1.442695
      %v2736 = vpow.pop %v2735
      %v2737 = vadd.f32 %v2734, 1.0
      %v2738 = vadd.f32 %v2736, 1.0
      %v2739 = vrcp.pop %v2737
      %v2740 = vmul.f32 %v2737, %v2739
      %v2741 = vsub.f32 1.0, %v2740
      %v2742 = vmul.f32 %v2739, %v2741
      %v2743 = vadd.f32 %v2739, %v2742
      %vm2744 = vweird.f32 %v2737
      %vm2745 = vweird.f32 %v2739
      %vm2746 = vmor %vm2744, %vm2745
      %v2747 = vsel %vm2746, %v2739, %v2743
      %v2748 = vand.u32 2147483647, %v2737
      %vm2749 = vcmp.eq.f32.partialorder %v2748, 8.507059e+37
      %v2750 = vand.u32 %v2737, 2147483648
      %v2751 = vor.u32 1.1754944e-38, %v2750
      %v2752 = vsel %vm2749, %v2751, %v2747
      %v2753 = vmul.f32 1.0, %v2752
      %v2754 = vrcp.pop %v2738
      %v2755 = vmul.f32 %v2738, %v2754
      %v2756 = vsub.f32 1.0, %v2755
      %v2757 = vmul.f32 %v2754, %v2756
      %v2758 = vadd.f32 %v2754, %v2757
      %vm2759 = vweird.f32 %v2738
      %vm2760 = vweird.f32 %v2754
      %vm2761 = vmor %vm2759, %vm2760
      %v2762 = vsel %vm2761, %v2754, %v2758
      %v2763 = vand.u32 2147483647, %v2738
      %vm2764 = vcmp.eq.f32.partialorder %v2763, 8.507059e+37
      %v2765 = vand.u32 %v2738, 2147483648
      %v2766 = vor.u32 1.1754944e-38, %v2765
      %v2767 = vsel %vm2764, %v2766, %v2762
      %v2768 = vmul.f32 1.0, %v2767
      %v2769 = vsel %vm948, %v2482, 0
      %v2771 = vsel %vm948, %v2484, 0
      %2773 = vmatpush.msra.mxu0 %v2093
      %2774 = vmatpush.msra.mxu0 %v2092
      %2775 = vmatpush.msra.mxu0 %v2091
      %2776 = vmatpush.msra.mxu0 %v2090
      %2777 = vmatpush.msra.mxu0 %v2089
      %2778 = vmatpush.msra.mxu0 %v2088
      %2779 = vmatpush.msra.mxu0 %v2087
      %2780 = vmatpush.msra.mxu0 %v2086
      %2781 = vmatpush.msra.mxu0 %v2085
      %2782 = vmatpush.msra.mxu0 %v2084
      %2783 = vmatpush.msra.mxu0 %v2083
      %2784 = vmatpush.msra.mxu0 %v2082
      %2785 = vmatpush.msra.mxu0 %v2081
      %2786 = vmatpush.msra.mxu0 %v2080
      %2787 = vmatpush.msra.mxu0 %v2079
      %2788 = vmatpush.msra.mxu0 %v2078
      %2789 = vmatmul.f32.gmra.mxu0 %v2489
      %v2790 = vpop.f32.mrf.mxu0
      %v2791 = vadd.f32 0.0, %v2790
      %2792 = vmatmul.f32.gmra.mxu0 %v2490
      %v2793 = vpop.f32.mrf.mxu0
      %v2794 = vadd.f32 0.0, %v2793
      %2795 = vdwg.mxu0
      %2796 = vmatpush.msra.mxu0 0.0
      %2797 = vmatpush.msra.mxu0 0.0
      %2798 = vmatpush.msra.mxu0 0.0
      %2799 = vmatpush.msra.mxu0 0.0
      %2800 = vmatpush.msra.mxu0 0.0
      %2801 = vmatpush.msra.mxu0 0.0
      %2802 = vmatpush.msra.mxu0 0.0
      %2803 = vmatpush.msra.mxu0 0.0
      %2804 = vmatpush.msra.mxu0 0.0
      %2805 = vmatpush.msra.mxu0 0.0
      %2806 = vmatpush.msra.mxu0 0.0
      %2807 = vmatpush.msra.mxu0 0.0
      %2808 = vmatpush.msra.mxu0 %v2097
      %2809 = vmatpush.msra.mxu0 %v2096
      %2810 = vmatpush.msra.mxu0 %v2095
      %2811 = vmatpush.msra.mxu0 %v2094
      %2812 = vmatmul.f32.gmra.mxu0 %v2769
      %v2813 = vpop.f32.mrf.mxu0
      %v2814 = vadd.f32 %v2791, %v2813
      %2815 = vmatmul.f32.gmra.mxu0 %v2771
      %v2816 = vpop.f32.mrf.mxu0
      %v2817 = vadd.f32 %v2794, %v2816
      %2818 = vdwg.mxu0
      %v2819 = vsel %vm948, %v2420, 0
      %v2821 = vsel %vm948, %v2422, 0
      %2823 = vmatpush.msra.mxu0 %v2033
      %2824 = vmatpush.msra.mxu0 %v2032
      %2825 = vmatpush.msra.mxu0 %v2031
      %2826 = vmatpush.msra.mxu0 %v2030
      %2827 = vmatpush.msra.mxu0 %v2029
      %2828 = vmatpush.msra.mxu0 %v2028
      %2829 = vmatpush.msra.mxu0 %v2027
      %2830 = vmatpush.msra.mxu0 %v2026
      %2831 = vmatpush.msra.mxu0 %v2025
      %2832 = vmatpush.msra.mxu0 %v2024
      %2833 = vmatpush.msra.mxu0 %v2023
      %2834 = vmatpush.msra.mxu0 %v2022
      %2835 = vmatpush.msra.mxu0 %v2021
      %2836 = vmatpush.msra.mxu0 %v2020
      %2837 = vmatpush.msra.mxu0 %v2019
      %2838 = vmatpush.msra.mxu0 %v2018
      %2839 = vmatmul.f32.gmra.mxu0 %v2427
      %v2840 = vpop.f32.mrf.mxu0
      %v2841 = vadd.f32 %v2814, %v2840
      %2842 = vmatmul.f32.gmra.mxu0 %v2428
      %v2843 = vpop.f32.mrf.mxu0
      %v2844 = vadd.f32 %v2817, %v2843
      %2845 = vdwg.mxu0
      %2846 = vmatpush.msra.mxu0 0.0
      %2847 = vmatpush.msra.mxu0 0.0
      %2848 = vmatpush.msra.mxu0 0.0
      %2849 = vmatpush.msra.mxu0 0.0
      %2850 = vmatpush.msra.mxu0 0.0
      %2851 = vmatpush.msra.mxu0 0.0
      %2852 = vmatpush.msra.mxu0 0.0
      %2853 = vmatpush.msra.mxu0 0.0
      %2854 = vmatpush.msra.mxu0 0.0
      %2855 = vmatpush.msra.mxu0 0.0
      %2856 = vmatpush.msra.mxu0 0.0
      %2857 = vmatpush.msra.mxu0 0.0
      %2858 = vmatpush.msra.mxu0 %v2037
      %2859 = vmatpush.msra.mxu0 %v2036
      %2860 = vmatpush.msra.mxu0 %v2035
      %2861 = vmatpush.msra.mxu0 %v2034
      %2862 = vmatmul.f32.gmra.mxu0 %v2819
      %v2863 = vpop.f32.mrf.mxu0
      %v2864 = vadd.f32 %v2841, %v2863
      %2865 = vmatmul.f32.gmra.mxu0 %v2821
      %v2866 = vpop.f32.mrf.mxu0
      %v2867 = vadd.f32 %v2844, %v2866
      %2868 = vdwg.mxu0
      %v2869 = vadd.f32 %v2864, %v2592
      %v2870 = vadd.f32 %v2867, %v2592
      %v2871 = vxor.u32 %v2869, 2147483648
      %v2872 = vxor.u32 %v2870, 2147483648
      %v2873 = vmul.f32 %v2871, 1.442695
      %v2874 = vpow.pop %v2873
      %v2875 = vmul.f32 %v2872, 1.442695
      %v2876 = vpow.pop %v2875
      %v2877 = vadd.f32 %v2874, 1.0
      %v2878 = vadd.f32 %v2876, 1.0
      %v2879 = vrcp.pop %v2877
      %v2880 = vmul.f32 %v2877, %v2879
      %v2881 = vsub.f32 1.0, %v2880
      %v2882 = vmul.f32 %v2879, %v2881
      %v2883 = vadd.f32 %v2879, %v2882
      %vm2884 = vweird.f32 %v2877
      %vm2885 = vweird.f32 %v2879
      %vm2886 = vmor %vm2884, %vm2885
      %v2887 = vsel %vm2886, %v2879, %v2883
      %v2888 = vand.u32 2147483647, %v2877
      %vm2889 = vcmp.eq.f32.partialorder %v2888, 8.507059e+37
      %v2890 = vand.u32 %v2877, 2147483648
      %v2891 = vor.u32 1.1754944e-38, %v2890
      %v2892 = vsel %vm2889, %v2891, %v2887
      %v2893 = vmul.f32 1.0, %v2892
      %v2894 = vrcp.pop %v2878
      %v2895 = vmul.f32 %v2878, %v2894
      %v2896 = vsub.f32 1.0, %v2895
      %v2897 = vmul.f32 %v2894, %v2896
      %v2898 = vadd.f32 %v2894, %v2897
      %vm2899 = vweird.f32 %v2878
      %vm2900 = vweird.f32 %v2894
      %vm2901 = vmor %vm2899, %vm2900
      %v2902 = vsel %vm2901, %v2894, %v2898
      %v2903 = vand.u32 2147483647, %v2878
      %vm2904 = vcmp.eq.f32.partialorder %v2903, 8.507059e+37
      %v2905 = vand.u32 %v2878, 2147483648
      %v2906 = vor.u32 1.1754944e-38, %v2905
      %v2907 = vsel %vm2904, %v2906, %v2902
      %v2908 = vmul.f32 1.0, %v2907
      %2909 = vmatpush.msra.mxu0 %v2113
      %2910 = vmatpush.msra.mxu0 %v2112
      %2911 = vmatpush.msra.mxu0 %v2111
      %2912 = vmatpush.msra.mxu0 %v2110
      %2913 = vmatpush.msra.mxu0 %v2109
      %2914 = vmatpush.msra.mxu0 %v2108
      %2915 = vmatpush.msra.mxu0 %v2107
      %2916 = vmatpush.msra.mxu0 %v2106
      %2917 = vmatpush.msra.mxu0 %v2105
      %2918 = vmatpush.msra.mxu0 %v2104
      %2919 = vmatpush.msra.mxu0 %v2103
      %2920 = vmatpush.msra.mxu0 %v2102
      %2921 = vmatpush.msra.mxu0 %v2101
      %2922 = vmatpush.msra.mxu0 %v2100
      %2923 = vmatpush.msra.mxu0 %v2099
      %2924 = vmatpush.msra.mxu0 %v2098
      %2925 = vmatmul.f32.gmra.mxu0 %v2489
      %v2926 = vpop.f32.mrf.mxu0
      %v2927 = vadd.f32 0.0, %v2926
      %2928 = vmatmul.f32.gmra.mxu0 %v2490
      %v2929 = vpop.f32.mrf.mxu0
      %v2930 = vadd.f32 0.0, %v2929
      %2931 = vdwg.mxu0
      %2932 = vmatpush.msra.mxu0 0.0
      %2933 = vmatpush.msra.mxu0 0.0
      %2934 = vmatpush.msra.mxu0 0.0
      %2935 = vmatpush.msra.mxu0 0.0
      %2936 = vmatpush.msra.mxu0 0.0
      %2937 = vmatpush.msra.mxu0 0.0
      %2938 = vmatpush.msra.mxu0 0.0
      %2939 = vmatpush.msra.mxu0 0.0
      %2940 = vmatpush.msra.mxu0 0.0
      %2941 = vmatpush.msra.mxu0 0.0
      %2942 = vmatpush.msra.mxu0 0.0
      %2943 = vmatpush.msra.mxu0 0.0
      %2944 = vmatpush.msra.mxu0 %v2117
      %2945 = vmatpush.msra.mxu0 %v2116
      %2946 = vmatpush.msra.mxu0 %v2115
      %2947 = vmatpush.msra.mxu0 %v2114
      %2948 = vmatmul.f32.gmra.mxu0 %v2769
      %v2949 = vpop.f32.mrf.mxu0
      %v2950 = vadd.f32 %v2927, %v2949
      %2951 = vmatmul.f32.gmra.mxu0 %v2771
      %v2952 = vpop.f32.mrf.mxu0
      %v2953 = vadd.f32 %v2930, %v2952
      %2954 = vdwg.mxu0
      %2955 = vmatpush.msra.mxu0 %v2053
      %2956 = vmatpush.msra.mxu0 %v2052
      %2957 = vmatpush.msra.mxu0 %v2051
      %2958 = vmatpush.msra.mxu0 %v2050
      %2959 = vmatpush.msra.mxu0 %v2049
      %2960 = vmatpush.msra.mxu0 %v2048
      %2961 = vmatpush.msra.mxu0 %v2047
      %2962 = vmatpush.msra.mxu0 %v2046
      %2963 = vmatpush.msra.mxu0 %v2045
      %2964 = vmatpush.msra.mxu0 %v2044
      %2965 = vmatpush.msra.mxu0 %v2043
      %2966 = vmatpush.msra.mxu0 %v2042
      %2967 = vmatpush.msra.mxu0 %v2041
      %2968 = vmatpush.msra.mxu0 %v2040
      %2969 = vmatpush.msra.mxu0 %v2039
      %2970 = vmatpush.msra.mxu0 %v2038
      %2971 = vmatmul.f32.gmra.mxu0 %v2427
      %v2972 = vpop.f32.mrf.mxu0
      %v2973 = vadd.f32 %v2950, %v2972
      %2974 = vmatmul.f32.gmra.mxu0 %v2428
      %v2975 = vpop.f32.mrf.mxu0
      %v2976 = vadd.f32 %v2953, %v2975
      %2977 = vdwg.mxu0
      %2978 = vmatpush.msra.mxu0 0.0
      %2979 = vmatpush.msra.mxu0 0.0
      %2980 = vmatpush.msra.mxu0 0.0
      %2981 = vmatpush.msra.mxu0 0.0
      %2982 = vmatpush.msra.mxu0 0.0
      %2983 = vmatpush.msra.mxu0 0.0
      %2984 = vmatpush.msra.mxu0 0.0
      %2985 = vmatpush.msra.mxu0 0.0
      %2986 = vmatpush.msra.mxu0 0.0
      %2987 = vmatpush.msra.mxu0 0.0
      %2988 = vmatpush.msra.mxu0 0.0
      %2989 = vmatpush.msra.mxu0 0.0
      %2990 = vmatpush.msra.mxu0 %v2057
      %2991 = vmatpush.msra.mxu0 %v2056
      %2992 = vmatpush.msra.mxu0 %v2055
      %2993 = vmatpush.msra.mxu0 %v2054
      %2994 = vmatmul.f32.gmra.mxu0 %v2819
      %v2995 = vpop.f32.mrf.mxu0
      %v2996 = vadd.f32 %v2973, %v2995
      %2997 = vmatmul.f32.gmra.mxu0 %v2821
      %v2998 = vpop.f32.mrf.mxu0
      %v2999 = vadd.f32 %v2976, %v2998
      %3000 = vdwg.mxu0
      %v3001 = vadd.f32 %v2996, %v2727
      %v3002 = vadd.f32 %v2999, %v2727
      %v3003 = vxor.u32 %v3001, 2147483648
      %v3004 = vxor.u32 %v3002, 2147483648
      %v3005 = vmul.f32 %v3003, 1.442695
      %v3006 = vpow.pop %v3005
      %v3007 = vmul.f32 %v3004, 1.442695
      %v3008 = vpow.pop %v3007
      %v3009 = vadd.f32 %v3006, 1.0
      %v3010 = vadd.f32 %v3008, 1.0
      %v3011 = vrcp.pop %v3009
      %v3012 = vmul.f32 %v3009, %v3011
      %v3013 = vsub.f32 1.0, %v3012
      %v3014 = vmul.f32 %v3011, %v3013
      %v3015 = vadd.f32 %v3011, %v3014
      %vm3016 = vweird.f32 %v3009
      %vm3017 = vweird.f32 %v3011
      %vm3018 = vmor %vm3016, %vm3017
      %v3019 = vsel %vm3018, %v3011, %v3015
      %v3020 = vand.u32 2147483647, %v3009
      %vm3021 = vcmp.eq.f32.partialorder %v3020, 8.507059e+37
      %v3022 = vand.u32 %v3009, 2147483648
      %v3023 = vor.u32 1.1754944e-38, %v3022
      %v3024 = vsel %vm3021, %v3023, %v3019
      %v3025 = vmul.f32 1.0, %v3024
      %v3026 = vrcp.pop %v3010
      %v3027 = vmul.f32 %v3010, %v3026
      %v3028 = vsub.f32 1.0, %v3027
      %v3029 = vmul.f32 %v3026, %v3028
      %v3030 = vadd.f32 %v3026, %v3029
      %vm3031 = vweird.f32 %v3010
      %vm3032 = vweird.f32 %v3026
      %vm3033 = vmor %vm3031, %vm3032
      %v3034 = vsel %vm3033, %v3026, %v3030
      %v3035 = vand.u32 2147483647, %v3010
      %vm3036 = vcmp.eq.f32.partialorder %v3035, 8.507059e+37
      %v3037 = vand.u32 %v3010, 2147483648
      %v3038 = vor.u32 1.1754944e-38, %v3037
      %v3039 = vsel %vm3036, %v3038, %v3034
      %v3040 = vmul.f32 1.0, %v3039
      %v3041 = vmul.f32 %v2618, %v2142
      %v3042 = vmul.f32 %v2633, %v2143
      %v3043 = vmul.f32 %v2893, %v2145
      %v3044 = vmul.f32 %v2908, %v2146
      %3047 = vrot.lane.b32.xlu0 %v3043, 32
      %v3048 = vpop.permute.xlu0 %3047
      %3049 = vrot.lane.b32.xlu0 %v3044, 32
      %v3050 = vpop.permute.xlu0 %3049
      %v3053 = vsel %vm948, %v3041, %v3048
      %v3054 = vsel %vm948, %v3042, %v3050
      %3055 = vmatpush.msra.mxu0 0.0
      %3056 = vmatpush.msra.mxu0 0.0
      %3057 = vmatpush.msra.mxu0 0.0
      %3058 = vmatpush.msra.mxu0 0.0
      %3059 = vmatpush.msra.mxu0 0.0
      %3060 = vmatpush.msra.mxu0 0.0
      %3061 = vmatpush.msra.mxu0 0.0
      %3062 = vmatpush.msra.mxu0 0.0
      %3063 = vmatpush.msra.mxu0 0.0
      %3064 = vmatpush.msra.mxu0 0.0
      %3065 = vmatpush.msra.mxu0 0.0
      %3066 = vmatpush.msra.mxu0 0.0
      %3067 = vmatpush.msra.mxu0 0.0
      %3068 = vmatpush.msra.mxu0 0.0
      %3069 = vmatpush.msra.mxu0 %v3054
      %3070 = vmatpush.msra.mxu0 %v3053
      %3071 = vmatmul.f32.gmra.mxu0 %v829
      %v3072 = vpop.f32.mrf.mxu0
      %v3073 = vadd.f32 0.0, %v3072
      %3074 = vmatmul.f32.gmra.mxu0 %v832
      %v3075 = vpop.f32.mrf.mxu0
      %v3076 = vadd.f32 0.0, %v3075
      %3077 = vdwg.mxu0
      %3078 = vmatpush.msra.mxu0 0.0
      %3079 = vmatpush.msra.mxu0 0.0
      %3080 = vmatpush.msra.mxu0 0.0
      %3081 = vmatpush.msra.mxu0 0.0
      %3082 = vmatpush.msra.mxu0 0.0
      %3083 = vmatpush.msra.mxu0 0.0
      %3084 = vmatpush.msra.mxu0 0.0
      %3085 = vmatpush.msra.mxu0 0.0
      %3086 = vmatpush.msra.mxu0 0.0
      %3087 = vmatpush.msra.mxu0 0.0
      %3088 = vmatpush.msra.mxu0 0.0
      %3089 = vmatpush.msra.mxu0 0.0
      %3090 = vmatpush.msra.mxu0 0.0
      %3091 = vmatpush.msra.mxu0 0.0
      %3092 = vmatpush.msra.mxu0 %v3076
      %3093 = vmatpush.msra.mxu0 %v3073
      %3094 = vmatmul.f32.gmra.mxu0 %v829
      %v3095 = vpop.f32.mrf.mxu0
      %v3096 = vadd.f32 0.0, %v3095
      %3097 = vmatmul.f32.gmra.mxu0 %v832
      %v3098 = vpop.f32.mrf.mxu0
      %v3099 = vadd.f32 0.0, %v3098
      %3100 = vdwg.mxu0
      %v3101 = vmul.f32 %v3096, 2.0
      %v3102 = vmul.f32 %v3099, 2.0
      %v3103 = vsub.f32 %v3101, %v3053
      %v3104 = vsub.f32 %v3102, %v3054
      %3105 = vmatpush.msra.mxu0 0.0
      %3106 = vmatpush.msra.mxu0 0.0
      %3107 = vmatpush.msra.mxu0 0.0
      %3108 = vmatpush.msra.mxu0 0.0
      %3109 = vmatpush.msra.mxu0 0.0
      %3110 = vmatpush.msra.mxu0 0.0
      %3111 = vmatpush.msra.mxu0 0.0
      %3112 = vmatpush.msra.mxu0 0.0
      %3113 = vmatpush.msra.mxu0 0.0
      %3114 = vmatpush.msra.mxu0 0.0
      %3115 = vmatpush.msra.mxu0 0.0
      %3116 = vmatpush.msra.mxu0 0.0
      %3117 = vmatpush.msra.mxu0 0.0
      %3118 = vmatpush.msra.mxu0 0.0
      %3119 = vmatpush.msra.mxu0 %v3076
      %3120 = vmatpush.msra.mxu0 %v3073
      %3121 = vmatmul.f32.gmra.mxu0 %v885
      %v3122 = vpop.f32.mrf.mxu0
      %v3123 = vadd.f32 0.0, %v3122
      %3124 = vmatmul.f32.gmra.mxu0 %v888
      %v3125 = vpop.f32.mrf.mxu0
      %v3126 = vadd.f32 0.0, %v3125
      %3127 = vdwg.mxu0
      %3128 = vmatpush.msra.mxu0 0.0
      %3129 = vmatpush.msra.mxu0 0.0
      %3130 = vmatpush.msra.mxu0 0.0
      %3131 = vmatpush.msra.mxu0 0.0
      %3132 = vmatpush.msra.mxu0 0.0
      %3133 = vmatpush.msra.mxu0 0.0
      %3134 = vmatpush.msra.mxu0 0.0
      %3135 = vmatpush.msra.mxu0 0.0
      %3136 = vmatpush.msra.mxu0 0.0
      %3137 = vmatpush.msra.mxu0 0.0
      %3138 = vmatpush.msra.mxu0 0.0
      %3139 = vmatpush.msra.mxu0 0.0
      %3140 = vmatpush.msra.mxu0 0.0
      %3141 = vmatpush.msra.mxu0 0.0
      %3142 = vmatpush.msra.mxu0 %v3126
      %3143 = vmatpush.msra.mxu0 %v3123
      %3144 = vmatmul.f32.gmra.mxu0 %v885
      %v3145 = vpop.f32.mrf.mxu0
      %v3146 = vadd.f32 0.0, %v3145
      %3147 = vmatmul.f32.gmra.mxu0 %v888
      %v3148 = vpop.f32.mrf.mxu0
      %v3149 = vadd.f32 0.0, %v3148
      %3150 = vdwg.mxu0
      %v3151 = vmul.f32 %v3146, 2.0
      %v3152 = vmul.f32 %v3149, 2.0
      %v3153 = vsub.f32 %v3151, %v3073
      %v3154 = vsub.f32 %v3152, %v3076
      %3157 = vrot.lane.b32.xlu0 %v3073, 32
      %v3158 = vpop.permute.xlu0 %3157
      %3159 = vrot.lane.b32.xlu0 %v3076, 32
      %v3160 = vpop.permute.xlu0 %3159
      %3165 = vrot.lane.b32.xlu0 %v3103, 64
      %v3166 = vpop.permute.xlu0 %3165
      %3167 = vrot.lane.b32.xlu0 %v3104, 64
      %v3168 = vpop.permute.xlu0 %3167
      %3173 = vrot.lane.b32.xlu0 %v3123, 96
      %v3174 = vpop.permute.xlu0 %3173
      %3175 = vrot.lane.b32.xlu0 %v3126, 96
      %v3176 = vpop.permute.xlu0 %3175
      %v3179 = vsel %vm948, %v3053, %v3158
      %v3180 = vsel %vm948, %v3054, %v3160
      %v3181 = vsel %vm1154, %v3179, %v3166
      %v3182 = vsel %vm1154, %v3180, %v3168
      %v3183 = vsel %vm1157, %v3181, %v3174
      %v3184 = vsel %vm1157, %v3182, %v3176
      %v3186 = vsel %vm948, %v3153, 0
      %v3189 = vsel %vm948, %v3154, 0
      %3191 = vmatpush.msra.mxu0 %v2133
      %3192 = vmatpush.msra.mxu0 %v2132
      %3193 = vmatpush.msra.mxu0 %v2131
      %3194 = vmatpush.msra.mxu0 %v2130
      %3195 = vmatpush.msra.mxu0 %v2129
      %3196 = vmatpush.msra.mxu0 %v2128
      %3197 = vmatpush.msra.mxu0 %v2127
      %3198 = vmatpush.msra.mxu0 %v2126
      %3199 = vmatpush.msra.mxu0 %v2125
      %3200 = vmatpush.msra.mxu0 %v2124
      %3201 = vmatpush.msra.mxu0 %v2123
      %3202 = vmatpush.msra.mxu0 %v2122
      %3203 = vmatpush.msra.mxu0 %v2121
      %3204 = vmatpush.msra.mxu0 %v2120
      %3205 = vmatpush.msra.mxu0 %v2119
      %3206 = vmatpush.msra.mxu0 %v2118
      %3207 = vmatmul.f32.gmra.mxu0 %v3183
      %v3208 = vpop.f32.mrf.mxu0
      %v3209 = vadd.f32 0.0, %v3208
      %3210 = vmatmul.f32.gmra.mxu0 %v3184
      %v3211 = vpop.f32.mrf.mxu0
      %v3212 = vadd.f32 0.0, %v3211
      %3213 = vdwg.mxu0
      %3214 = vmatpush.msra.mxu0 0.0
      %3215 = vmatpush.msra.mxu0 0.0
      %3216 = vmatpush.msra.mxu0 0.0
      %3217 = vmatpush.msra.mxu0 0.0
      %3218 = vmatpush.msra.mxu0 0.0
      %3219 = vmatpush.msra.mxu0 0.0
      %3220 = vmatpush.msra.mxu0 0.0
      %3221 = vmatpush.msra.mxu0 0.0
      %3222 = vmatpush.msra.mxu0 0.0
      %3223 = vmatpush.msra.mxu0 0.0
      %3224 = vmatpush.msra.mxu0 0.0
      %3225 = vmatpush.msra.mxu0 0.0
      %3226 = vmatpush.msra.mxu0 %v2137
      %3227 = vmatpush.msra.mxu0 %v2136
      %3228 = vmatpush.msra.mxu0 %v2135
      %3229 = vmatpush.msra.mxu0 %v2134
      %3230 = vmatmul.f32.gmra.mxu0 %v3186
      %v3231 = vpop.f32.mrf.mxu0
      %v3232 = vadd.f32 %v3209, %v3231
      %3233 = vmatmul.f32.gmra.mxu0 %v3189
      %v3234 = vpop.f32.mrf.mxu0
      %v3235 = vadd.f32 %v3212, %v3234
      %3236 = vdwg.mxu0
      %3237 = vmatpush.msra.mxu0 %v2073
      %3238 = vmatpush.msra.mxu0 %v2072
      %3239 = vmatpush.msra.mxu0 %v2071
      %3240 = vmatpush.msra.mxu0 %v2070
      %3241 = vmatpush.msra.mxu0 %v2069
      %3242 = vmatpush.msra.mxu0 %v2068
      %3243 = vmatpush.msra.mxu0 %v2067
      %3244 = vmatpush.msra.mxu0 %v2066
      %3245 = vmatpush.msra.mxu0 %v2065
      %3246 = vmatpush.msra.mxu0 %v2064
      %3247 = vmatpush.msra.mxu0 %v2063
      %3248 = vmatpush.msra.mxu0 %v2062
      %3249 = vmatpush.msra.mxu0 %v2061
      %3250 = vmatpush.msra.mxu0 %v2060
      %3251 = vmatpush.msra.mxu0 %v2059
      %3252 = vmatpush.msra.mxu0 %v2058
      %3253 = vmatmul.f32.gmra.mxu0 %v2395
      %v3254 = vpop.f32.mrf.mxu0
      %v3255 = vadd.f32 %v3232, %v3254
      %3256 = vmatmul.f32.gmra.mxu0 %v2396
      %v3257 = vpop.f32.mrf.mxu0
      %v3258 = vadd.f32 %v3235, %v3257
      %3259 = vdwg.mxu0
      %3260 = vmatpush.msra.mxu0 0.0
      %3261 = vmatpush.msra.mxu0 0.0
      %3262 = vmatpush.msra.mxu0 0.0
      %3263 = vmatpush.msra.mxu0 0.0
      %3264 = vmatpush.msra.mxu0 0.0
      %3265 = vmatpush.msra.mxu0 0.0
      %3266 = vmatpush.msra.mxu0 0.0
      %3267 = vmatpush.msra.mxu0 0.0
      %3268 = vmatpush.msra.mxu0 0.0
      %3269 = vmatpush.msra.mxu0 0.0
      %3270 = vmatpush.msra.mxu0 0.0
      %3271 = vmatpush.msra.mxu0 0.0
      %3272 = vmatpush.msra.mxu0 %v2077
      %3273 = vmatpush.msra.mxu0 %v2076
      %3274 = vmatpush.msra.mxu0 %v2075
      %3275 = vmatpush.msra.mxu0 %v2074
      %3276 = vmatmul.f32.gmra.mxu0 %v2541
      %v3277 = vpop.f32.mrf.mxu0
      %v3278 = vadd.f32 %v3255, %v3277
      %3279 = vmatmul.f32.gmra.mxu0 %v2543
      %v3280 = vpop.f32.mrf.mxu0
      %v3281 = vadd.f32 %v3258, %v3280
      %3282 = vdwg.mxu0
      %v3284 = vperm.slane %v2140, 0
      %v3286 = vadd.f32 %v3278, %v3284
      %v3287 = vadd.f32 %v3281, %v3284
      %v3288 = vtanh.pop %v3286
      %v3289 = vtanh.pop %v3287
      %v3290 = vmul.f32 %v2753, %v2142
      %v3291 = vmul.f32 %v2768, %v2143
      %v3292 = vsub.f32 1.0, %v2753
      %v3293 = vsub.f32 1.0, %v2768
      %v3294 = vmul.f32 %v3292, %v3288
      %v3295 = vmul.f32 %v3293, %v3289
      %v3296 = vadd.f32 %v3290, %v3294
      %v3297 = vadd.f32 %v3291, %v3295
      %3298 = vst.msk [vmem:[%s2141] sm:$0xff] %vm948, %v3296
      %3299 = vst.msk [vmem:[%s2141 + $0x8] sm:$0xff] %vm948, %v3297
      %3302 = vrot.lane.b32.xlu0 %v3053, 96
      %v3303 = vpop.permute.xlu0 %3302
      %3304 = vrot.lane.b32.xlu0 %v3054, 96
      %v3305 = vpop.permute.xlu0 %3304
      %3308 = vrot.lane.b32.xlu0 %v3103, 32
      %v3309 = vpop.permute.xlu0 %3308
      %3310 = vrot.lane.b32.xlu0 %v3104, 32
      %v3311 = vpop.permute.xlu0 %3310
      %3314 = vrot.lane.b32.xlu0 %v3123, 64
      %v3315 = vpop.permute.xlu0 %3314
      %3316 = vrot.lane.b32.xlu0 %v3126, 64
      %v3317 = vpop.permute.xlu0 %3316
      %3320 = vrot.lane.b32.xlu0 %v3153, 96
      %v3321 = vpop.permute.xlu0 %3320
      %3322 = vrot.lane.b32.xlu0 %v3154, 96
      %v3323 = vpop.permute.xlu0 %3322
      %v3324 = vsel %vm948, %v3303, %v3073
      %v3325 = vsel %vm948, %v3305, %v3076
      %v3326 = vsel %vm1154, %v3324, %v3309
      %v3327 = vsel %vm1154, %v3325, %v3311
      %v3328 = vsel %vm1157, %v3326, %v3315
      %v3329 = vsel %vm1157, %v3327, %v3317
      %v3330 = vsel %vm948, %v3321, 0
      %v3332 = vsel %vm948, %v3323, 0
      %3334 = vmatpush.msra.mxu0 %v2133
      %3335 = vmatpush.msra.mxu0 %v2132
      %3336 = vmatpush.msra.mxu0 %v2131
      %3337 = vmatpush.msra.mxu0 %v2130
      %3338 = vmatpush.msra.mxu0 %v2129
      %3339 = vmatpush.msra.mxu0 %v2128
      %3340 = vmatpush.msra.mxu0 %v2127
      %3341 = vmatpush.msra.mxu0 %v2126
      %3342 = vmatpush.msra.mxu0 %v2125
      %3343 = vmatpush.msra.mxu0 %v2124
      %3344 = vmatpush.msra.mxu0 %v2123
      %3345 = vmatpush.msra.mxu0 %v2122
      %3346 = vmatpush.msra.mxu0 %v2121
      %3347 = vmatpush.msra.mxu0 %v2120
      %3348 = vmatpush.msra.mxu0 %v2119
      %3349 = vmatpush.msra.mxu0 %v2118
      %3350 = vmatmul.f32.gmra.mxu0 %v3328
      %v3351 = vpop.f32.mrf.mxu0
      %v3352 = vadd.f32 0.0, %v3351
      %3353 = vmatmul.f32.gmra.mxu0 %v3329
      %v3354 = vpop.f32.mrf.mxu0
      %v3355 = vadd.f32 0.0, %v3354
      %3356 = vdwg.mxu0
      %3357 = vmatpush.msra.mxu0 0.0
      %3358 = vmatpush.msra.mxu0 0.0
      %3359 = vmatpush.msra.mxu0 0.0
      %3360 = vmatpush.msra.mxu0 0.0
      %3361 = vmatpush.msra.mxu0 0.0
      %3362 = vmatpush.msra.mxu0 0.0
      %3363 = vmatpush.msra.mxu0 0.0
      %3364 = vmatpush.msra.mxu0 0.0
      %3365 = vmatpush.msra.mxu0 0.0
      %3366 = vmatpush.msra.mxu0 0.0
      %3367 = vmatpush.msra.mxu0 0.0
      %3368 = vmatpush.msra.mxu0 0.0
      %3369 = vmatpush.msra.mxu0 %v2137
      %3370 = vmatpush.msra.mxu0 %v2136
      %3371 = vmatpush.msra.mxu0 %v2135
      %3372 = vmatpush.msra.mxu0 %v2134
      %3373 = vmatmul.f32.gmra.mxu0 %v3330
      %v3374 = vpop.f32.mrf.mxu0
      %v3375 = vadd.f32 %v3352, %v3374
      %3376 = vmatmul.f32.gmra.mxu0 %v3332
      %v3377 = vpop.f32.mrf.mxu0
      %v3378 = vadd.f32 %v3355, %v3377
      %3379 = vdwg.mxu0
      %3380 = vmatpush.msra.mxu0 %v2073
      %3381 = vmatpush.msra.mxu0 %v2072
      %3382 = vmatpush.msra.mxu0 %v2071
      %3383 = vmatpush.msra.mxu0 %v2070
      %3384 = vmatpush.msra.mxu0 %v2069
      %3385 = vmatpush.msra.mxu0 %v2068
      %3386 = vmatpush.msra.mxu0 %v2067
      %3387 = vmatpush.msra.mxu0 %v2066
      %3388 = vmatpush.msra.mxu0 %v2065
      %3389 = vmatpush.msra.mxu0 %v2064
      %3390 = vmatpush.msra.mxu0 %v2063
      %3391 = vmatpush.msra.mxu0 %v2062
      %3392 = vmatpush.msra.mxu0 %v2061
      %3393 = vmatpush.msra.mxu0 %v2060
      %3394 = vmatpush.msra.mxu0 %v2059
      %3395 = vmatpush.msra.mxu0 %v2058
      %3396 = vmatmul.f32.gmra.mxu0 %v2427
      %v3397 = vpop.f32.mrf.mxu0
      %v3398 = vadd.f32 %v3375, %v3397
      %3399 = vmatmul.f32.gmra.mxu0 %v2428
      %v3400 = vpop.f32.mrf.mxu0
      %v3401 = vadd.f32 %v3378, %v3400
      %3402 = vdwg.mxu0
      %3403 = vmatpush.msra.mxu0 0.0
      %3404 = vmatpush.msra.mxu0 0.0
      %3405 = vmatpush.msra.mxu0 0.0
      %3406 = vmatpush.msra.mxu0 0.0
      %3407 = vmatpush.msra.mxu0 0.0
      %3408 = vmatpush.msra.mxu0 0.0
      %3409 = vmatpush.msra.mxu0 0.0
      %3410 = vmatpush.msra.mxu0 0.0
      %3411 = vmatpush.msra.mxu0 0.0
      %3412 = vmatpush.msra.mxu0 0.0
      %3413 = vmatpush.msra.mxu0 0.0
      %3414 = vmatpush.msra.mxu0 0.0
      %3415 = vmatpush.msra.mxu0 %v2077
      %3416 = vmatpush.msra.mxu0 %v2076
      %3417 = vmatpush.msra.mxu0 %v2075
      %3418 = vmatpush.msra.mxu0 %v2074
      %3419 = vmatmul.f32.gmra.mxu0 %v2819
      %v3420 = vpop.f32.mrf.mxu0
      %v3421 = vadd.f32 %v3398, %v3420
      %3422 = vmatmul.f32.gmra.mxu0 %v2821
      %v3423 = vpop.f32.mrf.mxu0
      %v3424 = vadd.f32 %v3401, %v3423
      %3425 = vdwg.mxu0
      %v3426 = vadd.f32 %v3421, %v3284
      %v3427 = vadd.f32 %v3424, %v3284
      %v3428 = vtanh.pop %v3426
      %v3429 = vtanh.pop %v3427
      %v3430 = vmul.f32 %v3025, %v2145
      %v3431 = vmul.f32 %v3040, %v2146
      %v3432 = vsub.f32 1.0, %v3025
      %v3433 = vsub.f32 1.0, %v3040
      %v3434 = vmul.f32 %v3432, %v3428
      %v3435 = vmul.f32 %v3433, %v3429
      %v3436 = vadd.f32 %v3430, %v3434
      %v3437 = vadd.f32 %v3431, %v3435
      %3438 = vst.msk [vmem:[%s2144] sm:$0xff] %vm948, %v3436
      %3439 = vst.msk [vmem:[%s2144 + $0x8] sm:$0xff] %vm948, %v3437
      %v3440 = vld [vmem:[%s20] sm:$0xff]
      %v3441 = vld [vmem:[%s20 + $0x8] sm:$0xff]
      %v3442 = vld [vmem:[%s20 + $0x10] sm:$0xff]
      %v3443 = vld [vmem:[%s20 + $0x18] sm:$0xff]
      %v3444 = vld [vmem:[%s21] sm:$0x1]
      %v3446 = vperm.slane %v3444, 0
      %v3449 = vsel %vm948, %v3296, 0
      %v3452 = vsel %vm948, %v3297, 0
      %3454 = vmatpush.msra.mxu0 0.0
      %3455 = vmatpush.msra.mxu0 0.0
      %3456 = vmatpush.msra.mxu0 0.0
      %3457 = vmatpush.msra.mxu0 0.0
      %3458 = vmatpush.msra.mxu0 0.0
      %3459 = vmatpush.msra.mxu0 0.0
      %3460 = vmatpush.msra.mxu0 0.0
      %3461 = vmatpush.msra.mxu0 0.0
      %3462 = vmatpush.msra.mxu0 0.0
      %3463 = vmatpush.msra.mxu0 0.0
      %3464 = vmatpush.msra.mxu0 0.0
      %3465 = vmatpush.msra.mxu0 0.0
      %3466 = vmatpush.msra.mxu0 %v3443
      %3467 = vmatpush.msra.mxu0 %v3442
      %3468 = vmatpush.msra.mxu0 %v3441
      %3469 = vmatpush.msra.mxu0 %v3440
      %3470 = vmatmul.f32.gmra.mxu0 %v3449
      %v3471 = vpop.f32.mrf.mxu0
      %v3472 = vadd.f32 %v3446, %v3471
      %3473 = vmatmul.f32.gmra.mxu0 %v3452
      %v3474 = vpop.f32.mrf.mxu0
      %v3475 = vadd.f32 %v3446, %v3474
      %3476 = vdwg.mxu0
      %3477 = vst.msk [vmem:[%s705] sm:$0xff] %vm824, %v3472
      %3478 = vst.msk [vmem:[%s705 + $0x8] sm:$0xff] %vm824, %v3475
      %3479 = vst.msk [vmem:[#allocation3] sm:$0xff] %vm824, %v3472
      %3480 = vst.msk [vmem:[#allocation3 + $0x8] sm:$0xff] %vm824, %v3475
      %v3482 = vsel %vm948, %v3436, 0
      %v3485 = vsel %vm948, %v3437, 0
      %3487 = vmatpush.msra.mxu0 0.0
      %3488 = vmatpush.msra.mxu0 0.0
      %3489 = vmatpush.msra.mxu0 0.0
      %3490 = vmatpush.msra.mxu0 0.0
      %3491 = vmatpush.msra.mxu0 0.0
      %3492 = vmatpush.msra.mxu0 0.0
      %3493 = vmatpush.msra.mxu0 0.0
      %3494 = vmatpush.msra.mxu0 0.0
      %3495 = vmatpush.msra.mxu0 0.0
      %3496 = vmatpush.msra.mxu0 0.0
      %3497 = vmatpush.msra.mxu0 0.0
      %3498 = vmatpush.msra.mxu0 0.0
      %3499 = vmatpush.msra.mxu0 %v3443
      %3500 = vmatpush.msra.mxu0 %v3442
      %3501 = vmatpush.msra.mxu0 %v3441
      %3502 = vmatpush.msra.mxu0 %v3440
      %3503 = vmatmul.f32.gmra.mxu0 %v3482
      %v3504 = vpop.f32.mrf.mxu0
      %v3505 = vadd.f32 %v3446, %v3504
      %3506 = vmatmul.f32.gmra.mxu0 %v3485
      %v3507 = vpop.f32.mrf.mxu0
      %v3508 = vadd.f32 %v3446, %v3507
      %3509 = vdwg.mxu0
      %3510 = vst.msk [vmem:[%s705 + $0x10] sm:$0xff] %vm824, %v3505
      %3511 = vst.msk [vmem:[%s705 + $0x18] sm:$0xff] %vm824, %v3508
      %3512 = vst.msk [vmem:[%s739] sm:$0xff] %vm824, %v3505
      %3513 = vst.msk [vmem:[%s739 + $0x8] sm:$0xff] %vm824, %v3508
      %p3514 = scmp.lt.s32.totalorder %s37, 1
      %s3515 = scalar_select %p3514, %s37, 1
      %p3516 = scmp.lt.s32.totalorder %s38, 3
      %s3517 = scalar_select %p3516, %s38, 3
      %s3518 = smul.addr %s3517, 4
      %s3519 = smul.addr %s3515, 16
      %s3520 = sadd.s32 %s3518, %s3519
      %s3521 = smul.addr %s3520, 8
      %s3522 = scalar_lea.vmem %s22, %s3521
      // Predicated region
      $region113: #{dcrnn_decoder_forward.1} parent=107 // pred_check
        %p3523 = pneg %p532
      $region114: #{dcrnn_decoder_forward.1} parent=107 // pred_check_branch
        %3525 = sbr.rel (%p3523) target = $region116
      $region115: #{dcrnn_decoder_forward.1} parent=107 // pred_region
        _
      $region116: #{dcrnn_decoder_forward.1} parent=107 // pred_fallthru
        _
    $region108: #{dcrnn_decoder_forward.1} parent=5 // pred_fallthru
      _
    %p3526 = scmp.le.s32.totalorder 2, %s28
    // Predicated region
    $region117: #{dcrnn_decoder_forward.1} parent=5 // pred_check
      %p3527 = pneg %p3526
    $region118: #{dcrnn_decoder_forward.1} parent=5 // pred_check_branch
      %3529 = sbr.rel (%p3527) target = $region120
    $region119: #{dcrnn_decoder_forward.1} parent=5 // pred_region
      %s3530 = ssub.s32 %s28, 2
      // Predicated region
      $region121: #{dcrnn_decoder_forward.1} parent=119 // pred_check
        %p3531 = pneg %p538
      $region122: #{dcrnn_decoder_forward.1} parent=119 // pred_check_branch
        %3533 = sbr.rel (%p3531) target = $region124
      $region123: #{dcrnn_decoder_forward.1} parent=119 // pred_region
        %p3534 = scmp.lt.s32.totalorder %s39, 1
        %s3535 = scalar_select %p3534, %s39, 1
        %p3536 = scmp.lt.s32.totalorder %s40, 3
        %s3537 = scalar_select %p3536, %s40, 3
        %s3538 = smul.addr %s3537, 4
        %s3539 = smul.addr %s3535, 16
        %s3540 = sadd.s32 %s3538, %s3539
        %s3541 = smul.addr %s3540, 8
        %s3542 = scalar_lea.vmem %s22, %s3541
      $region124: #{dcrnn_decoder_forward.1} parent=119 // pred_fallthru
        _
    $region120: #{dcrnn_decoder_forward.1} parent=5 // pred_fallthru
      _
  $region6: #{dcrnn_decoder_forward.1} parent=0 // loop_footer
    %s32 = sadd.s32 1, %s28
  $region7: #{dcrnn_decoder_forward.1} parent=0 // loop_footer_branch
    %27 = sbr.rel target = $region3
  $region8: #{dcrnn_decoder_forward.1} parent=0 // loop_exit
    _

</llo_original>
